<compile_context>
chip_gen: v5e
topology: v5e:2x2
jax: 0.10.0
libtpu: 0.0.40
codegen_flags: <defaults>
</compile_context>

<pallas_src>
import jax
import jax.numpy as jnp
from jax.experimental import pallas as pl
from jax.experimental.pallas import tpu as pltpu

# ---------------- small synthetic configuration ----------------
B = 2            # batch per image stream
C_IN = 4         # RGBD channels
H = W = 16       # input spatial size
PATCH = 4        # patch-embed stride of the backbone stub
HP, WP = H // PATCH, W // PATCH
S = HP * WP      # number of tokens == "image_size" (h*w of backbone output)
D = 32           # d_embed
N_HEAD = 4
HEAD_DIM = D // N_HEAD
D_FF = 4 * D
N_LAYERS = 2     # num_layers_clve_attentive
OUT_CH = 16      # projection head out_channels
EPS = 1e-5
CPP = C_IN * PATCH * PATCH   # 64 patch features
BT = 2 * B                   # fused batch (image_a ++ image_b)

# ---- packed-parameter layout (static offsets) ----
# Row-stacked bf16 weight slab (width D):  [wpe | w2 | wo | wf(pad)]
R_WPE = 0
R_W2 = R_WPE + CPP            # 64
R_WO = R_W2 + D_FF            # 192
R_WF = R_WO + D               # 224
WR_ROWS = R_WF + OUT_CH       # 240
# Column-stacked bf16 weight slab (height D):  [w1 | wqkv(pad to 128) | wp]
C_W1 = 0
C_WQKV = C_W1 + D_FF          # 128  (128-lane aligned)
C_WP = C_WQKV + 128           # 256  (128-lane aligned)
WC_COLS = C_WP + OUT_CH       # 272
# Bias / LN / pooling matrix: every vector starts at lane 0 of its own row.
ROW_LN1G, ROW_LN1B, ROW_BQKV, ROW_BO = 0, 1, 2, 3
ROW_LN2G, ROW_LN2B, ROW_B1, ROW_B2 = 4, 5, 6, 7
ROW_BP, ROW_BF, ROW_LNHG, ROW_LNHB = 8, 9, 10, 11
ROW_BPE = 12
ROW_POOL = 16                 # BT block-diagonal pooling rows (sublane aligned)
BM_ROWS = 24                  # padded to a multiple of 8 sublanes


# ======================= fused Pallas kernel =======================

def clve_fused_kernel(xp_ref, wr_ref, wc_ref, bm_ref, sc_ref, o_ref):
    """Patch-embed + last attentive layer + token pooling + projection head."""
    f32, bf16 = jnp.float32, jnp.bfloat16
    xp = xp_ref[...]                            # (BT*S, CPP) f32
    wr = wr_ref[...]                            # (WR_ROWS, D) bf16
    wc = wc_ref[...]                            # (D, WC_COLS) bf16
    bm = bm_ref[...]                            # (BM_ROWS, 128) f32
    bts = xp.shape[0]
    bt = bts // S

    # ---- backbone patch-embed (stub): feat = patches @ wpe + bpe ----
    wpe = wr[R_WPE:R_WPE + CPP, :]
    bpe = bm[ROW_BPE, :D]
    x2 = jnp.dot(xp.astype(bf16), wpe, preferred_element_type=f32) + bpe   # (BT*S, D)

    # ---- LayerNorm 1 ----
    ln1_g = bm[ROW_LN1G, :D]
    ln1_b = bm[ROW_LN1B, :D]
    mu = jnp.mean(x2, axis=-1, keepdims=True)
    var = jnp.mean(jnp.square(x2 - mu), axis=-1, keepdims=True)
    xn = (x2 - mu) * jax.lax.rsqrt(var + EPS) * ln1_g + ln1_b

    # ---- fused QKV projection: one full-width MXU push ----
    wqkv = wc[:, C_WQKV:C_WQKV + 3 * D]         # (D, 3D) bf16
    bqkv = bm[ROW_BQKV, :3 * D]
    qkv = jnp.dot(xn.astype(bf16), wqkv, preferred_element_type=f32) + bqkv  # (BT*S, 3D)

    # ---- multi-head self attention (no mask); per-head softmax loop ----
    scale = 1.0 / (HEAD_DIM ** 0.5)
    ctx_heads = []
    for h in range(N_HEAD):                     # static unroll; 8-lane activation slices
        q_h = qkv[:, h * HEAD_DIM:(h + 1) * HEAD_DIM].reshape(bt, S, HEAD_DIM)
        k_h = qkv[:, D + h * HEAD_DIM:D + (h + 1) * HEAD_DIM].reshape(bt, S, HEAD_DIM)
        v_h = qkv[:, 2 * D + h * HEAD_DIM:2 * D + (h + 1) * HEAD_DIM].reshape(bt, S, HEAD_DIM)
        s_h = jnp.einsum('bsk,btk->bst', q_h.astype(bf16), k_h.astype(bf16),
                         preferred_element_type=f32) * scale
        s_h = s_h - jnp.max(s_h, axis=-1, keepdims=True)
        p_h = jnp.exp(s_h)
        p_h = p_h / jnp.sum(p_h, axis=-1, keepdims=True)      # exact normalization
        ctx_heads.append(jnp.einsum('bst,btk->bsk', p_h.astype(bf16), v_h.astype(bf16),
                                    preferred_element_type=f32))
    ctx = jnp.concatenate(ctx_heads, axis=-1).reshape(bts, D)  # (BT*S, D)

    # ---- fused attention output projection + residual ----
    wo = wr[R_WO:R_WO + D, :]
    bo = bm[ROW_BO, :D]
    x2 = x2 + jnp.dot(ctx.astype(bf16), wo, preferred_element_type=f32) + bo

    # ---- LayerNorm 2 + MLP (QuickGELU) ----
    ln2_g = bm[ROW_LN2G, :D]
    ln2_b = bm[ROW_LN2B, :D]
    mu2 = jnp.mean(x2, axis=-1, keepdims=True)
    var2 = jnp.mean(jnp.square(x2 - mu2), axis=-1, keepdims=True)
    xn2 = (x2 - mu2) * jax.lax.rsqrt(var2 + EPS) * ln2_g + ln2_b
    w1 = wc[:, C_W1:C_W1 + D_FF]
    b1 = bm[ROW_B1, :D_FF]
    hid = jnp.dot(xn2.astype(bf16), w1, preferred_element_type=f32) + b1
    hid = hid * jax.nn.sigmoid(1.702 * hid)     # QuickGELU
    w2 = wr[R_W2:R_W2 + D_FF, :]
    b2 = bm[ROW_B2, :D]
    state2 = x2 + jnp.dot(hid.astype(bf16), w2, preferred_element_type=f32) + b2   # (BT*S, D)

    # ---- token pooling: block-diagonal (bt, bt*S) @ (bt*S, D) matmul ----
    wblk = bm[ROW_POOL:ROW_POOL + bt, :bts]     # rows packed host-side
    pooled = jnp.dot(wblk.astype(bf16), state2.astype(bf16),
                     preferred_element_type=f32)
    pooled = pooled + sc_ref[0]                 # pooling bias (SMEM scalar)

    # ---- projection head ----
    wp = wc[:, C_WP:C_WP + OUT_CH]
    bp = bm[ROW_BP, :OUT_CH]
    projected = jnp.dot(pooled.astype(bf16), wp, preferred_element_type=f32) + bp
    g = projected * jax.nn.sigmoid(1.702 * projected)          # QuickGELU
    wf = wr[R_WF:R_WF + OUT_CH, :OUT_CH]
    bfv = bm[ROW_BF, :OUT_CH]
    # TODO(synk): nn.Dropout has no inference-side effect; treated as identity.
    y = jnp.dot(g.astype(bf16), wf, preferred_element_type=f32) + bfv + projected
    lnh_g = bm[ROW_LNHG, :OUT_CH]
    lnh_b = bm[ROW_LNHB, :OUT_CH]
    mu3 = jnp.mean(y, axis=-1, keepdims=True)
    var3 = jnp.mean(jnp.square(y - mu3), axis=-1, keepdims=True)
    o_ref[...] = (y - mu3) * jax.lax.rsqrt(var3 + EPS) * lnh_g + lnh_b


def run_clve_fused(xp, packed):
    """xp: (BT*S, CPP) f32 patch view -> (BT, OUT_CH) f32, single kernel launch."""
    bt = xp.shape[0] // S
    vmem = pl.BlockSpec(memory_space=pltpu.MemorySpace.VMEM)
    smem = pl.BlockSpec(memory_space=pltpu.MemorySpace.SMEM)
    return pl.pallas_call(
        clve_fused_kernel,
        out_shape=jax.ShapeDtypeStruct((bt, OUT_CH), jnp.float32),
        in_specs=[vmem, vmem, vmem, vmem, smem],
        out_specs=vmem,
    )(xp, packed["w_rows"], packed["w_cols"], packed["b_mat"], packed["scalars"])


# ======================= model glue =======================

def patchify(rgbd):
    """Layout plumbing only: (b, C, H, W) -> (b*S, C*P*P) patch view."""
    b = rgbd.shape[0]
    x = rgbd.reshape(b, C_IN, HP, PATCH, WP, PATCH)
    x = x.transpose(0, 2, 4, 1, 3, 5).reshape(b * S, CPP)
    return x


def backbone_stub(rgbd, params):
    """Deterministic stand-in for the DFormer_* pretrained extractor (reference path).

    TODO(synk): DFormer_{Tiny,Small,Base,Large} are external pretrained backbones
    not provided here; replaced with a deterministic patch-embed stub producing
    the same layout [B, d_embed, h, w] -> [B, S, D].
    """
    b = rgbd.shape[0]
    x = patchify(rgbd).reshape(b, S, CPP)
    return x @ params["wpe"] + params["bpe"]          # (B, S, D)


def clve_model_forward(image_a, image_b, packed):
    """Both image streams batched into one fused forward (single pallas_call)."""
    rgbd = jnp.concatenate([image_a, image_b], axis=0)        # (2B, C, H, W)
    xp = patchify(rgbd)                                       # (2B*S, CPP)
    out = run_clve_fused(xp, packed)                          # (2B, OUT_CH)
    b = image_a.shape[0]
    return out[:b], out[b:]


# ======================= pure-JAX reference (for validation) =======================

def _layer_ref(x, lp):
    mu = x.mean(-1, keepdims=True)
    var = ((x - mu) ** 2).mean(-1, keepdims=True)
    xn = (x - mu) / jnp.sqrt(var + EPS) * lp["ln1_g"][0] + lp["ln1_b"][0]
    qkv = xn @ lp["wqkv"] + lp["bqkv"][0]
    q, k, v = qkv[..., :D], qkv[..., D:2 * D], qkv[..., 2 * D:]
    outs = []
    for h in range(N_HEAD):
        sl = slice(h * HEAD_DIM, (h + 1) * HEAD_DIM)
        s = (q[..., sl] / jnp.sqrt(float(HEAD_DIM))) @ jnp.swapaxes(k[..., sl], -1, -2)
        outs.append(jax.nn.softmax(s, axis=-1) @ v[..., sl])
    ctx = jnp.concatenate(outs, axis=-1)
    x = x + ctx @ lp["wo"] + lp["bo"][0]
    mu = x.mean(-1, keepdims=True)
    var = ((x - mu) ** 2).mean(-1, keepdims=True)
    xn = (x - mu) / jnp.sqrt(var + EPS) * lp["ln2_g"][0] + lp["ln2_b"][0]
    hid = xn @ lp["w1"] + lp["b1"][0]
    hid = hid * jax.nn.sigmoid(1.702 * hid)
    return x + hid @ lp["w2"] + lp["b2"][0]


def clve_forward_ref(rgbd, params):
    feat = backbone_stub(rgbd, params)
    state = feat
    for lp in params["layers"]:                 # reproduces the upstream loop exactly
        state = _layer_ref(feat, lp)
    pooled = jnp.einsum('bsd,s->bd', state, params["wpool"][:, 0]) + params["bpool"][0, 0]
    projected = pooled @ params["wp"] + params["bp"][0]
    g = projected * jax.nn.sigmoid(1.702 * projected)
    y = g @ params["wf"] + params["bf"][0] + projected
    mu = y.mean(-1, keepdims=True)
    var = ((y - mu) ** 2).mean(-1, keepdims=True)
    return (y - mu) / jnp.sqrt(var + EPS) * params["ln_g"][0] + params["ln_b"][0]


# ======================= deterministic init & packing =======================

def _linear(key, fan_in, fan_out):
    k1, k2 = jax.random.split(key)
    w = jax.random.normal(k1, (fan_in, fan_out), jnp.float32) / jnp.sqrt(float(fan_in))
    b = 0.01 * jax.random.normal(k2, (1, fan_out), jnp.float32)
    return w, b


def init_params(key):
    keys = jax.random.split(key, 4 + N_LAYERS)
    params = {}
    wpe, bpe = _linear(keys[0], CPP, D)
    params["wpe"], params["bpe"] = wpe, bpe[0]
    layers = []
    for i in range(N_LAYERS):
        lk = jax.random.split(keys[1 + i], 4)
        wqkv, bqkv = _linear(lk[0], D, 3 * D)
        wo, bo = _linear(lk[1], D, D)
        w1, b1 = _linear(lk[2], D, D_FF)
        w2, b2 = _linear(lk[3], D_FF, D)
        layers.append(dict(
            ln1_g=jnp.ones((1, D), jnp.float32), ln1_b=jnp.zeros((1, D), jnp.float32),
            wqkv=wqkv, bqkv=bqkv, wo=wo, bo=bo,
            ln2_g=jnp.ones((1, D), jnp.float32), ln2_b=jnp.zeros((1, D), jnp.float32),
            w1=w1, b1=b1, w2=w2, b2=b2,
        ))
    params["layers"] = layers
    kpool, kp1, kp2 = jax.random.split(keys[1 + N_LAYERS], 3)
    params["wpool"] = jax.random.normal(kpool, (S, 1), jnp.float32) / jnp.sqrt(float(S))
    params["bpool"] = jnp.full((1, 1), 0.01, jnp.float32)
    wp, bp = _linear(kp1, D, OUT_CH)
    wf, bf = _linear(kp2, OUT_CH, OUT_CH)
    params.update(dict(
        wp=wp, bp=bp, wf=wf, bf=bf,
        ln_g=jnp.ones((1, OUT_CH), jnp.float32), ln_b=jnp.zeros((1, OUT_CH), jnp.float32),
    ))
    return params


def pack_params(params):
    """Pack patch-embed + last attentive layer + pooling + head into 4 inputs."""
    lp = params["layers"][-1]
    bf16 = jnp.bfloat16

    # row-stacked bf16 slab (width D): [wpe | w2 | wo | wf(padded)]
    w_rows = jnp.concatenate([
        params["wpe"],                                           # (CPP, D)
        lp["w2"],                                                # (D_FF, D)
        lp["wo"],                                                # (D, D)
        jnp.pad(params["wf"], ((0, 0), (0, D - OUT_CH))),        # (OUT_CH, D)
    ], axis=0).astype(bf16)
    assert w_rows.shape == (WR_ROWS, D)

    # column-stacked bf16 slab (height D): [w1 | wqkv (lane-aligned, padded) | wp]
    w_cols = jnp.concatenate([
        lp["w1"],                                                # (D, D_FF)
        jnp.pad(lp["wqkv"], ((0, 0), (0, 128 - 3 * D))),         # (D, 128)
        params["wp"],                                            # (D, OUT_CH)
    ], axis=1).astype(bf16)
    assert w_cols.shape == (D, WC_COLS)

    # bias / LN / pooling matrix: every vector starts at lane 0 of its own row
    def row(v):
        return jnp.pad(v, (0, 128 - v.shape[0]))
    rows = [
        row(lp["ln1_g"][0]), row(lp["ln1_b"][0]), row(lp["bqkv"][0]), row(lp["bo"][0]),
        row(lp["ln2_g"][0]), row(lp["ln2_b"][0]), row(lp["b1"][0]), row(lp["b2"][0]),
        row(params["bp"][0]), row(params["bf"][0]),
        row(params["ln_g"][0]), row(params["ln_b"][0]),
        row(params["bpe"]),
    ]
    rows += [jnp.zeros((128,), jnp.float32)] * (ROW_POOL - len(rows))
    wpool = params["wpool"][:, 0]                                # (S,)
    for b in range(BT):                                          # block-diagonal pooling rows
        r = jnp.zeros((128,), jnp.float32).at[b * S:(b + 1) * S].set(wpool)
        rows.append(r)
    rows += [jnp.zeros((128,), jnp.float32)] * (BM_ROWS - len(rows))
    b_mat = jnp.stack(rows, axis=0)
    assert b_mat.shape == (BM_ROWS, 128)

    scalars = params["bpool"].reshape(1)                         # (1,) f32 -> SMEM
    return {"w_rows": w_rows, "w_cols": w_cols, "b_mat": b_mat, "scalars": scalars}


# ======================= main =======================

if __name__ == "__main__":
    key = jax.random.PRNGKey(0)
    ka, kb, kp = jax.random.split(key, 3)
    image_a = jax.random.normal(ka, (B, C_IN, H, W), jnp.float32)
    image_b = jax.random.normal(kb, (B, C_IN, H, W), jnp.float32)
    params = init_params(kp)
    packed = pack_params(params)

    fwd = jax.jit(clve_model_forward)
    emb_a, emb_b = fwd(image_a, image_b, packed)
    jax.block_until_ready((emb_a, emb_b))

    assert emb_a.shape == (B, OUT_CH) and emb_b.shape == (B, OUT_CH)
    assert emb_a.dtype == jnp.float32 and emb_b.dtype == jnp.float32
    assert bool(jnp.all(jnp.isfinite(emb_a))) and bool(jnp.all(jnp.isfinite(emb_b)))

    # tolerance accounts for bf16 MXU operands (f32 reference path)
    ref_a = clve_forward_ref(image_a, params)
    ref_b = clve_forward_ref(image_b, params)
    assert bool(jnp.allclose(emb_a, ref_a, atol=5e-2, rtol=5e-2))
    assert bool(jnp.allclose(emb_b, ref_b, atol=5e-2, rtol=5e-2))

    print("KERNEL_OK")
</pallas_src>

<mosaic_0001>
module attributes {stable_mosaic.version = 11 : i64} {
  func.func @clve_fused_kernel(%arg0: memref<64x64xf32, #tpu.memory_space<vmem>>, %arg1: memref<240x32xbf16, #tpu.memory_space<vmem>>, %arg2: memref<32x272xbf16, #tpu.memory_space<vmem>>, %arg3: memref<24x128xf32, #tpu.memory_space<vmem>>, %arg4: memref<1xf32, #tpu.memory_space<smem>>, %arg5: memref<4x16xf32, #tpu.memory_space<vmem>>) attributes {dimension_semantics = [], scalar_prefetch = 0 : i64, scratch_operands = 0 : i64, tpu.core_type = #tpu.core_type<tc>} {
    %c0 = arith.constant 0 : index
    %c0_0 = arith.constant 0 : index
    %0 = vector.load %arg0[%c0, %c0_0] : memref<64x64xf32, #tpu.memory_space<vmem>>, vector<64x64xf32>
    %c0_1 = arith.constant 0 : index
    %c0_2 = arith.constant 0 : index
    %1 = vector.load %arg1[%c0_1, %c0_2] : memref<240x32xbf16, #tpu.memory_space<vmem>>, vector<240x32xbf16>
    %c0_3 = arith.constant 0 : index
    %c0_4 = arith.constant 0 : index
    %2 = vector.load %arg2[%c0_3, %c0_4] : memref<32x272xbf16, #tpu.memory_space<vmem>>, vector<32x272xbf16>
    %c0_5 = arith.constant 0 : index
    %c0_6 = arith.constant 0 : index
    %3 = vector.load %arg3[%c0_5, %c0_6] : memref<24x128xf32, #tpu.memory_space<vmem>>, vector<24x128xf32>
    %4 = vector.extract_strided_slice %1 {offsets = [0, 0], sizes = [64, 32], strides = [1, 1]} : vector<240x32xbf16> to vector<64x32xbf16>
    %5 = vector.extract_strided_slice %3 {offsets = [12, 0], sizes = [1, 32], strides = [1, 1]} : vector<24x128xf32> to vector<1x32xf32>
    %6 = vector.shape_cast %5 : vector<1x32xf32> to vector<32xf32>
    %7 = arith.truncf %0 : vector<64x64xf32> to vector<64x64xbf16>
    %cst = arith.constant dense<0.000000e+00> : vector<64x32xf32>
    %8 = tpu.matmul %7, %4, %cst {dimension_numbers = #tpu.dot_dimension_numbers<[1], [0], [0], [1], [0, 0, 1, 1], [], []>} : vector<64x64xbf16>, vector<64x32xbf16>, vector<64x32xf32> -> vector<64x32xf32>
    %9 = vector.shape_cast %6 : vector<32xf32> to vector<1x32xf32>
    %10 = vector.broadcast %9 : vector<1x32xf32> to vector<64x32xf32>
    %11 = arith.addf %8, %10 : vector<64x32xf32>
    %12 = vector.extract_strided_slice %3 {offsets = [0, 0], sizes = [1, 32], strides = [1, 1]} : vector<24x128xf32> to vector<1x32xf32>
    %13 = vector.shape_cast %12 : vector<1x32xf32> to vector<32xf32>
    %14 = vector.extract_strided_slice %3 {offsets = [1, 0], sizes = [1, 32], strides = [1, 1]} : vector<24x128xf32> to vector<1x32xf32>
    %15 = vector.shape_cast %14 : vector<1x32xf32> to vector<32xf32>
    %cst_7 = arith.constant dense<0.000000e+00> : vector<64xf32>
    %16 = vector.multi_reduction <add>, %11, %cst_7 [1] : vector<64x32xf32> to vector<64xf32>
    %17 = vector.shape_cast %16 : vector<64xf32> to vector<64x1xf32>
    %cst_8 = arith.constant 3.200000e+01 : f32
    %18 = vector.broadcast %cst_8 : f32 to vector<64x1xf32>
    %19 = arith.divf %17, %18 : vector<64x1xf32>
    %20 = vector.broadcast %19 : vector<64x1xf32> to vector<64x32xf32>
    %21 = arith.subf %11, %20 : vector<64x32xf32>
    %22 = arith.mulf %21, %21 : vector<64x32xf32>
    %cst_9 = arith.constant dense<0.000000e+00> : vector<64xf32>
    %23 = vector.multi_reduction <add>, %22, %cst_9 [1] : vector<64x32xf32> to vector<64xf32>
    %24 = vector.shape_cast %23 : vector<64xf32> to vector<64x1xf32>
    %cst_10 = arith.constant 3.200000e+01 : f32
    %25 = vector.broadcast %cst_10 : f32 to vector<64x1xf32>
    %26 = arith.divf %24, %25 : vector<64x1xf32>
    %27 = vector.broadcast %19 : vector<64x1xf32> to vector<64x32xf32>
    %28 = arith.subf %11, %27 : vector<64x32xf32>
    %cst_11 = arith.constant 9.99999974E-6 : f32
    %29 = vector.broadcast %cst_11 : f32 to vector<64x1xf32>
    %30 = arith.addf %26, %29 : vector<64x1xf32>
    %31 = math.rsqrt %30 : vector<64x1xf32>
    %32 = vector.broadcast %31 : vector<64x1xf32> to vector<64x32xf32>
    %33 = arith.mulf %28, %32 : vector<64x32xf32>
    %34 = vector.shape_cast %13 : vector<32xf32> to vector<1x32xf32>
    %35 = vector.broadcast %34 : vector<1x32xf32> to vector<64x32xf32>
    %36 = arith.mulf %33, %35 : vector<64x32xf32>
    %37 = vector.shape_cast %15 : vector<32xf32> to vector<1x32xf32>
    %38 = vector.broadcast %37 : vector<1x32xf32> to vector<64x32xf32>
    %39 = arith.addf %36, %38 : vector<64x32xf32>
    %40 = vector.extract_strided_slice %2 {offsets = [0, 128], sizes = [32, 96], strides = [1, 1]} : vector<32x272xbf16> to vector<32x96xbf16>
    %41 = vector.extract_strided_slice %3 {offsets = [2, 0], sizes = [1, 96], strides = [1, 1]} : vector<24x128xf32> to vector<1x96xf32>
    %42 = vector.shape_cast %41 : vector<1x96xf32> to vector<96xf32>
    %43 = arith.truncf %39 : vector<64x32xf32> to vector<64x32xbf16>
    %cst_12 = arith.constant dense<0.000000e+00> : vector<64x96xf32>
    %44 = tpu.matmul %43, %40, %cst_12 {dimension_numbers = #tpu.dot_dimension_numbers<[1], [0], [0], [1], [0, 0, 1, 1], [], []>} : vector<64x32xbf16>, vector<32x96xbf16>, vector<64x96xf32> -> vector<64x96xf32>
    %45 = vector.shape_cast %42 : vector<96xf32> to vector<1x96xf32>
    %46 = vector.broadcast %45 : vector<1x96xf32> to vector<64x96xf32>
    %47 = arith.addf %44, %46 : vector<64x96xf32>
    %48 = vector.extract_strided_slice %47 {offsets = [0, 0], sizes = [64, 8], strides = [1, 1]} : vector<64x96xf32> to vector<64x8xf32>
    %49 = vector.shape_cast %48 : vector<64x8xf32> to vector<4x16x8xf32>
    %50 = vector.extract_strided_slice %47 {offsets = [0, 32], sizes = [64, 8], strides = [1, 1]} : vector<64x96xf32> to vector<64x8xf32>
    %51 = vector.shape_cast %50 : vector<64x8xf32> to vector<4x16x8xf32>
    %52 = vector.extract_strided_slice %47 {offsets = [0, 64], sizes = [64, 8], strides = [1, 1]} : vector<64x96xf32> to vector<64x8xf32>
    %53 = vector.shape_cast %52 : vector<64x8xf32> to vector<4x16x8xf32>
    %54 = arith.truncf %49 : vector<4x16x8xf32> to vector<4x16x8xbf16>
    %55 = arith.truncf %51 : vector<4x16x8xf32> to vector<4x16x8xbf16>
    "tpu.trace_start"() <{level = 10 : i32, message = "bsk,btk->bst"}> : () -> ()
    %cst_13 = arith.constant dense<0.000000e+00> : vector<4x16x16xf32>
    %56 = tpu.matmul %54, %55, %cst_13 {dimension_numbers = #tpu.dot_dimension_numbers<[2], [2], [1], [1], [0, 0, 0, 1, 1, 1], [0], [0]>} : vector<4x16x8xbf16>, vector<4x16x8xbf16>, vector<4x16x16xf32> -> vector<4x16x16xf32>
    "tpu.trace_stop"() : () -> ()
    %cst_14 = arith.constant 0.353553385 : f32
    %57 = vector.broadcast %cst_14 : f32 to vector<4x16x16xf32>
    %58 = arith.mulf %56, %57 : vector<4x16x16xf32>
    %cst_15 = arith.constant dense<0xFF800000> : vector<4x16xf32>
    %59 = vector.multi_reduction <maximumf>, %58, %cst_15 [2] : vector<4x16x16xf32> to vector<4x16xf32>
    %60 = vector.shape_cast %59 : vector<4x16xf32> to vector<4x16x1xf32>
    %61 = vector.broadcast %60 : vector<4x16x1xf32> to vector<4x16x16xf32>
    %62 = arith.subf %58, %61 : vector<4x16x16xf32>
    %63 = math.exp %62 : vector<4x16x16xf32>
    %cst_16 = arith.constant dense<0.000000e+00> : vector<4x16xf32>
    %64 = vector.multi_reduction <add>, %63, %cst_16 [2] : vector<4x16x16xf32> to vector<4x16xf32>
    %65 = vector.shape_cast %64 : vector<4x16xf32> to vector<4x16x1xf32>
    %66 = vector.broadcast %65 : vector<4x16x1xf32> to vector<4x16x16xf32>
    %67 = arith.divf %63, %66 : vector<4x16x16xf32>
    %68 = arith.truncf %67 : vector<4x16x16xf32> to vector<4x16x16xbf16>
    %69 = arith.truncf %53 : vector<4x16x8xf32> to vector<4x16x8xbf16>
    "tpu.trace_start"() <{level = 10 : i32, message = "bst,btk->bsk"}> : () -> ()
    %cst_17 = arith.constant dense<0.000000e+00> : vector<4x16x8xf32>
    %70 = tpu.matmul %68, %69, %cst_17 {dimension_numbers = #tpu.dot_dimension_numbers<[2], [1], [1], [2], [0, 0, 0, 1, 1, 2], [0], [0]>} : vector<4x16x16xbf16>, vector<4x16x8xbf16>, vector<4x16x8xf32> -> vector<4x16x8xf32>
    "tpu.trace_stop"() : () -> ()
    %71 = vector.extract_strided_slice %47 {offsets = [0, 8], sizes = [64, 8], strides = [1, 1]} : vector<64x96xf32> to vector<64x8xf32>
    %72 = vector.shape_cast %71 : vector<64x8xf32> to vector<4x16x8xf32>
    %73 = vector.extract_strided_slice %47 {offsets = [0, 40], sizes = [64, 8], strides = [1, 1]} : vector<64x96xf32> to vector<64x8xf32>
    %74 = vector.shape_cast %73 : vector<64x8xf32> to vector<4x16x8xf32>
    %75 = vector.extract_strided_slice %47 {offsets = [0, 72], sizes = [64, 8], strides = [1, 1]} : vector<64x96xf32> to vector<64x8xf32>
    %76 = vector.shape_cast %75 : vector<64x8xf32> to vector<4x16x8xf32>
    %77 = arith.truncf %72 : vector<4x16x8xf32> to vector<4x16x8xbf16>
    %78 = arith.truncf %74 : vector<4x16x8xf32> to vector<4x16x8xbf16>
    "tpu.trace_start"() <{level = 10 : i32, message = "bsk,btk->bst"}> : () -> ()
    %cst_18 = arith.constant dense<0.000000e+00> : vector<4x16x16xf32>
    %79 = tpu.matmul %77, %78, %cst_18 {dimension_numbers = #tpu.dot_dimension_numbers<[2], [2], [1], [1], [0, 0, 0, 1, 1, 1], [0], [0]>} : vector<4x16x8xbf16>, vector<4x16x8xbf16>, vector<4x16x16xf32> -> vector<4x16x16xf32>
    "tpu.trace_stop"() : () -> ()
    %cst_19 = arith.constant 0.353553385 : f32
    %80 = vector.broadcast %cst_19 : f32 to vector<4x16x16xf32>
    %81 = arith.mulf %79, %80 : vector<4x16x16xf32>
    %cst_20 = arith.constant dense<0xFF800000> : vector<4x16xf32>
    %82 = vector.multi_reduction <maximumf>, %81, %cst_20 [2] : vector<4x16x16xf32> to vector<4x16xf32>
    %83 = vector.shape_cast %82 : vector<4x16xf32> to vector<4x16x1xf32>
    %84 = vector.broadcast %83 : vector<4x16x1xf32> to vector<4x16x16xf32>
    %85 = arith.subf %81, %84 : vector<4x16x16xf32>
    %86 = math.exp %85 : vector<4x16x16xf32>
    %cst_21 = arith.constant dense<0.000000e+00> : vector<4x16xf32>
    %87 = vector.multi_reduction <add>, %86, %cst_21 [2] : vector<4x16x16xf32> to vector<4x16xf32>
    %88 = vector.shape_cast %87 : vector<4x16xf32> to vector<4x16x1xf32>
    %89 = vector.broadcast %88 : vector<4x16x1xf32> to vector<4x16x16xf32>
    %90 = arith.divf %86, %89 : vector<4x16x16xf32>
    %91 = arith.truncf %90 : vector<4x16x16xf32> to vector<4x16x16xbf16>
    %92 = arith.truncf %76 : vector<4x16x8xf32> to vector<4x16x8xbf16>
    "tpu.trace_start"() <{level = 10 : i32, message = "bst,btk->bsk"}> : () -> ()
    %cst_22 = arith.constant dense<0.000000e+00> : vector<4x16x8xf32>
    %93 = tpu.matmul %91, %92, %cst_22 {dimension_numbers = #tpu.dot_dimension_numbers<[2], [1], [1], [2], [0, 0, 0, 1, 1, 2], [0], [0]>} : vector<4x16x16xbf16>, vector<4x16x8xbf16>, vector<4x16x8xf32> -> vector<4x16x8xf32>
    "tpu.trace_stop"() : () -> ()
    %94 = vector.extract_strided_slice %47 {offsets = [0, 16], sizes = [64, 8], strides = [1, 1]} : vector<64x96xf32> to vector<64x8xf32>
    %95 = vector.shape_cast %94 : vector<64x8xf32> to vector<4x16x8xf32>
    %96 = vector.extract_strided_slice %47 {offsets = [0, 48], sizes = [64, 8], strides = [1, 1]} : vector<64x96xf32> to vector<64x8xf32>
    %97 = vector.shape_cast %96 : vector<64x8xf32> to vector<4x16x8xf32>
    %98 = vector.extract_strided_slice %47 {offsets = [0, 80], sizes = [64, 8], strides = [1, 1]} : vector<64x96xf32> to vector<64x8xf32>
    %99 = vector.shape_cast %98 : vector<64x8xf32> to vector<4x16x8xf32>
    %100 = arith.truncf %95 : vector<4x16x8xf32> to vector<4x16x8xbf16>
    %101 = arith.truncf %97 : vector<4x16x8xf32> to vector<4x16x8xbf16>
    "tpu.trace_start"() <{level = 10 : i32, message = "bsk,btk->bst"}> : () -> ()
    %cst_23 = arith.constant dense<0.000000e+00> : vector<4x16x16xf32>
    %102 = tpu.matmul %100, %101, %cst_23 {dimension_numbers = #tpu.dot_dimension_numbers<[2], [2], [1], [1], [0, 0, 0, 1, 1, 1], [0], [0]>} : vector<4x16x8xbf16>, vector<4x16x8xbf16>, vector<4x16x16xf32> -> vector<4x16x16xf32>
    "tpu.trace_stop"() : () -> ()
    %cst_24 = arith.constant 0.353553385 : f32
    %103 = vector.broadcast %cst_24 : f32 to vector<4x16x16xf32>
    %104 = arith.mulf %102, %103 : vector<4x16x16xf32>
    %cst_25 = arith.constant dense<0xFF800000> : vector<4x16xf32>
    %105 = vector.multi_reduction <maximumf>, %104, %cst_25 [2] : vector<4x16x16xf32> to vector<4x16xf32>
    %106 = vector.shape_cast %105 : vector<4x16xf32> to vector<4x16x1xf32>
    %107 = vector.broadcast %106 : vector<4x16x1xf32> to vector<4x16x16xf32>
    %108 = arith.subf %104, %107 : vector<4x16x16xf32>
    %109 = math.exp %108 : vector<4x16x16xf32>
    %cst_26 = arith.constant dense<0.000000e+00> : vector<4x16xf32>
    %110 = vector.multi_reduction <add>, %109, %cst_26 [2] : vector<4x16x16xf32> to vector<4x16xf32>
    %111 = vector.shape_cast %110 : vector<4x16xf32> to vector<4x16x1xf32>
    %112 = vector.broadcast %111 : vector<4x16x1xf32> to vector<4x16x16xf32>
    %113 = arith.divf %109, %112 : vector<4x16x16xf32>
    %114 = arith.truncf %113 : vector<4x16x16xf32> to vector<4x16x16xbf16>
    %115 = arith.truncf %99 : vector<4x16x8xf32> to vector<4x16x8xbf16>
    "tpu.trace_start"() <{level = 10 : i32, message = "bst,btk->bsk"}> : () -> ()
    %cst_27 = arith.constant dense<0.000000e+00> : vector<4x16x8xf32>
    %116 = tpu.matmul %114, %115, %cst_27 {dimension_numbers = #tpu.dot_dimension_numbers<[2], [1], [1], [2], [0, 0, 0, 1, 1, 2], [0], [0]>} : vector<4x16x16xbf16>, vector<4x16x8xbf16>, vector<4x16x8xf32> -> vector<4x16x8xf32>
    "tpu.trace_stop"() : () -> ()
    %117 = vector.extract_strided_slice %47 {offsets = [0, 24], sizes = [64, 8], strides = [1, 1]} : vector<64x96xf32> to vector<64x8xf32>
    %118 = vector.shape_cast %117 : vector<64x8xf32> to vector<4x16x8xf32>
    %119 = vector.extract_strided_slice %47 {offsets = [0, 56], sizes = [64, 8], strides = [1, 1]} : vector<64x96xf32> to vector<64x8xf32>
    %120 = vector.shape_cast %119 : vector<64x8xf32> to vector<4x16x8xf32>
    %121 = vector.extract_strided_slice %47 {offsets = [0, 88], sizes = [64, 8], strides = [1, 1]} : vector<64x96xf32> to vector<64x8xf32>
    %122 = vector.shape_cast %121 : vector<64x8xf32> to vector<4x16x8xf32>
    %123 = arith.truncf %118 : vector<4x16x8xf32> to vector<4x16x8xbf16>
    %124 = arith.truncf %120 : vector<4x16x8xf32> to vector<4x16x8xbf16>
    "tpu.trace_start"() <{level = 10 : i32, message = "bsk,btk->bst"}> : () -> ()
    %cst_28 = arith.constant dense<0.000000e+00> : vector<4x16x16xf32>
    %125 = tpu.matmul %123, %124, %cst_28 {dimension_numbers = #tpu.dot_dimension_numbers<[2], [2], [1], [1], [0, 0, 0, 1, 1, 1], [0], [0]>} : vector<4x16x8xbf16>, vector<4x16x8xbf16>, vector<4x16x16xf32> -> vector<4x16x16xf32>
    "tpu.trace_stop"() : () -> ()
    %cst_29 = arith.constant 0.353553385 : f32
    %126 = vector.broadcast %cst_29 : f32 to vector<4x16x16xf32>
    %127 = arith.mulf %125, %126 : vector<4x16x16xf32>
    %cst_30 = arith.constant dense<0xFF800000> : vector<4x16xf32>
    %128 = vector.multi_reduction <maximumf>, %127, %cst_30 [2] : vector<4x16x16xf32> to vector<4x16xf32>
    %129 = vector.shape_cast %128 : vector<4x16xf32> to vector<4x16x1xf32>
    %130 = vector.broadcast %129 : vector<4x16x1xf32> to vector<4x16x16xf32>
    %131 = arith.subf %127, %130 : vector<4x16x16xf32>
    %132 = math.exp %131 : vector<4x16x16xf32>
    %cst_31 = arith.constant dense<0.000000e+00> : vector<4x16xf32>
    %133 = vector.multi_reduction <add>, %132, %cst_31 [2] : vector<4x16x16xf32> to vector<4x16xf32>
    %134 = vector.shape_cast %133 : vector<4x16xf32> to vector<4x16x1xf32>
    %135 = vector.broadcast %134 : vector<4x16x1xf32> to vector<4x16x16xf32>
    %136 = arith.divf %132, %135 : vector<4x16x16xf32>
    %137 = arith.truncf %136 : vector<4x16x16xf32> to vector<4x16x16xbf16>
    %138 = arith.truncf %122 : vector<4x16x8xf32> to vector<4x16x8xbf16>
    "tpu.trace_start"() <{level = 10 : i32, message = "bst,btk->bsk"}> : () -> ()
    %cst_32 = arith.constant dense<0.000000e+00> : vector<4x16x8xf32>
    %139 = tpu.matmul %137, %138, %cst_32 {dimension_numbers = #tpu.dot_dimension_numbers<[2], [1], [1], [2], [0, 0, 0, 1, 1, 2], [0], [0]>} : vector<4x16x16xbf16>, vector<4x16x8xbf16>, vector<4x16x8xf32> -> vector<4x16x8xf32>
    "tpu.trace_stop"() : () -> ()
    %140 = tpu.concatenate %70, %93, %116, %139 in 2 : vector<4x16x8xf32>, vector<4x16x8xf32>, vector<4x16x8xf32>, vector<4x16x8xf32> -> vector<4x16x32xf32>
    %141 = vector.shape_cast %140 : vector<4x16x32xf32> to vector<64x32xf32>
    %142 = vector.extract_strided_slice %1 {offsets = [192, 0], sizes = [32, 32], strides = [1, 1]} : vector<240x32xbf16> to vector<32x32xbf16>
    %143 = vector.extract_strided_slice %3 {offsets = [3, 0], sizes = [1, 32], strides = [1, 1]} : vector<24x128xf32> to vector<1x32xf32>
    %144 = vector.shape_cast %143 : vector<1x32xf32> to vector<32xf32>
    %145 = arith.truncf %141 : vector<64x32xf32> to vector<64x32xbf16>
    %cst_33 = arith.constant dense<0.000000e+00> : vector<64x32xf32>
    %146 = tpu.matmul %145, %142, %cst_33 {dimension_numbers = #tpu.dot_dimension_numbers<[1], [0], [0], [1], [0, 0, 1, 1], [], []>} : vector<64x32xbf16>, vector<32x32xbf16>, vector<64x32xf32> -> vector<64x32xf32>
    %147 = arith.addf %11, %146 : vector<64x32xf32>
    %148 = vector.shape_cast %144 : vector<32xf32> to vector<1x32xf32>
    %149 = vector.broadcast %148 : vector<1x32xf32> to vector<64x32xf32>
    %150 = arith.addf %147, %149 : vector<64x32xf32>
    %151 = vector.extract_strided_slice %3 {offsets = [4, 0], sizes = [1, 32], strides = [1, 1]} : vector<24x128xf32> to vector<1x32xf32>
    %152 = vector.shape_cast %151 : vector<1x32xf32> to vector<32xf32>
    %153 = vector.extract_strided_slice %3 {offsets = [5, 0], sizes = [1, 32], strides = [1, 1]} : vector<24x128xf32> to vector<1x32xf32>
    %154 = vector.shape_cast %153 : vector<1x32xf32> to vector<32xf32>
    %cst_34 = arith.constant dense<0.000000e+00> : vector<64xf32>
    %155 = vector.multi_reduction <add>, %150, %cst_34 [1] : vector<64x32xf32> to vector<64xf32>
    %156 = vector.shape_cast %155 : vector<64xf32> to vector<64x1xf32>
    %cst_35 = arith.constant 3.200000e+01 : f32
    %157 = vector.broadcast %cst_35 : f32 to vector<64x1xf32>
    %158 = arith.divf %156, %157 : vector<64x1xf32>
    %159 = vector.broadcast %158 : vector<64x1xf32> to vector<64x32xf32>
    %160 = arith.subf %150, %159 : vector<64x32xf32>
    %161 = arith.mulf %160, %160 : vector<64x32xf32>
    %cst_36 = arith.constant dense<0.000000e+00> : vector<64xf32>
    %162 = vector.multi_reduction <add>, %161, %cst_36 [1] : vector<64x32xf32> to vector<64xf32>
    %163 = vector.shape_cast %162 : vector<64xf32> to vector<64x1xf32>
    %cst_37 = arith.constant 3.200000e+01 : f32
    %164 = vector.broadcast %cst_37 : f32 to vector<64x1xf32>
    %165 = arith.divf %163, %164 : vector<64x1xf32>
    %166 = vector.broadcast %158 : vector<64x1xf32> to vector<64x32xf32>
    %167 = arith.subf %150, %166 : vector<64x32xf32>
    %cst_38 = arith.constant 9.99999974E-6 : f32
    %168 = vector.broadcast %cst_38 : f32 to vector<64x1xf32>
    %169 = arith.addf %165, %168 : vector<64x1xf32>
    %170 = math.rsqrt %169 : vector<64x1xf32>
    %171 = vector.broadcast %170 : vector<64x1xf32> to vector<64x32xf32>
    %172 = arith.mulf %167, %171 : vector<64x32xf32>
    %173 = vector.shape_cast %152 : vector<32xf32> to vector<1x32xf32>
    %174 = vector.broadcast %173 : vector<1x32xf32> to vector<64x32xf32>
    %175 = arith.mulf %172, %174 : vector<64x32xf32>
    %176 = vector.shape_cast %154 : vector<32xf32> to vector<1x32xf32>
    %177 = vector.broadcast %176 : vector<1x32xf32> to vector<64x32xf32>
    %178 = arith.addf %175, %177 : vector<64x32xf32>
    %179 = vector.extract_strided_slice %2 {offsets = [0, 0], sizes = [32, 128], strides = [1, 1]} : vector<32x272xbf16> to vector<32x128xbf16>
    %180 = vector.extract_strided_slice %3 {offsets = [6, 0], sizes = [1, 128], strides = [1, 1]} : vector<24x128xf32> to vector<1x128xf32>
    %181 = vector.shape_cast %180 : vector<1x128xf32> to vector<128xf32>
    %182 = arith.truncf %178 : vector<64x32xf32> to vector<64x32xbf16>
    %cst_39 = arith.constant dense<0.000000e+00> : vector<64x128xf32>
    %183 = tpu.matmul %182, %179, %cst_39 {dimension_numbers = #tpu.dot_dimension_numbers<[1], [0], [0], [1], [0, 0, 1, 1], [], []>} : vector<64x32xbf16>, vector<32x128xbf16>, vector<64x128xf32> -> vector<64x128xf32>
    %184 = vector.shape_cast %181 : vector<128xf32> to vector<1x128xf32>
    %185 = vector.broadcast %184 : vector<1x128xf32> to vector<64x128xf32>
    %186 = arith.addf %183, %185 : vector<64x128xf32>
    %cst_40 = arith.constant 1.702000e+00 : f32
    %187 = vector.broadcast %cst_40 : f32 to vector<64x128xf32>
    %188 = arith.mulf %187, %186 : vector<64x128xf32>
    %189 = arith.negf %188 : vector<64x128xf32>
    %190 = math.exp %189 : vector<64x128xf32>
    %cst_41 = arith.constant 1.000000e+00 : f32
    %191 = vector.broadcast %cst_41 : f32 to vector<64x128xf32>
    %192 = arith.addf %191, %190 : vector<64x128xf32>
    %193 = arith.divf %191, %192 : vector<64x128xf32>
    %194 = arith.mulf %186, %193 : vector<64x128xf32>
    %195 = vector.extract_strided_slice %1 {offsets = [64, 0], sizes = [128, 32], strides = [1, 1]} : vector<240x32xbf16> to vector<128x32xbf16>
    %196 = vector.extract_strided_slice %3 {offsets = [7, 0], sizes = [1, 32], strides = [1, 1]} : vector<24x128xf32> to vector<1x32xf32>
    %197 = vector.shape_cast %196 : vector<1x32xf32> to vector<32xf32>
    %198 = arith.truncf %194 : vector<64x128xf32> to vector<64x128xbf16>
    %cst_42 = arith.constant dense<0.000000e+00> : vector<64x32xf32>
    %199 = tpu.matmul %198, %195, %cst_42 {dimension_numbers = #tpu.dot_dimension_numbers<[1], [0], [0], [1], [0, 0, 1, 1], [], []>} : vector<64x128xbf16>, vector<128x32xbf16>, vector<64x32xf32> -> vector<64x32xf32>
    %200 = arith.addf %150, %199 : vector<64x32xf32>
    %201 = vector.shape_cast %197 : vector<32xf32> to vector<1x32xf32>
    %202 = vector.broadcast %201 : vector<1x32xf32> to vector<64x32xf32>
    %203 = arith.addf %200, %202 : vector<64x32xf32>
    %204 = vector.extract_strided_slice %3 {offsets = [16, 0], sizes = [4, 64], strides = [1, 1]} : vector<24x128xf32> to vector<4x64xf32>
    %205 = arith.truncf %204 : vector<4x64xf32> to vector<4x64xbf16>
    %206 = arith.truncf %203 : vector<64x32xf32> to vector<64x32xbf16>
    %cst_43 = arith.constant dense<0.000000e+00> : vector<4x32xf32>
    %207 = tpu.matmul %205, %206, %cst_43 {dimension_numbers = #tpu.dot_dimension_numbers<[1], [0], [0], [1], [0, 0, 1, 1], [], []>} : vector<4x64xbf16>, vector<64x32xbf16>, vector<4x32xf32> -> vector<4x32xf32>
    %c0_44 = arith.constant 0 : index
    %208 = memref.load %arg4[%c0_44] : memref<1xf32, #tpu.memory_space<smem>>
    %209 = vector.broadcast %208 : f32 to vector<4x32xf32>
    %210 = arith.addf %207, %209 : vector<4x32xf32>
    %211 = vector.extract_strided_slice %2 {offsets = [0, 256], sizes = [32, 16], strides = [1, 1]} : vector<32x272xbf16> to vector<32x16xbf16>
    %212 = vector.extract_strided_slice %3 {offsets = [8, 0], sizes = [1, 16], strides = [1, 1]} : vector<24x128xf32> to vector<1x16xf32>
    %213 = vector.shape_cast %212 : vector<1x16xf32> to vector<16xf32>
    %214 = arith.truncf %210 : vector<4x32xf32> to vector<4x32xbf16>
    %cst_45 = arith.constant dense<0.000000e+00> : vector<4x16xf32>
    %215 = tpu.matmul %214, %211, %cst_45 {dimension_numbers = #tpu.dot_dimension_numbers<[1], [0], [0], [1], [0, 0, 1, 1], [], []>} : vector<4x32xbf16>, vector<32x16xbf16>, vector<4x16xf32> -> vector<4x16xf32>
    %216 = vector.shape_cast %213 : vector<16xf32> to vector<1x16xf32>
    %217 = vector.broadcast %216 : vector<1x16xf32> to vector<4x16xf32>
    %218 = arith.addf %215, %217 : vector<4x16xf32>
    %cst_46 = arith.constant 1.702000e+00 : f32
    %219 = vector.broadcast %cst_46 : f32 to vector<4x16xf32>
    %220 = arith.mulf %219, %218 : vector<4x16xf32>
    %221 = arith.negf %220 : vector<4x16xf32>
    %222 = math.exp %221 : vector<4x16xf32>
    %cst_47 = arith.constant 1.000000e+00 : f32
    %223 = vector.broadcast %cst_47 : f32 to vector<4x16xf32>
    %224 = arith.addf %223, %222 : vector<4x16xf32>
    %225 = arith.divf %223, %224 : vector<4x16xf32>
    %226 = arith.mulf %218, %225 : vector<4x16xf32>
    %227 = vector.extract_strided_slice %1 {offsets = [224, 0], sizes = [16, 16], strides = [1, 1]} : vector<240x32xbf16> to vector<16x16xbf16>
    %228 = vector.extract_strided_slice %3 {offsets = [9, 0], sizes = [1, 16], strides = [1, 1]} : vector<24x128xf32> to vector<1x16xf32>
    %229 = vector.shape_cast %228 : vector<1x16xf32> to vector<16xf32>
    %230 = arith.truncf %226 : vector<4x16xf32> to vector<4x16xbf16>
    %cst_48 = arith.constant dense<0.000000e+00> : vector<4x16xf32>
    %231 = tpu.matmul %230, %227, %cst_48 {dimension_numbers = #tpu.dot_dimension_numbers<[1], [0], [0], [1], [0, 0, 1, 1], [], []>} : vector<4x16xbf16>, vector<16x16xbf16>, vector<4x16xf32> -> vector<4x16xf32>
    %232 = vector.shape_cast %229 : vector<16xf32> to vector<1x16xf32>
    %233 = vector.broadcast %232 : vector<1x16xf32> to vector<4x16xf32>
    %234 = arith.addf %231, %233 : vector<4x16xf32>
    %235 = arith.addf %234, %218 : vector<4x16xf32>
    %236 = vector.extract_strided_slice %3 {offsets = [10, 0], sizes = [1, 16], strides = [1, 1]} : vector<24x128xf32> to vector<1x16xf32>
    %237 = vector.shape_cast %236 : vector<1x16xf32> to vector<16xf32>
    %238 = vector.extract_strided_slice %3 {offsets = [11, 0], sizes = [1, 16], strides = [1, 1]} : vector<24x128xf32> to vector<1x16xf32>
    %239 = vector.shape_cast %238 : vector<1x16xf32> to vector<16xf32>
    %cst_49 = arith.constant dense<0.000000e+00> : vector<4xf32>
    %240 = vector.multi_reduction <add>, %235, %cst_49 [1] : vector<4x16xf32> to vector<4xf32>
    %241 = vector.shape_cast %240 : vector<4xf32> to vector<4x1xf32>
    %cst_50 = arith.constant 1.600000e+01 : f32
    %242 = vector.broadcast %cst_50 : f32 to vector<4x1xf32>
    %243 = arith.divf %241, %242 : vector<4x1xf32>
    %244 = vector.broadcast %243 : vector<4x1xf32> to vector<4x16xf32>
    %245 = arith.subf %235, %244 : vector<4x16xf32>
    %246 = arith.mulf %245, %245 : vector<4x16xf32>
    %cst_51 = arith.constant dense<0.000000e+00> : vector<4xf32>
    %247 = vector.multi_reduction <add>, %246, %cst_51 [1] : vector<4x16xf32> to vector<4xf32>
    %248 = vector.shape_cast %247 : vector<4xf32> to vector<4x1xf32>
    %cst_52 = arith.constant 1.600000e+01 : f32
    %249 = vector.broadcast %cst_52 : f32 to vector<4x1xf32>
    %250 = arith.divf %248, %249 : vector<4x1xf32>
    %251 = vector.broadcast %243 : vector<4x1xf32> to vector<4x16xf32>
    %252 = arith.subf %235, %251 : vector<4x16xf32>
    %cst_53 = arith.constant 9.99999974E-6 : f32
    %253 = vector.broadcast %cst_53 : f32 to vector<4x1xf32>
    %254 = arith.addf %250, %253 : vector<4x1xf32>
    %255 = math.rsqrt %254 : vector<4x1xf32>
    %256 = vector.broadcast %255 : vector<4x1xf32> to vector<4x16xf32>
    %257 = arith.mulf %252, %256 : vector<4x16xf32>
    %258 = vector.shape_cast %237 : vector<16xf32> to vector<1x16xf32>
    %259 = vector.broadcast %258 : vector<1x16xf32> to vector<4x16xf32>
    %260 = arith.mulf %257, %259 : vector<4x16xf32>
    %261 = vector.shape_cast %239 : vector<16xf32> to vector<1x16xf32>
    %262 = vector.broadcast %261 : vector<1x16xf32> to vector<4x16xf32>
    %263 = arith.addf %260, %262 : vector<4x16xf32>
    %c0_54 = arith.constant 0 : index
    %c0_55 = arith.constant 0 : index
    %264 = vector.load %arg5[%c0_54, %c0_55] : memref<4x16xf32, #tpu.memory_space<vmem>>, vector<4x16xf32>
    tpu.vector_store %arg5[%c0_54, %c0_55], %263 {strides = array<i32>} : memref<4x16xf32, #tpu.memory_space<vmem>>, vector<4x16xf32>,
    return
  }
}

</mosaic_0001>

<llo_original>
// kernel: clve_model_forward.1
$region0: #{clve_model_forward.1}
  #allocation0 [shape = 'u32[]', space=smem, size = 0x4, offset = 0x4, fixed_abs, tag = 'smem constant byte address 0x4 - core index']
  #allocation1 [shape = 'u32[72,128]{1,0:T(1,128)}', space=vmem, size = 0x9000, scoped, tag = 'internal scratch']
  #allocation2 [shape = 'f32[1]{0:T(128)S(6)}', space=smem, size = 0x200, scoped, tag = 'scoped memory for clve_model_forward.1']
  %s0 = inlined_call_operand.vmem [shape: f32[64,64], index: 0, kind: input, shape index: {}]
  %s1 = inlined_call_operand.vmem [shape: bf16[240,32], index: 1, kind: input, shape index: {}]
  %s2 = inlined_call_operand.vmem [shape: bf16[32,272], index: 2, kind: input, shape index: {}]
  %s3 = inlined_call_operand.vmem [shape: f32[24,128], index: 3, kind: input, shape index: {}]
  %s4 = inlined_call_operand.<no memory space> [shape: f32[1], index: 4, kind: input, shape index: {}]
  %s5 = inlined_call_operand.vmem [shape: f32[4,16], index: 5, kind: output, shape index: {}]
  %s6 = sld [smem:[#allocation0]]
  $region30: #{clve_model_forward.1} parent=0
    _
  %s8 = ssub.s32 1, %s6
  %s9 = scalar_select 0, %s8, %s6
  %10 = sst [smem:[#allocation2]] %s4
  // Predicated region
  $region2: #{clve_model_forward.1} parent=0 // pred_check
    _
  $region3: #{clve_model_forward.1} parent=0 // pred_check_branch
    %12 = sbr.rel (0) target = $region5
  $region4: #{clve_model_forward.1} parent=0 // pred_region
    _
  $region5: #{clve_model_forward.1} parent=0 // pred_fallthru
    _
  // Predicated region
  $region6: #{clve_model_forward.1} parent=0 // pred_check
    _
  $region7: #{clve_model_forward.1} parent=0 // pred_check_branch
    %14 = sbr.rel (0) target = $region9
  $region8: #{clve_model_forward.1} parent=0 // pred_region
    _
  $region9: #{clve_model_forward.1} parent=0 // pred_fallthru
    _
  // Predicated region
  $region10: #{clve_model_forward.1} parent=0 // pred_check
    _
  $region11: #{clve_model_forward.1} parent=0 // pred_check_branch
    %16 = sbr.rel (0) target = $region13
  $region12: #{clve_model_forward.1} parent=0 // pred_region
    _
  $region13: #{clve_model_forward.1} parent=0 // pred_fallthru
    _
  // Predicated region
  $region14: #{clve_model_forward.1} parent=0 // pred_check
    _
  $region15: #{clve_model_forward.1} parent=0 // pred_check_branch
    %18 = sbr.rel (0) target = $region17
  $region16: #{clve_model_forward.1} parent=0 // pred_region
    _
  $region17: #{clve_model_forward.1} parent=0 // pred_fallthru
    _
  // Predicated region
  $region18: #{clve_model_forward.1} parent=0 // pred_check
    _
  $region19: #{clve_model_forward.1} parent=0 // pred_check_branch
    %20 = sbr.rel (0) target = $region21
  $region20: #{clve_model_forward.1} parent=0 // pred_region
    _
  $region21: #{clve_model_forward.1} parent=0 // pred_fallthru
    _
  %v22 = vld [vmem:[%s0] sm:$0xff]
  %v23 = vld [vmem:[%s0 + $0x8] sm:$0xff]
  %v24 = vld [vmem:[%s0 + $0x10] sm:$0xff]
  %v25 = vld [vmem:[%s0 + $0x18] sm:$0xff]
  %v26 = vld [vmem:[%s0 + $0x20] sm:$0xff]
  %v27 = vld [vmem:[%s0 + $0x28] sm:$0xff]
  %v28 = vld [vmem:[%s0 + $0x30] sm:$0xff]
  %v29 = vld [vmem:[%s0 + $0x38] sm:$0xff]
  %v30 = vld [vmem:[%s1] sm:$0xf]
  %v31 = vld [vmem:[%s1 + $0x4] sm:$0xf]
  %v32 = vld [vmem:[%s1 + $0x8] sm:$0xf]
  %v33 = vld [vmem:[%s1 + $0xc] sm:$0xf]
  %v34 = vld [vmem:[%s1 + $0x10] sm:$0xf]
  %v35 = vld [vmem:[%s1 + $0x14] sm:$0xf]
  %v36 = vld [vmem:[%s1 + $0x18] sm:$0xf]
  %v37 = vld [vmem:[%s1 + $0x1c] sm:$0xf]
  %v38 = vld [vmem:[%s1 + $0x20] sm:$0xf]
  %v39 = vld [vmem:[%s1 + $0x24] sm:$0xf]
  %v40 = vld [vmem:[%s1 + $0x28] sm:$0xf]
  %v41 = vld [vmem:[%s1 + $0x2c] sm:$0xf]
  %v42 = vld [vmem:[%s1 + $0x30] sm:$0xf]
  %v43 = vld [vmem:[%s1 + $0x34] sm:$0xf]
  %v44 = vld [vmem:[%s1 + $0x38] sm:$0xf]
  %v45 = vld [vmem:[%s1 + $0x3c] sm:$0xf]
  %v46 = vld [vmem:[%s1 + $0x40] sm:$0xf]
  %v47 = vld [vmem:[%s1 + $0x44] sm:$0xf]
  %v48 = vld [vmem:[%s1 + $0x48] sm:$0xf]
  %v49 = vld [vmem:[%s1 + $0x4c] sm:$0xf]
  %v50 = vld [vmem:[%s1 + $0x50] sm:$0xf]
  %v51 = vld [vmem:[%s1 + $0x54] sm:$0xf]
  %v52 = vld [vmem:[%s1 + $0x58] sm:$0xf]
  %v53 = vld [vmem:[%s1 + $0x5c] sm:$0xf]
  %v54 = vld [vmem:[%s1 + $0x60] sm:$0xf]
  %v55 = vld [vmem:[%s1 + $0x64] sm:$0xf]
  %v56 = vld [vmem:[%s1 + $0x68] sm:$0xf]
  %v57 = vld [vmem:[%s1 + $0x6c] sm:$0xf]
  %v58 = vld [vmem:[%s1 + $0x70] sm:$0xf]
  %v59 = vld [vmem:[%s1 + $0x74] sm:$0xf]
  %v60 = vld [vmem:[%s2] sm:$0xff]
  %v61 = vld [vmem:[%s2 + $0x8] sm:$0xf]
  %v62 = vld [vmem:[%s2 + $0xc] sm:$0xff]
  %v63 = vld [vmem:[%s2 + $0x14] sm:$0xf]
  %v64 = vld [vmem:[%s2 + $0x18] sm:$0xff]
  %v65 = vld [vmem:[%s2 + $0x20] sm:$0xf]
  %v66 = vld [vmem:[%s2 + $0x24] sm:$0xff]
  %v67 = vld [vmem:[%s2 + $0x2c] sm:$0xf]
  %v68 = vld [vmem:[%s3] sm:$0xff]
  %v69 = vld [vmem:[%s3 + $0x8] sm:$0xff]
  %v70 = vld [vmem:[%s3 + $0x10] sm:$0xff]
  %v71 = vpack.c.bf16 %v23, %v22
  %v72 = vpack.c.bf16 %v25, %v24
  %v73 = vpack.c.bf16 %v27, %v26
  %v74 = vpack.c.bf16 %v29, %v28
  %v75 = vperm.slane %v69, 4
  %v84 = vunpack.c.l.b16 %v30
  %v85 = vunpack.c.l.b16 %v31
  %v86 = vunpack.c.l.b16 %v32
  %v87 = vunpack.c.l.b16 %v33
  %v88 = vunpack.c.l.b16 %v34
  %v89 = vunpack.c.l.b16 %v35
  %v90 = vunpack.c.l.b16 %v36
  %v91 = vunpack.c.l.b16 %v37
  %v92 = vpack.c.b16 %v85, %v84
  %v93 = vpack.c.b16 %v87, %v86
  %v94 = vpack.c.b16 %v89, %v88
  %v95 = vpack.c.b16 %v91, %v90
  %vm100 = vcmask 523264
  %v102 = vsel %vm100, %v71, 0
  %v105 = vsel %vm100, %v72, 0
  %v108 = vsel %vm100, %v73, 0
  %v111 = vsel %vm100, %v74, 0
  %113 = vmatpush.bf16.msra.mxu0 0
  %114 = vmatpush.bf16.msra.mxu0 0
  %115 = vmatpush.bf16.msra.mxu0 0
  %116 = vmatpush.bf16.msra.mxu0 0
  %117 = vmatpush.bf16.msra.mxu0 %v95
  %118 = vmatpush.bf16.msra.mxu0 %v94
  %119 = vmatpush.bf16.msra.mxu0 %v93
  %120 = vmatpush.bf16.msra.mxu0 %v92
  %121 = vmatmul.bf16.gmra.mxu0 %v102
  %v122 = vpop.f32.mrf.mxu0
  %v123 = vadd.f32 %v75, %v122
  %v124 = vpop.f32.mrf.mxu0
  %v125 = vadd.f32 %v75, %v124
  %126 = vmatmul.bf16.gmra.mxu0 %v105
  %v127 = vpop.f32.mrf.mxu0
  %v128 = vadd.f32 %v75, %v127
  %v129 = vpop.f32.mrf.mxu0
  %v130 = vadd.f32 %v75, %v129
  %131 = vmatmul.bf16.gmra.mxu0 %v108
  %v132 = vpop.f32.mrf.mxu0
  %v133 = vadd.f32 %v75, %v132
  %v134 = vpop.f32.mrf.mxu0
  %v135 = vadd.f32 %v75, %v134
  %136 = vmatmul.bf16.gmra.mxu0 %v111
  %v137 = vpop.f32.mrf.mxu0
  %v138 = vadd.f32 %v75, %v137
  %v139 = vpop.f32.mrf.mxu0
  %v140 = vadd.f32 %v75, %v139
  %141 = vdwg.mxu0
  %vm142 = vcmask 261120
  %v143 = vsel %vm142, %v123, 0.0
  %144 = vadd.xlane.f32.xlu0 %v143
  %v145 = vpop.xlane.xlu0 %144
  %v146 = vsel %vm142, %v125, 0.0
  %147 = vadd.xlane.f32.xlu0 %v146
  %v148 = vpop.xlane.xlu0 %147
  %v149 = vsel %vm142, %v128, 0.0
  %150 = vadd.xlane.f32.xlu0 %v149
  %v151 = vpop.xlane.xlu0 %150
  %v152 = vsel %vm142, %v130, 0.0
  %153 = vadd.xlane.f32.xlu0 %v152
  %v154 = vpop.xlane.xlu0 %153
  %v155 = vsel %vm142, %v133, 0.0
  %156 = vadd.xlane.f32.xlu0 %v155
  %v157 = vpop.xlane.xlu0 %156
  %v158 = vsel %vm142, %v135, 0.0
  %159 = vadd.xlane.f32.xlu0 %v158
  %v160 = vpop.xlane.xlu0 %159
  %v161 = vsel %vm142, %v138, 0.0
  %162 = vadd.xlane.f32.xlu0 %v161
  %v163 = vpop.xlane.xlu0 %162
  %v164 = vsel %vm142, %v140, 0.0
  %165 = vadd.xlane.f32.xlu0 %v164
  %v166 = vpop.xlane.xlu0 %165
  %v167 = vrcp.pop 32.0
  %v168 = vmul.f32 32.0, %v167
  %v169 = vsub.f32 1.0, %v168
  %v170 = vmul.f32 %v167, %v169
  %v171 = vadd.f32 %v167, %v170
  %vm172 = vweird.f32 %v167
  %v173 = vsel %vm172, %v167, %v171
  %v174 = vmul.f32 %v145, %v173
  %v175 = vmul.f32 %v148, %v173
  %v176 = vmul.f32 %v151, %v173
  %v177 = vmul.f32 %v154, %v173
  %v178 = vmul.f32 %v157, %v173
  %v179 = vmul.f32 %v160, %v173
  %v180 = vmul.f32 %v163, %v173
  %v181 = vmul.f32 %v166, %v173
  %v182 = vsub.f32 %v123, %v174
  %v183 = vsub.f32 %v125, %v175
  %v184 = vsub.f32 %v128, %v176
  %v185 = vsub.f32 %v130, %v177
  %v186 = vsub.f32 %v133, %v178
  %v187 = vsub.f32 %v135, %v179
  %v188 = vsub.f32 %v138, %v180
  %v189 = vsub.f32 %v140, %v181
  %v190 = vmul.f32 %v182, %v182
  %v191 = vmul.f32 %v183, %v183
  %v192 = vmul.f32 %v184, %v184
  %v193 = vmul.f32 %v185, %v185
  %v194 = vmul.f32 %v186, %v186
  %v195 = vmul.f32 %v187, %v187
  %v196 = vmul.f32 %v188, %v188
  %v197 = vmul.f32 %v189, %v189
  %v198 = vsel %vm142, %v190, 0.0
  %199 = vadd.xlane.f32.xlu0 %v198
  %v200 = vpop.xlane.xlu0 %199
  %v201 = vsel %vm142, %v191, 0.0
  %202 = vadd.xlane.f32.xlu0 %v201
  %v203 = vpop.xlane.xlu0 %202
  %v204 = vsel %vm142, %v192, 0.0
  %205 = vadd.xlane.f32.xlu0 %v204
  %v206 = vpop.xlane.xlu0 %205
  %v207 = vsel %vm142, %v193, 0.0
  %208 = vadd.xlane.f32.xlu0 %v207
  %v209 = vpop.xlane.xlu0 %208
  %v210 = vsel %vm142, %v194, 0.0
  %211 = vadd.xlane.f32.xlu0 %v210
  %v212 = vpop.xlane.xlu0 %211
  %v213 = vsel %vm142, %v195, 0.0
  %214 = vadd.xlane.f32.xlu0 %v213
  %v215 = vpop.xlane.xlu0 %214
  %v216 = vsel %vm142, %v196, 0.0
  %217 = vadd.xlane.f32.xlu0 %v216
  %v218 = vpop.xlane.xlu0 %217
  %v219 = vsel %vm142, %v197, 0.0
  %220 = vadd.xlane.f32.xlu0 %v219
  %v221 = vpop.xlane.xlu0 %220
  %v222 = vmul.f32 %v200, %v173
  %v223 = vmul.f32 %v203, %v173
  %v224 = vmul.f32 %v206, %v173
  %v225 = vmul.f32 %v209, %v173
  %v226 = vmul.f32 %v212, %v173
  %v227 = vmul.f32 %v215, %v173
  %v228 = vmul.f32 %v218, %v173
  %v229 = vmul.f32 %v221, %v173
  %v230 = vadd.f32 %v222, 1e-05
  %v231 = vadd.f32 %v223, 1e-05
  %v232 = vadd.f32 %v224, 1e-05
  %v233 = vadd.f32 %v225, 1e-05
  %v234 = vadd.f32 %v226, 1e-05
  %v235 = vadd.f32 %v227, 1e-05
  %v236 = vadd.f32 %v228, 1e-05
  %v237 = vadd.f32 %v229, 1e-05
  %v238 = vrsqrt.pop %v230
  %v239 = vmul.f32 %v238, %v230
  %v240 = vmul.f32 %v239, %v238
  %v241 = vmul.f32 0.5, %v240
  %v242 = vsub.f32 1.5, %v241
  %v243 = vmul.f32 %v238, %v242
  %vm244 = vweird.f32 %v230
  %vm245 = vweird.f32 %v238
  %vm246 = vmor %vm244, %vm245
  %v247 = vsel %vm246, %v238, %v243
  %v248 = vrsqrt.pop %v231
  %v249 = vmul.f32 %v248, %v231
  %v250 = vmul.f32 %v249, %v248
  %v251 = vmul.f32 0.5, %v250
  %v252 = vsub.f32 1.5, %v251
  %v253 = vmul.f32 %v248, %v252
  %vm254 = vweird.f32 %v231
  %vm255 = vweird.f32 %v248
  %vm256 = vmor %vm254, %vm255
  %v257 = vsel %vm256, %v248, %v253
  %v258 = vrsqrt.pop %v232
  %v259 = vmul.f32 %v258, %v232
  %v260 = vmul.f32 %v259, %v258
  %v261 = vmul.f32 0.5, %v260
  %v262 = vsub.f32 1.5, %v261
  %v263 = vmul.f32 %v258, %v262
  %vm264 = vweird.f32 %v232
  %vm265 = vweird.f32 %v258
  %vm266 = vmor %vm264, %vm265
  %v267 = vsel %vm266, %v258, %v263
  %v268 = vrsqrt.pop %v233
  %v269 = vmul.f32 %v268, %v233
  %v270 = vmul.f32 %v269, %v268
  %v271 = vmul.f32 0.5, %v270
  %v272 = vsub.f32 1.5, %v271
  %v273 = vmul.f32 %v268, %v272
  %vm274 = vweird.f32 %v233
  %vm275 = vweird.f32 %v268
  %vm276 = vmor %vm274, %vm275
  %v277 = vsel %vm276, %v268, %v273
  %v278 = vrsqrt.pop %v234
  %v279 = vmul.f32 %v278, %v234
  %v280 = vmul.f32 %v279, %v278
  %v281 = vmul.f32 0.5, %v280
  %v282 = vsub.f32 1.5, %v281
  %v283 = vmul.f32 %v278, %v282
  %vm284 = vweird.f32 %v234
  %vm285 = vweird.f32 %v278
  %vm286 = vmor %vm284, %vm285
  %v287 = vsel %vm286, %v278, %v283
  %v288 = vrsqrt.pop %v235
  %v289 = vmul.f32 %v288, %v235
  %v290 = vmul.f32 %v289, %v288
  %v291 = vmul.f32 0.5, %v290
  %v292 = vsub.f32 1.5, %v291
  %v293 = vmul.f32 %v288, %v292
  %vm294 = vweird.f32 %v235
  %vm295 = vweird.f32 %v288
  %vm296 = vmor %vm294, %vm295
  %v297 = vsel %vm296, %v288, %v293
  %v298 = vrsqrt.pop %v236
  %v299 = vmul.f32 %v298, %v236
  %v300 = vmul.f32 %v299, %v298
  %v301 = vmul.f32 0.5, %v300
  %v302 = vsub.f32 1.5, %v301
  %v303 = vmul.f32 %v298, %v302
  %vm304 = vweird.f32 %v236
  %vm305 = vweird.f32 %v298
  %vm306 = vmor %vm304, %vm305
  %v307 = vsel %vm306, %v298, %v303
  %v308 = vrsqrt.pop %v237
  %v309 = vmul.f32 %v308, %v237
  %v310 = vmul.f32 %v309, %v308
  %v311 = vmul.f32 0.5, %v310
  %v312 = vsub.f32 1.5, %v311
  %v313 = vmul.f32 %v308, %v312
  %vm314 = vweird.f32 %v237
  %vm315 = vweird.f32 %v308
  %vm316 = vmor %vm314, %vm315
  %v317 = vsel %vm316, %v308, %v313
  %v318 = vmul.f32 %v182, %v247
  %v319 = vmul.f32 %v183, %v257
  %v320 = vmul.f32 %v184, %v267
  %v321 = vmul.f32 %v185, %v277
  %v322 = vmul.f32 %v186, %v287
  %v323 = vmul.f32 %v187, %v297
  %v324 = vmul.f32 %v188, %v307
  %v325 = vmul.f32 %v189, %v317
  %v326 = vperm.slane %v68, 0
  %v327 = vmul.f32 %v318, %v326
  %v328 = vmul.f32 %v319, %v326
  %v329 = vmul.f32 %v320, %v326
  %v330 = vmul.f32 %v321, %v326
  %v331 = vmul.f32 %v322, %v326
  %v332 = vmul.f32 %v323, %v326
  %v333 = vmul.f32 %v324, %v326
  %v334 = vmul.f32 %v325, %v326
  %v335 = vperm.slane %v68, 1
  %v336 = vadd.f32 %v327, %v335
  %v337 = vadd.f32 %v328, %v335
  %v338 = vadd.f32 %v329, %v335
  %v339 = vadd.f32 %v330, %v335
  %v340 = vadd.f32 %v331, %v335
  %v341 = vadd.f32 %v332, %v335
  %v342 = vadd.f32 %v333, %v335
  %v343 = vadd.f32 %v334, %v335
  %v344 = vpack.c.bf16 %v337, %v336
  %v345 = vpack.c.bf16 %v339, %v338
  %v346 = vpack.c.bf16 %v341, %v340
  %v347 = vpack.c.bf16 %v343, %v342
  %v348 = vperm.slane %v68, 2
  %v353 = vunpack.c.h.b16 %v60
  %v354 = vunpack.c.h.b16 %v62
  %v355 = vunpack.c.h.b16 %v64
  %v356 = vunpack.c.h.b16 %v66
  %v357 = vpack.c.b16 %v354, %v353
  %v358 = vpack.c.b16 %v356, %v355
  %v362 = vsel %vm142, %v344, 0
  %v365 = vsel %vm142, %v345, 0
  %v368 = vsel %vm142, %v346, 0
  %v371 = vsel %vm142, %v347, 0
  %373 = vmatpush.bf16.msra.mxu0 0
  %374 = vmatpush.bf16.msra.mxu0 0
  %375 = vmatpush.bf16.msra.mxu0 0
  %376 = vmatpush.bf16.msra.mxu0 0
  %377 = vmatpush.bf16.msra.mxu0 0
  %378 = vmatpush.bf16.msra.mxu0 0
  %379 = vmatpush.bf16.msra.mxu0 %v358
  %380 = vmatpush.bf16.msra.mxu0 %v357
  %381 = vmatmul.bf16.gmra.mxu0 %v362
  %v382 = vpop.f32.mrf.mxu0
  %v383 = vadd.f32 %v348, %v382
  %v384 = vpop.f32.mrf.mxu0
  %v385 = vadd.f32 %v348, %v384
  %386 = vmatmul.bf16.gmra.mxu0 %v365
  %v387 = vpop.f32.mrf.mxu0
  %v388 = vadd.f32 %v348, %v387
  %v389 = vpop.f32.mrf.mxu0
  %v390 = vadd.f32 %v348, %v389
  %391 = vmatmul.bf16.gmra.mxu0 %v368
  %v392 = vpop.f32.mrf.mxu0
  %v393 = vadd.f32 %v348, %v392
  %v394 = vpop.f32.mrf.mxu0
  %v395 = vadd.f32 %v348, %v394
  %396 = vmatmul.bf16.gmra.mxu0 %v371
  %v397 = vpop.f32.mrf.mxu0
  %v398 = vadd.f32 %v348, %v397
  %v399 = vpop.f32.mrf.mxu0
  %v400 = vadd.f32 %v348, %v399
  %401 = vdwg.mxu0
  %v402 = vpack.c.bf16 %v383, %v383
  %v403 = vpack.c.bf16 %v385, %v385
  %v404 = vpack.c.bf16 %v388, %v388
  %v405 = vpack.c.bf16 %v390, %v390
  %v406 = vpack.c.bf16 %v393, %v393
  %v407 = vpack.c.bf16 %v395, %v395
  %v408 = vpack.c.bf16 %v398, %v398
  %v409 = vpack.c.bf16 %v400, %v400
  %v412 = vunpack.c.l.b16 %v402
  %v413 = vunpack.c.l.b16 %v403
  %v414 = vpack.c.b16 %v413, %v412
  %415 = vrot.lane.b32.xlu0 %v414, 96
  %v416 = vpop.permute.xlu0 %415
  %vm417 = vcmask 64512
  %v419 = vsel %vm417, %v414, 0
  %v422 = vsel %vm417, %v416, 0
  %424 = vmatpush.bf16.xpose.msra.mxu0 0
  %425 = vmatpush.bf16.xpose.msra.mxu0 0
  %426 = vmatpush.bf16.xpose.msra.mxu0 0
  %427 = vmatpush.bf16.xpose.msra.mxu0 0
  %428 = vmatpush.bf16.xpose.msra.mxu0 0
  %429 = vmatpush.bf16.xpose.msra.mxu0 0
  %430 = vmatpush.bf16.xpose.msra.mxu0 0
  %431 = vmatpush.bf16.xpose.msra.mxu0 %v422
  %432 = vmatmul.bf16.gmra.mxu0 %v419
  %v433 = vpop.f32.mrf.mxu0
  %v434 = vadd.f32 0.0, %v433
  %v435 = vpop.f32.mrf.mxu0
  %v436 = vadd.f32 0.0, %v435
  %437 = vdwg.mxu0
  %v440 = vunpack.c.l.b16 %v404
  %v441 = vunpack.c.l.b16 %v405
  %v442 = vpack.c.b16 %v441, %v440
  %443 = vrot.lane.b32.xlu0 %v442, 96
  %v444 = vpop.permute.xlu0 %443
  %v446 = vsel %vm417, %v442, 0
  %v449 = vsel %vm417, %v444, 0
  %451 = vmatpush.bf16.xpose.msra.mxu0 0
  %452 = vmatpush.bf16.xpose.msra.mxu0 0
  %453 = vmatpush.bf16.xpose.msra.mxu0 0
  %454 = vmatpush.bf16.xpose.msra.mxu0 0
  %455 = vmatpush.bf16.xpose.msra.mxu0 0
  %456 = vmatpush.bf16.xpose.msra.mxu0 0
  %457 = vmatpush.bf16.xpose.msra.mxu0 0
  %458 = vmatpush.bf16.xpose.msra.mxu0 %v449
  %459 = vmatmul.bf16.gmra.mxu0 %v446
  %v460 = vpop.f32.mrf.mxu0
  %v461 = vadd.f32 0.0, %v460
  %v462 = vpop.f32.mrf.mxu0
  %v463 = vadd.f32 0.0, %v462
  %464 = vdwg.mxu0
  %v467 = vunpack.c.l.b16 %v406
  %v468 = vunpack.c.l.b16 %v407
  %v469 = vpack.c.b16 %v468, %v467
  %470 = vrot.lane.b32.xlu0 %v469, 96
  %v471 = vpop.permute.xlu0 %470
  %v473 = vsel %vm417, %v469, 0
  %v476 = vsel %vm417, %v471, 0
  %478 = vmatpush.bf16.xpose.msra.mxu0 0
  %479 = vmatpush.bf16.xpose.msra.mxu0 0
  %480 = vmatpush.bf16.xpose.msra.mxu0 0
  %481 = vmatpush.bf16.xpose.msra.mxu0 0
  %482 = vmatpush.bf16.xpose.msra.mxu0 0
  %483 = vmatpush.bf16.xpose.msra.mxu0 0
  %484 = vmatpush.bf16.xpose.msra.mxu0 0
  %485 = vmatpush.bf16.xpose.msra.mxu0 %v476
  %486 = vmatmul.bf16.gmra.mxu0 %v473
  %v487 = vpop.f32.mrf.mxu0
  %v488 = vadd.f32 0.0, %v487
  %v489 = vpop.f32.mrf.mxu0
  %v490 = vadd.f32 0.0, %v489
  %491 = vdwg.mxu0
  %v494 = vunpack.c.l.b16 %v408
  %v495 = vunpack.c.l.b16 %v409
  %v496 = vpack.c.b16 %v495, %v494
  %497 = vrot.lane.b32.xlu0 %v496, 96
  %v498 = vpop.permute.xlu0 %497
  %v500 = vsel %vm417, %v496, 0
  %v503 = vsel %vm417, %v498, 0
  %505 = vmatpush.bf16.xpose.msra.mxu0 0
  %506 = vmatpush.bf16.xpose.msra.mxu0 0
  %507 = vmatpush.bf16.xpose.msra.mxu0 0
  %508 = vmatpush.bf16.xpose.msra.mxu0 0
  %509 = vmatpush.bf16.xpose.msra.mxu0 0
  %510 = vmatpush.bf16.xpose.msra.mxu0 0
  %511 = vmatpush.bf16.xpose.msra.mxu0 0
  %512 = vmatpush.bf16.xpose.msra.mxu0 %v503
  %513 = vmatmul.bf16.gmra.mxu0 %v500
  %v514 = vpop.f32.mrf.mxu0
  %v515 = vadd.f32 0.0, %v514
  %v516 = vpop.f32.mrf.mxu0
  %v517 = vadd.f32 0.0, %v516
  %518 = vdwg.mxu0
  %v519 = vmul.f32 %v434, 0.35355338
  %v520 = vmul.f32 %v436, 0.35355338
  %v521 = vmul.f32 %v461, 0.35355338
  %v522 = vmul.f32 %v463, 0.35355338
  %v523 = vmul.f32 %v488, 0.35355338
  %v524 = vmul.f32 %v490, 0.35355338
  %v525 = vmul.f32 %v515, 0.35355338
  %v526 = vmul.f32 %v517, 0.35355338
  %vm527 = vcmask 130048
  %v528 = vsel %vm527, %v519, -inf
  %529 = vmax.xlane.f32.xlu0 %v528
  %v530 = vpop.xlane.xlu0 %529
  %v531 = vsel %vm527, %v520, -inf
  %532 = vmax.xlane.f32.xlu0 %v531
  %v533 = vpop.xlane.xlu0 %532
  %v534 = vsel %vm527, %v521, -inf
  %535 = vmax.xlane.f32.xlu0 %v534
  %v536 = vpop.xlane.xlu0 %535
  %v537 = vsel %vm527, %v522, -inf
  %538 = vmax.xlane.f32.xlu0 %v537
  %v539 = vpop.xlane.xlu0 %538
  %v540 = vsel %vm527, %v523, -inf
  %541 = vmax.xlane.f32.xlu0 %v540
  %v542 = vpop.xlane.xlu0 %541
  %v543 = vsel %vm527, %v524, -inf
  %544 = vmax.xlane.f32.xlu0 %v543
  %v545 = vpop.xlane.xlu0 %544
  %v546 = vsel %vm527, %v525, -inf
  %547 = vmax.xlane.f32.xlu0 %v546
  %v548 = vpop.xlane.xlu0 %547
  %v549 = vsel %vm527, %v526, -inf
  %550 = vmax.xlane.f32.xlu0 %v549
  %v551 = vpop.xlane.xlu0 %550
  %v552 = vsub.f32 %v519, %v530
  %v553 = vsub.f32 %v520, %v533
  %v554 = vsub.f32 %v521, %v536
  %v555 = vsub.f32 %v522, %v539
  %v556 = vsub.f32 %v523, %v542
  %v557 = vsub.f32 %v524, %v545
  %v558 = vsub.f32 %v525, %v548
  %v559 = vsub.f32 %v526, %v551
  %v560 = vmul.f32 %v552, 1.442695
  %v561 = vpow.pop %v560
  %v562 = vmul.f32 %v553, 1.442695
  %v563 = vpow.pop %v562
  %v564 = vmul.f32 %v554, 1.442695
  %v565 = vpow.pop %v564
  %v566 = vmul.f32 %v555, 1.442695
  %v567 = vpow.pop %v566
  %v568 = vmul.f32 %v556, 1.442695
  %v569 = vpow.pop %v568
  %v570 = vmul.f32 %v557, 1.442695
  %v571 = vpow.pop %v570
  %v572 = vmul.f32 %v558, 1.442695
  %v573 = vpow.pop %v572
  %v574 = vmul.f32 %v559, 1.442695
  %v575 = vpow.pop %v574
  %v576 = vsel %vm527, %v561, 0.0
  %577 = vadd.xlane.f32.xlu0 %v576
  %v578 = vpop.xlane.xlu0 %577
  %v579 = vsel %vm527, %v563, 0.0
  %580 = vadd.xlane.f32.xlu0 %v579
  %v581 = vpop.xlane.xlu0 %580
  %v582 = vsel %vm527, %v565, 0.0
  %583 = vadd.xlane.f32.xlu0 %v582
  %v584 = vpop.xlane.xlu0 %583
  %v585 = vsel %vm527, %v567, 0.0
  %586 = vadd.xlane.f32.xlu0 %v585
  %v587 = vpop.xlane.xlu0 %586
  %v588 = vsel %vm527, %v569, 0.0
  %589 = vadd.xlane.f32.xlu0 %v588
  %v590 = vpop.xlane.xlu0 %589
  %v591 = vsel %vm527, %v571, 0.0
  %592 = vadd.xlane.f32.xlu0 %v591
  %v593 = vpop.xlane.xlu0 %592
  %v594 = vsel %vm527, %v573, 0.0
  %595 = vadd.xlane.f32.xlu0 %v594
  %v596 = vpop.xlane.xlu0 %595
  %v597 = vsel %vm527, %v575, 0.0
  %598 = vadd.xlane.f32.xlu0 %v597
  %v599 = vpop.xlane.xlu0 %598
  %v600 = vrcp.pop %v578
  %v601 = vmul.f32 %v578, %v600
  %v602 = vsub.f32 1.0, %v601
  %v603 = vmul.f32 %v600, %v602
  %v604 = vadd.f32 %v600, %v603
  %vm605 = vweird.f32 %v578
  %vm606 = vweird.f32 %v600
  %vm607 = vmor %vm605, %vm606
  %v608 = vsel %vm607, %v600, %v604
  %v609 = vand.u32 2147483647, %v578
  %vm610 = vcmp.eq.f32.partialorder %v609, 8.507059e+37
  %v611 = vand.u32 %v578, 2147483648
  %v612 = vor.u32 1.1754944e-38, %v611
  %v613 = vsel %vm610, %v612, %v608
  %v614 = vmul.f32 %v561, %v613
  %v615 = vrcp.pop %v581
  %v616 = vmul.f32 %v581, %v615
  %v617 = vsub.f32 1.0, %v616
  %v618 = vmul.f32 %v615, %v617
  %v619 = vadd.f32 %v615, %v618
  %vm620 = vweird.f32 %v581
  %vm621 = vweird.f32 %v615
  %vm622 = vmor %vm620, %vm621
  %v623 = vsel %vm622, %v615, %v619
  %v624 = vand.u32 2147483647, %v581
  %vm625 = vcmp.eq.f32.partialorder %v624, 8.507059e+37
  %v626 = vand.u32 %v581, 2147483648
  %v627 = vor.u32 1.1754944e-38, %v626
  %v628 = vsel %vm625, %v627, %v623
  %v629 = vmul.f32 %v563, %v628
  %v630 = vrcp.pop %v584
  %v631 = vmul.f32 %v584, %v630
  %v632 = vsub.f32 1.0, %v631
  %v633 = vmul.f32 %v630, %v632
  %v634 = vadd.f32 %v630, %v633
  %vm635 = vweird.f32 %v584
  %vm636 = vweird.f32 %v630
  %vm637 = vmor %vm635, %vm636
  %v638 = vsel %vm637, %v630, %v634
  %v639 = vand.u32 2147483647, %v584
  %vm640 = vcmp.eq.f32.partialorder %v639, 8.507059e+37
  %v641 = vand.u32 %v584, 2147483648
  %v642 = vor.u32 1.1754944e-38, %v641
  %v643 = vsel %vm640, %v642, %v638
  %v644 = vmul.f32 %v565, %v643
  %v645 = vrcp.pop %v587
  %v646 = vmul.f32 %v587, %v645
  %v647 = vsub.f32 1.0, %v646
  %v648 = vmul.f32 %v645, %v647
  %v649 = vadd.f32 %v645, %v648
  %vm650 = vweird.f32 %v587
  %vm651 = vweird.f32 %v645
  %vm652 = vmor %vm650, %vm651
  %v653 = vsel %vm652, %v645, %v649
  %v654 = vand.u32 2147483647, %v587
  %vm655 = vcmp.eq.f32.partialorder %v654, 8.507059e+37
  %v656 = vand.u32 %v587, 2147483648
  %v657 = vor.u32 1.1754944e-38, %v656
  %v658 = vsel %vm655, %v657, %v653
  %v659 = vmul.f32 %v567, %v658
  %v660 = vrcp.pop %v590
  %v661 = vmul.f32 %v590, %v660
  %v662 = vsub.f32 1.0, %v661
  %v663 = vmul.f32 %v660, %v662
  %v664 = vadd.f32 %v660, %v663
  %vm665 = vweird.f32 %v590
  %vm666 = vweird.f32 %v660
  %vm667 = vmor %vm665, %vm666
  %v668 = vsel %vm667, %v660, %v664
  %v669 = vand.u32 2147483647, %v590
  %vm670 = vcmp.eq.f32.partialorder %v669, 8.507059e+37
  %v671 = vand.u32 %v590, 2147483648
  %v672 = vor.u32 1.1754944e-38, %v671
  %v673 = vsel %vm670, %v672, %v668
  %v674 = vmul.f32 %v569, %v673
  %v675 = vrcp.pop %v593
  %v676 = vmul.f32 %v593, %v675
  %v677 = vsub.f32 1.0, %v676
  %v678 = vmul.f32 %v675, %v677
  %v679 = vadd.f32 %v675, %v678
  %vm680 = vweird.f32 %v593
  %vm681 = vweird.f32 %v675
  %vm682 = vmor %vm680, %vm681
  %v683 = vsel %vm682, %v675, %v679
  %v684 = vand.u32 2147483647, %v593
  %vm685 = vcmp.eq.f32.partialorder %v684, 8.507059e+37
  %v686 = vand.u32 %v593, 2147483648
  %v687 = vor.u32 1.1754944e-38, %v686
  %v688 = vsel %vm685, %v687, %v683
  %v689 = vmul.f32 %v571, %v688
  %v690 = vrcp.pop %v596
  %v691 = vmul.f32 %v596, %v690
  %v692 = vsub.f32 1.0, %v691
  %v693 = vmul.f32 %v690, %v692
  %v694 = vadd.f32 %v690, %v693
  %vm695 = vweird.f32 %v596
  %vm696 = vweird.f32 %v690
  %vm697 = vmor %vm695, %vm696
  %v698 = vsel %vm697, %v690, %v694
  %v699 = vand.u32 2147483647, %v596
  %vm700 = vcmp.eq.f32.partialorder %v699, 8.507059e+37
  %v701 = vand.u32 %v596, 2147483648
  %v702 = vor.u32 1.1754944e-38, %v701
  %v703 = vsel %vm700, %v702, %v698
  %v704 = vmul.f32 %v573, %v703
  %v705 = vrcp.pop %v599
  %v706 = vmul.f32 %v599, %v705
  %v707 = vsub.f32 1.0, %v706
  %v708 = vmul.f32 %v705, %v707
  %v709 = vadd.f32 %v705, %v708
  %vm710 = vweird.f32 %v599
  %vm711 = vweird.f32 %v705
  %vm712 = vmor %vm710, %vm711
  %v713 = vsel %vm712, %v705, %v709
  %v714 = vand.u32 2147483647, %v599
  %vm715 = vcmp.eq.f32.partialorder %v714, 8.507059e+37
  %v716 = vand.u32 %v599, 2147483648
  %v717 = vor.u32 1.1754944e-38, %v716
  %v718 = vsel %vm715, %v717, %v713
  %v719 = vmul.f32 %v575, %v718
  %v720 = vpack.c.bf16 %v614, %v614
  %v721 = vpack.c.bf16 %v629, %v629
  %v722 = vpack.c.bf16 %v644, %v644
  %v723 = vpack.c.bf16 %v659, %v659
  %v724 = vpack.c.bf16 %v674, %v674
  %v725 = vpack.c.bf16 %v689, %v689
  %v726 = vpack.c.bf16 %v704, %v704
  %v727 = vpack.c.bf16 %v719, %v719
  %v730 = vunpack.c.l.b16 %v720
  %v731 = vunpack.c.l.b16 %v721
  %v732 = vpack.c.b16 %v731, %v730
  %733 = vrot.lane.b32.xlu0 %v414, 64
  %v734 = vpop.permute.xlu0 %733
  %v737 = vsel %vm527, %v732, 0
  %739 = vmatpush.bf16.msra.mxu0 0
  %740 = vmatpush.bf16.msra.mxu0 0
  %741 = vmatpush.bf16.msra.mxu0 0
  %742 = vmatpush.bf16.msra.mxu0 0
  %743 = vmatpush.bf16.msra.mxu0 0
  %744 = vmatpush.bf16.msra.mxu0 0
  %745 = vmatpush.bf16.msra.mxu0 0
  %746 = vmatpush.bf16.msra.mxu0 %v734
  %747 = vmatmul.bf16.gmra.mxu0 %v737
  %v748 = vpop.f32.mrf.mxu0
  %v749 = vadd.f32 0.0, %v748
  %v750 = vpop.f32.mrf.mxu0
  %v751 = vadd.f32 0.0, %v750
  %752 = vdwg.mxu0
  %v755 = vunpack.c.l.b16 %v722
  %v756 = vunpack.c.l.b16 %v723
  %v757 = vpack.c.b16 %v756, %v755
  %758 = vrot.lane.b32.xlu0 %v442, 64
  %v759 = vpop.permute.xlu0 %758
  %v762 = vsel %vm527, %v757, 0
  %764 = vmatpush.bf16.msra.mxu0 0
  %765 = vmatpush.bf16.msra.mxu0 0
  %766 = vmatpush.bf16.msra.mxu0 0
  %767 = vmatpush.bf16.msra.mxu0 0
  %768 = vmatpush.bf16.msra.mxu0 0
  %769 = vmatpush.bf16.msra.mxu0 0
  %770 = vmatpush.bf16.msra.mxu0 0
  %771 = vmatpush.bf16.msra.mxu0 %v759
  %772 = vmatmul.bf16.gmra.mxu0 %v762
  %v773 = vpop.f32.mrf.mxu0
  %v774 = vadd.f32 0.0, %v773
  %v775 = vpop.f32.mrf.mxu0
  %v776 = vadd.f32 0.0, %v775
  %777 = vdwg.mxu0
  %v780 = vunpack.c.l.b16 %v724
  %v781 = vunpack.c.l.b16 %v725
  %v782 = vpack.c.b16 %v781, %v780
  %783 = vrot.lane.b32.xlu0 %v469, 64
  %v784 = vpop.permute.xlu0 %783
  %v787 = vsel %vm527, %v782, 0
  %789 = vmatpush.bf16.msra.mxu0 0
  %790 = vmatpush.bf16.msra.mxu0 0
  %791 = vmatpush.bf16.msra.mxu0 0
  %792 = vmatpush.bf16.msra.mxu0 0
  %793 = vmatpush.bf16.msra.mxu0 0
  %794 = vmatpush.bf16.msra.mxu0 0
  %795 = vmatpush.bf16.msra.mxu0 0
  %796 = vmatpush.bf16.msra.mxu0 %v784
  %797 = vmatmul.bf16.gmra.mxu0 %v787
  %v798 = vpop.f32.mrf.mxu0
  %v799 = vadd.f32 0.0, %v798
  %v800 = vpop.f32.mrf.mxu0
  %v801 = vadd.f32 0.0, %v800
  %802 = vdwg.mxu0
  %v805 = vunpack.c.l.b16 %v726
  %v806 = vunpack.c.l.b16 %v727
  %v807 = vpack.c.b16 %v806, %v805
  %808 = vrot.lane.b32.xlu0 %v496, 64
  %v809 = vpop.permute.xlu0 %808
  %v812 = vsel %vm527, %v807, 0
  %814 = vmatpush.bf16.msra.mxu0 0
  %815 = vmatpush.bf16.msra.mxu0 0
  %816 = vmatpush.bf16.msra.mxu0 0
  %817 = vmatpush.bf16.msra.mxu0 0
  %818 = vmatpush.bf16.msra.mxu0 0
  %819 = vmatpush.bf16.msra.mxu0 0
  %820 = vmatpush.bf16.msra.mxu0 0
  %821 = vmatpush.bf16.msra.mxu0 %v809
  %822 = vmatmul.bf16.gmra.mxu0 %v812
  %v823 = vpop.f32.mrf.mxu0
  %v824 = vadd.f32 0.0, %v823
  %v825 = vpop.f32.mrf.mxu0
  %v826 = vadd.f32 0.0, %v825
  %827 = vdwg.mxu0
  %828 = vrot.lane.b32.xlu0 %v414, 120
  %v829 = vpop.permute.xlu0 %828
  %830 = vrot.lane.b32.xlu0 %v414, 88
  %v831 = vpop.permute.xlu0 %830
  %v833 = vsel %vm417, %v829, 0
  %v836 = vsel %vm417, %v831, 0
  %838 = vmatpush.bf16.xpose.msra.mxu0 0
  %839 = vmatpush.bf16.xpose.msra.mxu0 0
  %840 = vmatpush.bf16.xpose.msra.mxu0 0
  %841 = vmatpush.bf16.xpose.msra.mxu0 0
  %842 = vmatpush.bf16.xpose.msra.mxu0 0
  %843 = vmatpush.bf16.xpose.msra.mxu0 0
  %844 = vmatpush.bf16.xpose.msra.mxu0 0
  %845 = vmatpush.bf16.xpose.msra.mxu0 %v836
  %846 = vmatmul.bf16.gmra.mxu0 %v833
  %v847 = vpop.f32.mrf.mxu0
  %v848 = vadd.f32 0.0, %v847
  %v849 = vpop.f32.mrf.mxu0
  %v850 = vadd.f32 0.0, %v849
  %851 = vdwg.mxu0
  %852 = vrot.lane.b32.xlu0 %v442, 120
  %v853 = vpop.permute.xlu0 %852
  %854 = vrot.lane.b32.xlu0 %v442, 88
  %v855 = vpop.permute.xlu0 %854
  %v857 = vsel %vm417, %v853, 0
  %v860 = vsel %vm417, %v855, 0
  %862 = vmatpush.bf16.xpose.msra.mxu0 0
  %863 = vmatpush.bf16.xpose.msra.mxu0 0
  %864 = vmatpush.bf16.xpose.msra.mxu0 0
  %865 = vmatpush.bf16.xpose.msra.mxu0 0
  %866 = vmatpush.bf16.xpose.msra.mxu0 0
  %867 = vmatpush.bf16.xpose.msra.mxu0 0
  %868 = vmatpush.bf16.xpose.msra.mxu0 0
  %869 = vmatpush.bf16.xpose.msra.mxu0 %v860
  %870 = vmatmul.bf16.gmra.mxu0 %v857
  %v871 = vpop.f32.mrf.mxu0
  %v872 = vadd.f32 0.0, %v871
  %v873 = vpop.f32.mrf.mxu0
  %v874 = vadd.f32 0.0, %v873
  %875 = vdwg.mxu0
  %876 = vrot.lane.b32.xlu0 %v469, 120
  %v877 = vpop.permute.xlu0 %876
  %878 = vrot.lane.b32.xlu0 %v469, 88
  %v879 = vpop.permute.xlu0 %878
  %v881 = vsel %vm417, %v877, 0
  %v884 = vsel %vm417, %v879, 0
  %886 = vmatpush.bf16.xpose.msra.mxu0 0
  %887 = vmatpush.bf16.xpose.msra.mxu0 0
  %888 = vmatpush.bf16.xpose.msra.mxu0 0
  %889 = vmatpush.bf16.xpose.msra.mxu0 0
  %890 = vmatpush.bf16.xpose.msra.mxu0 0
  %891 = vmatpush.bf16.xpose.msra.mxu0 0
  %892 = vmatpush.bf16.xpose.msra.mxu0 0
  %893 = vmatpush.bf16.xpose.msra.mxu0 %v884
  %894 = vmatmul.bf16.gmra.mxu0 %v881
  %v895 = vpop.f32.mrf.mxu0
  %v896 = vadd.f32 0.0, %v895
  %v897 = vpop.f32.mrf.mxu0
  %v898 = vadd.f32 0.0, %v897
  %899 = vdwg.mxu0
  %900 = vrot.lane.b32.xlu0 %v496, 120
  %v901 = vpop.permute.xlu0 %900
  %902 = vrot.lane.b32.xlu0 %v496, 88
  %v903 = vpop.permute.xlu0 %902
  %v905 = vsel %vm417, %v901, 0
  %v908 = vsel %vm417, %v903, 0
  %910 = vmatpush.bf16.xpose.msra.mxu0 0
  %911 = vmatpush.bf16.xpose.msra.mxu0 0
  %912 = vmatpush.bf16.xpose.msra.mxu0 0
  %913 = vmatpush.bf16.xpose.msra.mxu0 0
  %914 = vmatpush.bf16.xpose.msra.mxu0 0
  %915 = vmatpush.bf16.xpose.msra.mxu0 0
  %916 = vmatpush.bf16.xpose.msra.mxu0 0
  %917 = vmatpush.bf16.xpose.msra.mxu0 %v908
  %918 = vmatmul.bf16.gmra.mxu0 %v905
  %v919 = vpop.f32.mrf.mxu0
  %v920 = vadd.f32 0.0, %v919
  %v921 = vpop.f32.mrf.mxu0
  %v922 = vadd.f32 0.0, %v921
  %923 = vdwg.mxu0
  %v924 = vmul.f32 %v848, 0.35355338
  %v925 = vmul.f32 %v850, 0.35355338
  %v926 = vmul.f32 %v872, 0.35355338
  %v927 = vmul.f32 %v874, 0.35355338
  %v928 = vmul.f32 %v896, 0.35355338
  %v929 = vmul.f32 %v898, 0.35355338
  %v930 = vmul.f32 %v920, 0.35355338
  %v931 = vmul.f32 %v922, 0.35355338
  %v932 = vsel %vm527, %v924, -inf
  %933 = vmax.xlane.f32.xlu0 %v932
  %v934 = vpop.xlane.xlu0 %933
  %v935 = vsel %vm527, %v925, -inf
  %936 = vmax.xlane.f32.xlu0 %v935
  %v937 = vpop.xlane.xlu0 %936
  %v938 = vsel %vm527, %v926, -inf
  %939 = vmax.xlane.f32.xlu0 %v938
  %v940 = vpop.xlane.xlu0 %939
  %v941 = vsel %vm527, %v927, -inf
  %942 = vmax.xlane.f32.xlu0 %v941
  %v943 = vpop.xlane.xlu0 %942
  %v944 = vsel %vm527, %v928, -inf
  %945 = vmax.xlane.f32.xlu0 %v944
  %v946 = vpop.xlane.xlu0 %945
  %v947 = vsel %vm527, %v929, -inf
  %948 = vmax.xlane.f32.xlu0 %v947
  %v949 = vpop.xlane.xlu0 %948
  %v950 = vsel %vm527, %v930, -inf
  %951 = vmax.xlane.f32.xlu0 %v950
  %v952 = vpop.xlane.xlu0 %951
  %v953 = vsel %vm527, %v931, -inf
  %954 = vmax.xlane.f32.xlu0 %v953
  %v955 = vpop.xlane.xlu0 %954
  %v956 = vsub.f32 %v924, %v934
  %v957 = vsub.f32 %v925, %v937
  %v958 = vsub.f32 %v926, %v940
  %v959 = vsub.f32 %v927, %v943
  %v960 = vsub.f32 %v928, %v946
  %v961 = vsub.f32 %v929, %v949
  %v962 = vsub.f32 %v930, %v952
  %v963 = vsub.f32 %v931, %v955
  %v964 = vmul.f32 %v956, 1.442695
  %v965 = vpow.pop %v964
  %v966 = vmul.f32 %v957, 1.442695
  %v967 = vpow.pop %v966
  %v968 = vmul.f32 %v958, 1.442695
  %v969 = vpow.pop %v968
  %v970 = vmul.f32 %v959, 1.442695
  %v971 = vpow.pop %v970
  %v972 = vmul.f32 %v960, 1.442695
  %v973 = vpow.pop %v972
  %v974 = vmul.f32 %v961, 1.442695
  %v975 = vpow.pop %v974
  %v976 = vmul.f32 %v962, 1.442695
  %v977 = vpow.pop %v976
  %v978 = vmul.f32 %v963, 1.442695
  %v979 = vpow.pop %v978
  %v980 = vsel %vm527, %v965, 0.0
  %981 = vadd.xlane.f32.xlu0 %v980
  %v982 = vpop.xlane.xlu0 %981
  %v983 = vsel %vm527, %v967, 0.0
  %984 = vadd.xlane.f32.xlu0 %v983
  %v985 = vpop.xlane.xlu0 %984
  %v986 = vsel %vm527, %v969, 0.0
  %987 = vadd.xlane.f32.xlu0 %v986
  %v988 = vpop.xlane.xlu0 %987
  %v989 = vsel %vm527, %v971, 0.0
  %990 = vadd.xlane.f32.xlu0 %v989
  %v991 = vpop.xlane.xlu0 %990
  %v992 = vsel %vm527, %v973, 0.0
  %993 = vadd.xlane.f32.xlu0 %v992
  %v994 = vpop.xlane.xlu0 %993
  %v995 = vsel %vm527, %v975, 0.0
  %996 = vadd.xlane.f32.xlu0 %v995
  %v997 = vpop.xlane.xlu0 %996
  %v998 = vsel %vm527, %v977, 0.0
  %999 = vadd.xlane.f32.xlu0 %v998
  %v1000 = vpop.xlane.xlu0 %999
  %v1001 = vsel %vm527, %v979, 0.0
  %1002 = vadd.xlane.f32.xlu0 %v1001
  %v1003 = vpop.xlane.xlu0 %1002
  %v1004 = vrcp.pop %v982
  %v1005 = vmul.f32 %v982, %v1004
  %v1006 = vsub.f32 1.0, %v1005
  %v1007 = vmul.f32 %v1004, %v1006
  %v1008 = vadd.f32 %v1004, %v1007
  %vm1009 = vweird.f32 %v982
  %vm1010 = vweird.f32 %v1004
  %vm1011 = vmor %vm1009, %vm1010
  %v1012 = vsel %vm1011, %v1004, %v1008
  %v1013 = vand.u32 2147483647, %v982
  %vm1014 = vcmp.eq.f32.partialorder %v1013, 8.507059e+37
  %v1015 = vand.u32 %v982, 2147483648
  %v1016 = vor.u32 1.1754944e-38, %v1015
  %v1017 = vsel %vm1014, %v1016, %v1012
  %v1018 = vmul.f32 %v965, %v1017
  %v1019 = vrcp.pop %v985
  %v1020 = vmul.f32 %v985, %v1019
  %v1021 = vsub.f32 1.0, %v1020
  %v1022 = vmul.f32 %v1019, %v1021
  %v1023 = vadd.f32 %v1019, %v1022
  %vm1024 = vweird.f32 %v985
  %vm1025 = vweird.f32 %v1019
  %vm1026 = vmor %vm1024, %vm1025
  %v1027 = vsel %vm1026, %v1019, %v1023
  %v1028 = vand.u32 2147483647, %v985
  %vm1029 = vcmp.eq.f32.partialorder %v1028, 8.507059e+37
  %v1030 = vand.u32 %v985, 2147483648
  %v1031 = vor.u32 1.1754944e-38, %v1030
  %v1032 = vsel %vm1029, %v1031, %v1027
  %v1033 = vmul.f32 %v967, %v1032
  %v1034 = vrcp.pop %v988
  %v1035 = vmul.f32 %v988, %v1034
  %v1036 = vsub.f32 1.0, %v1035
  %v1037 = vmul.f32 %v1034, %v1036
  %v1038 = vadd.f32 %v1034, %v1037
  %vm1039 = vweird.f32 %v988
  %vm1040 = vweird.f32 %v1034
  %vm1041 = vmor %vm1039, %vm1040
  %v1042 = vsel %vm1041, %v1034, %v1038
  %v1043 = vand.u32 2147483647, %v988
  %vm1044 = vcmp.eq.f32.partialorder %v1043, 8.507059e+37
  %v1045 = vand.u32 %v988, 2147483648
  %v1046 = vor.u32 1.1754944e-38, %v1045
  %v1047 = vsel %vm1044, %v1046, %v1042
  %v1048 = vmul.f32 %v969, %v1047
  %v1049 = vrcp.pop %v991
  %v1050 = vmul.f32 %v991, %v1049
  %v1051 = vsub.f32 1.0, %v1050
  %v1052 = vmul.f32 %v1049, %v1051
  %v1053 = vadd.f32 %v1049, %v1052
  %vm1054 = vweird.f32 %v991
  %vm1055 = vweird.f32 %v1049
  %vm1056 = vmor %vm1054, %vm1055
  %v1057 = vsel %vm1056, %v1049, %v1053
  %v1058 = vand.u32 2147483647, %v991
  %vm1059 = vcmp.eq.f32.partialorder %v1058, 8.507059e+37
  %v1060 = vand.u32 %v991, 2147483648
  %v1061 = vor.u32 1.1754944e-38, %v1060
  %v1062 = vsel %vm1059, %v1061, %v1057
  %v1063 = vmul.f32 %v971, %v1062
  %v1064 = vrcp.pop %v994
  %v1065 = vmul.f32 %v994, %v1064
  %v1066 = vsub.f32 1.0, %v1065
  %v1067 = vmul.f32 %v1064, %v1066
  %v1068 = vadd.f32 %v1064, %v1067
  %vm1069 = vweird.f32 %v994
  %vm1070 = vweird.f32 %v1064
  %vm1071 = vmor %vm1069, %vm1070
  %v1072 = vsel %vm1071, %v1064, %v1068
  %v1073 = vand.u32 2147483647, %v994
  %vm1074 = vcmp.eq.f32.partialorder %v1073, 8.507059e+37
  %v1075 = vand.u32 %v994, 2147483648
  %v1076 = vor.u32 1.1754944e-38, %v1075
  %v1077 = vsel %vm1074, %v1076, %v1072
  %v1078 = vmul.f32 %v973, %v1077
  %v1079 = vrcp.pop %v997
  %v1080 = vmul.f32 %v997, %v1079
  %v1081 = vsub.f32 1.0, %v1080
  %v1082 = vmul.f32 %v1079, %v1081
  %v1083 = vadd.f32 %v1079, %v1082
  %vm1084 = vweird.f32 %v997
  %vm1085 = vweird.f32 %v1079
  %vm1086 = vmor %vm1084, %vm1085
  %v1087 = vsel %vm1086, %v1079, %v1083
  %v1088 = vand.u32 2147483647, %v997
  %vm1089 = vcmp.eq.f32.partialorder %v1088, 8.507059e+37
  %v1090 = vand.u32 %v997, 2147483648
  %v1091 = vor.u32 1.1754944e-38, %v1090
  %v1092 = vsel %vm1089, %v1091, %v1087
  %v1093 = vmul.f32 %v975, %v1092
  %v1094 = vrcp.pop %v1000
  %v1095 = vmul.f32 %v1000, %v1094
  %v1096 = vsub.f32 1.0, %v1095
  %v1097 = vmul.f32 %v1094, %v1096
  %v1098 = vadd.f32 %v1094, %v1097
  %vm1099 = vweird.f32 %v1000
  %vm1100 = vweird.f32 %v1094
  %vm1101 = vmor %vm1099, %vm1100
  %v1102 = vsel %vm1101, %v1094, %v1098
  %v1103 = vand.u32 2147483647, %v1000
  %vm1104 = vcmp.eq.f32.partialorder %v1103, 8.507059e+37
  %v1105 = vand.u32 %v1000, 2147483648
  %v1106 = vor.u32 1.1754944e-38, %v1105
  %v1107 = vsel %vm1104, %v1106, %v1102
  %v1108 = vmul.f32 %v977, %v1107
  %v1109 = vrcp.pop %v1003
  %v1110 = vmul.f32 %v1003, %v1109
  %v1111 = vsub.f32 1.0, %v1110
  %v1112 = vmul.f32 %v1109, %v1111
  %v1113 = vadd.f32 %v1109, %v1112
  %vm1114 = vweird.f32 %v1003
  %vm1115 = vweird.f32 %v1109
  %vm1116 = vmor %vm1114, %vm1115
  %v1117 = vsel %vm1116, %v1109, %v1113
  %v1118 = vand.u32 2147483647, %v1003
  %vm1119 = vcmp.eq.f32.partialorder %v1118, 8.507059e+37
  %v1120 = vand.u32 %v1003, 2147483648
  %v1121 = vor.u32 1.1754944e-38, %v1120
  %v1122 = vsel %vm1119, %v1121, %v1117
  %v1123 = vmul.f32 %v979, %v1122
  %v1124 = vpack.c.bf16 %v1018, %v1018
  %v1125 = vpack.c.bf16 %v1033, %v1033
  %v1126 = vpack.c.bf16 %v1048, %v1048
  %v1127 = vpack.c.bf16 %v1063, %v1063
  %v1128 = vpack.c.bf16 %v1078, %v1078
  %v1129 = vpack.c.bf16 %v1093, %v1093
  %v1130 = vpack.c.bf16 %v1108, %v1108
  %v1131 = vpack.c.bf16 %v1123, %v1123
  %v1134 = vunpack.c.l.b16 %v1124
  %v1135 = vunpack.c.l.b16 %v1125
  %v1136 = vpack.c.b16 %v1135, %v1134
  %1137 = vrot.lane.b32.xlu0 %v414, 56
  %v1138 = vpop.permute.xlu0 %1137
  %v1141 = vsel %vm527, %v1136, 0
  %1143 = vmatpush.bf16.msra.mxu0 0
  %1144 = vmatpush.bf16.msra.mxu0 0
  %1145 = vmatpush.bf16.msra.mxu0 0
  %1146 = vmatpush.bf16.msra.mxu0 0
  %1147 = vmatpush.bf16.msra.mxu0 0
  %1148 = vmatpush.bf16.msra.mxu0 0
  %1149 = vmatpush.bf16.msra.mxu0 0
  %1150 = vmatpush.bf16.msra.mxu0 %v1138
  %1151 = vmatmul.bf16.gmra.mxu0 %v1141
  %v1152 = vpop.f32.mrf.mxu0
  %v1153 = vadd.f32 0.0, %v1152
  %v1154 = vpop.f32.mrf.mxu0
  %v1155 = vadd.f32 0.0, %v1154
  %1156 = vdwg.mxu0
  %v1159 = vunpack.c.l.b16 %v1126
  %v1160 = vunpack.c.l.b16 %v1127
  %v1161 = vpack.c.b16 %v1160, %v1159
  %1162 = vrot.lane.b32.xlu0 %v442, 56
  %v1163 = vpop.permute.xlu0 %1162
  %v1166 = vsel %vm527, %v1161, 0
  %1168 = vmatpush.bf16.msra.mxu0 0
  %1169 = vmatpush.bf16.msra.mxu0 0
  %1170 = vmatpush.bf16.msra.mxu0 0
  %1171 = vmatpush.bf16.msra.mxu0 0
  %1172 = vmatpush.bf16.msra.mxu0 0
  %1173 = vmatpush.bf16.msra.mxu0 0
  %1174 = vmatpush.bf16.msra.mxu0 0
  %1175 = vmatpush.bf16.msra.mxu0 %v1163
  %1176 = vmatmul.bf16.gmra.mxu0 %v1166
  %v1177 = vpop.f32.mrf.mxu0
  %v1178 = vadd.f32 0.0, %v1177
  %v1179 = vpop.f32.mrf.mxu0
  %v1180 = vadd.f32 0.0, %v1179
  %1181 = vdwg.mxu0
  %v1184 = vunpack.c.l.b16 %v1128
  %v1185 = vunpack.c.l.b16 %v1129
  %v1186 = vpack.c.b16 %v1185, %v1184
  %1187 = vrot.lane.b32.xlu0 %v469, 56
  %v1188 = vpop.permute.xlu0 %1187
  %v1191 = vsel %vm527, %v1186, 0
  %1193 = vmatpush.bf16.msra.mxu0 0
  %1194 = vmatpush.bf16.msra.mxu0 0
  %1195 = vmatpush.bf16.msra.mxu0 0
  %1196 = vmatpush.bf16.msra.mxu0 0
  %1197 = vmatpush.bf16.msra.mxu0 0
  %1198 = vmatpush.bf16.msra.mxu0 0
  %1199 = vmatpush.bf16.msra.mxu0 0
  %1200 = vmatpush.bf16.msra.mxu0 %v1188
  %1201 = vmatmul.bf16.gmra.mxu0 %v1191
  %v1202 = vpop.f32.mrf.mxu0
  %v1203 = vadd.f32 0.0, %v1202
  %v1204 = vpop.f32.mrf.mxu0
  %v1205 = vadd.f32 0.0, %v1204
  %1206 = vdwg.mxu0
  %v1209 = vunpack.c.l.b16 %v1130
  %v1210 = vunpack.c.l.b16 %v1131
  %v1211 = vpack.c.b16 %v1210, %v1209
  %1212 = vrot.lane.b32.xlu0 %v496, 56
  %v1213 = vpop.permute.xlu0 %1212
  %v1216 = vsel %vm527, %v1211, 0
  %1218 = vmatpush.bf16.msra.mxu0 0
  %1219 = vmatpush.bf16.msra.mxu0 0
  %1220 = vmatpush.bf16.msra.mxu0 0
  %1221 = vmatpush.bf16.msra.mxu0 0
  %1222 = vmatpush.bf16.msra.mxu0 0
  %1223 = vmatpush.bf16.msra.mxu0 0
  %1224 = vmatpush.bf16.msra.mxu0 0
  %1225 = vmatpush.bf16.msra.mxu0 %v1213
  %1226 = vmatmul.bf16.gmra.mxu0 %v1216
  %v1227 = vpop.f32.mrf.mxu0
  %v1228 = vadd.f32 0.0, %v1227
  %v1229 = vpop.f32.mrf.mxu0
  %v1230 = vadd.f32 0.0, %v1229
  %1231 = vdwg.mxu0
  %1232 = vrot.lane.b32.xlu0 %v414, 112
  %v1233 = vpop.permute.xlu0 %1232
  %1234 = vrot.lane.b32.xlu0 %v414, 80
  %v1235 = vpop.permute.xlu0 %1234
  %v1237 = vsel %vm417, %v1233, 0
  %v1240 = vsel %vm417, %v1235, 0
  %1242 = vmatpush.bf16.xpose.msra.mxu0 0
  %1243 = vmatpush.bf16.xpose.msra.mxu0 0
  %1244 = vmatpush.bf16.xpose.msra.mxu0 0
  %1245 = vmatpush.bf16.xpose.msra.mxu0 0
  %1246 = vmatpush.bf16.xpose.msra.mxu0 0
  %1247 = vmatpush.bf16.xpose.msra.mxu0 0
  %1248 = vmatpush.bf16.xpose.msra.mxu0 0
  %1249 = vmatpush.bf16.xpose.msra.mxu0 %v1240
  %1250 = vmatmul.bf16.gmra.mxu0 %v1237
  %v1251 = vpop.f32.mrf.mxu0
  %v1252 = vadd.f32 0.0, %v1251
  %v1253 = vpop.f32.mrf.mxu0
  %v1254 = vadd.f32 0.0, %v1253
  %1255 = vdwg.mxu0
  %1256 = vrot.lane.b32.xlu0 %v442, 112
  %v1257 = vpop.permute.xlu0 %1256
  %1258 = vrot.lane.b32.xlu0 %v442, 80
  %v1259 = vpop.permute.xlu0 %1258
  %v1261 = vsel %vm417, %v1257, 0
  %v1264 = vsel %vm417, %v1259, 0
  %1266 = vmatpush.bf16.xpose.msra.mxu0 0
  %1267 = vmatpush.bf16.xpose.msra.mxu0 0
  %1268 = vmatpush.bf16.xpose.msra.mxu0 0
  %1269 = vmatpush.bf16.xpose.msra.mxu0 0
  %1270 = vmatpush.bf16.xpose.msra.mxu0 0
  %1271 = vmatpush.bf16.xpose.msra.mxu0 0
  %1272 = vmatpush.bf16.xpose.msra.mxu0 0
  %1273 = vmatpush.bf16.xpose.msra.mxu0 %v1264
  %1274 = vmatmul.bf16.gmra.mxu0 %v1261
  %v1275 = vpop.f32.mrf.mxu0
  %v1276 = vadd.f32 0.0, %v1275
  %v1277 = vpop.f32.mrf.mxu0
  %v1278 = vadd.f32 0.0, %v1277
  %1279 = vdwg.mxu0
  %1280 = vrot.lane.b32.xlu0 %v469, 112
  %v1281 = vpop.permute.xlu0 %1280
  %1282 = vrot.lane.b32.xlu0 %v469, 80
  %v1283 = vpop.permute.xlu0 %1282
  %v1285 = vsel %vm417, %v1281, 0
  %v1288 = vsel %vm417, %v1283, 0
  %1290 = vmatpush.bf16.xpose.msra.mxu0 0
  %1291 = vmatpush.bf16.xpose.msra.mxu0 0
  %1292 = vmatpush.bf16.xpose.msra.mxu0 0
  %1293 = vmatpush.bf16.xpose.msra.mxu0 0
  %1294 = vmatpush.bf16.xpose.msra.mxu0 0
  %1295 = vmatpush.bf16.xpose.msra.mxu0 0
  %1296 = vmatpush.bf16.xpose.msra.mxu0 0
  %1297 = vmatpush.bf16.xpose.msra.mxu0 %v1288
  %1298 = vmatmul.bf16.gmra.mxu0 %v1285
  %v1299 = vpop.f32.mrf.mxu0
  %v1300 = vadd.f32 0.0, %v1299
  %v1301 = vpop.f32.mrf.mxu0
  %v1302 = vadd.f32 0.0, %v1301
  %1303 = vdwg.mxu0
  %1304 = vrot.lane.b32.xlu0 %v496, 112
  %v1305 = vpop.permute.xlu0 %1304
  %1306 = vrot.lane.b32.xlu0 %v496, 80
  %v1307 = vpop.permute.xlu0 %1306
  %v1309 = vsel %vm417, %v1305, 0
  %v1312 = vsel %vm417, %v1307, 0
  %1314 = vmatpush.bf16.xpose.msra.mxu0 0
  %1315 = vmatpush.bf16.xpose.msra.mxu0 0
  %1316 = vmatpush.bf16.xpose.msra.mxu0 0
  %1317 = vmatpush.bf16.xpose.msra.mxu0 0
  %1318 = vmatpush.bf16.xpose.msra.mxu0 0
  %1319 = vmatpush.bf16.xpose.msra.mxu0 0
  %1320 = vmatpush.bf16.xpose.msra.mxu0 0
  %1321 = vmatpush.bf16.xpose.msra.mxu0 %v1312
  %1322 = vmatmul.bf16.gmra.mxu0 %v1309
  %v1323 = vpop.f32.mrf.mxu0
  %v1324 = vadd.f32 0.0, %v1323
  %v1325 = vpop.f32.mrf.mxu0
  %v1326 = vadd.f32 0.0, %v1325
  %1327 = vdwg.mxu0
  %v1328 = vmul.f32 %v1252, 0.35355338
  %v1329 = vmul.f32 %v1254, 0.35355338
  %v1330 = vmul.f32 %v1276, 0.35355338
  %v1331 = vmul.f32 %v1278, 0.35355338
  %v1332 = vmul.f32 %v1300, 0.35355338
  %v1333 = vmul.f32 %v1302, 0.35355338
  %v1334 = vmul.f32 %v1324, 0.35355338
  %v1335 = vmul.f32 %v1326, 0.35355338
  %v1336 = vsel %vm527, %v1328, -inf
  %1337 = vmax.xlane.f32.xlu0 %v1336
  %v1338 = vpop.xlane.xlu0 %1337
  %v1339 = vsel %vm527, %v1329, -inf
  %1340 = vmax.xlane.f32.xlu0 %v1339
  %v1341 = vpop.xlane.xlu0 %1340
  %v1342 = vsel %vm527, %v1330, -inf
  %1343 = vmax.xlane.f32.xlu0 %v1342
  %v1344 = vpop.xlane.xlu0 %1343
  %v1345 = vsel %vm527, %v1331, -inf
  %1346 = vmax.xlane.f32.xlu0 %v1345
  %v1347 = vpop.xlane.xlu0 %1346
  %v1348 = vsel %vm527, %v1332, -inf
  %1349 = vmax.xlane.f32.xlu0 %v1348
  %v1350 = vpop.xlane.xlu0 %1349
  %v1351 = vsel %vm527, %v1333, -inf
  %1352 = vmax.xlane.f32.xlu0 %v1351
  %v1353 = vpop.xlane.xlu0 %1352
  %v1354 = vsel %vm527, %v1334, -inf
  %1355 = vmax.xlane.f32.xlu0 %v1354
  %v1356 = vpop.xlane.xlu0 %1355
  %v1357 = vsel %vm527, %v1335, -inf
  %1358 = vmax.xlane.f32.xlu0 %v1357
  %v1359 = vpop.xlane.xlu0 %1358
  %v1360 = vsub.f32 %v1328, %v1338
  %v1361 = vsub.f32 %v1329, %v1341
  %v1362 = vsub.f32 %v1330, %v1344
  %v1363 = vsub.f32 %v1331, %v1347
  %v1364 = vsub.f32 %v1332, %v1350
  %v1365 = vsub.f32 %v1333, %v1353
  %v1366 = vsub.f32 %v1334, %v1356
  %v1367 = vsub.f32 %v1335, %v1359
  %v1368 = vmul.f32 %v1360, 1.442695
  %v1369 = vpow.pop %v1368
  %v1370 = vmul.f32 %v1361, 1.442695
  %v1371 = vpow.pop %v1370
  %v1372 = vmul.f32 %v1362, 1.442695
  %v1373 = vpow.pop %v1372
  %v1374 = vmul.f32 %v1363, 1.442695
  %v1375 = vpow.pop %v1374
  %v1376 = vmul.f32 %v1364, 1.442695
  %v1377 = vpow.pop %v1376
  %v1378 = vmul.f32 %v1365, 1.442695
  %v1379 = vpow.pop %v1378
  %v1380 = vmul.f32 %v1366, 1.442695
  %v1381 = vpow.pop %v1380
  %v1382 = vmul.f32 %v1367, 1.442695
  %v1383 = vpow.pop %v1382
  %v1384 = vsel %vm527, %v1369, 0.0
  %1385 = vadd.xlane.f32.xlu0 %v1384
  %v1386 = vpop.xlane.xlu0 %1385
  %v1387 = vsel %vm527, %v1371, 0.0
  %1388 = vadd.xlane.f32.xlu0 %v1387
  %v1389 = vpop.xlane.xlu0 %1388
  %v1390 = vsel %vm527, %v1373, 0.0
  %1391 = vadd.xlane.f32.xlu0 %v1390
  %v1392 = vpop.xlane.xlu0 %1391
  %v1393 = vsel %vm527, %v1375, 0.0
  %1394 = vadd.xlane.f32.xlu0 %v1393
  %v1395 = vpop.xlane.xlu0 %1394
  %v1396 = vsel %vm527, %v1377, 0.0
  %1397 = vadd.xlane.f32.xlu0 %v1396
  %v1398 = vpop.xlane.xlu0 %1397
  %v1399 = vsel %vm527, %v1379, 0.0
  %1400 = vadd.xlane.f32.xlu0 %v1399
  %v1401 = vpop.xlane.xlu0 %1400
  %v1402 = vsel %vm527, %v1381, 0.0
  %1403 = vadd.xlane.f32.xlu0 %v1402
  %v1404 = vpop.xlane.xlu0 %1403
  %v1405 = vsel %vm527, %v1383, 0.0
  %1406 = vadd.xlane.f32.xlu0 %v1405
  %v1407 = vpop.xlane.xlu0 %1406
  %v1408 = vrcp.pop %v1386
  %v1409 = vmul.f32 %v1386, %v1408
  %v1410 = vsub.f32 1.0, %v1409
  %v1411 = vmul.f32 %v1408, %v1410
  %v1412 = vadd.f32 %v1408, %v1411
  %vm1413 = vweird.f32 %v1386
  %vm1414 = vweird.f32 %v1408
  %vm1415 = vmor %vm1413, %vm1414
  %v1416 = vsel %vm1415, %v1408, %v1412
  %v1417 = vand.u32 2147483647, %v1386
  %vm1418 = vcmp.eq.f32.partialorder %v1417, 8.507059e+37
  %v1419 = vand.u32 %v1386, 2147483648
  %v1420 = vor.u32 1.1754944e-38, %v1419
  %v1421 = vsel %vm1418, %v1420, %v1416
  %v1422 = vmul.f32 %v1369, %v1421
  %v1423 = vrcp.pop %v1389
  %v1424 = vmul.f32 %v1389, %v1423
  %v1425 = vsub.f32 1.0, %v1424
  %v1426 = vmul.f32 %v1423, %v1425
  %v1427 = vadd.f32 %v1423, %v1426
  %vm1428 = vweird.f32 %v1389
  %vm1429 = vweird.f32 %v1423
  %vm1430 = vmor %vm1428, %vm1429
  %v1431 = vsel %vm1430, %v1423, %v1427
  %v1432 = vand.u32 2147483647, %v1389
  %vm1433 = vcmp.eq.f32.partialorder %v1432, 8.507059e+37
  %v1434 = vand.u32 %v1389, 2147483648
  %v1435 = vor.u32 1.1754944e-38, %v1434
  %v1436 = vsel %vm1433, %v1435, %v1431
  %v1437 = vmul.f32 %v1371, %v1436
  %v1438 = vrcp.pop %v1392
  %v1439 = vmul.f32 %v1392, %v1438
  %v1440 = vsub.f32 1.0, %v1439
  %v1441 = vmul.f32 %v1438, %v1440
  %v1442 = vadd.f32 %v1438, %v1441
  %vm1443 = vweird.f32 %v1392
  %vm1444 = vweird.f32 %v1438
  %vm1445 = vmor %vm1443, %vm1444
  %v1446 = vsel %vm1445, %v1438, %v1442
  %v1447 = vand.u32 2147483647, %v1392
  %vm1448 = vcmp.eq.f32.partialorder %v1447, 8.507059e+37
  %v1449 = vand.u32 %v1392, 2147483648
  %v1450 = vor.u32 1.1754944e-38, %v1449
  %v1451 = vsel %vm1448, %v1450, %v1446
  %v1452 = vmul.f32 %v1373, %v1451
  %v1453 = vrcp.pop %v1395
  %v1454 = vmul.f32 %v1395, %v1453
  %v1455 = vsub.f32 1.0, %v1454
  %v1456 = vmul.f32 %v1453, %v1455
  %v1457 = vadd.f32 %v1453, %v1456
  %vm1458 = vweird.f32 %v1395
  %vm1459 = vweird.f32 %v1453
  %vm1460 = vmor %vm1458, %vm1459
  %v1461 = vsel %vm1460, %v1453, %v1457
  %v1462 = vand.u32 2147483647, %v1395
  %vm1463 = vcmp.eq.f32.partialorder %v1462, 8.507059e+37
  %v1464 = vand.u32 %v1395, 2147483648
  %v1465 = vor.u32 1.1754944e-38, %v1464
  %v1466 = vsel %vm1463, %v1465, %v1461
  %v1467 = vmul.f32 %v1375, %v1466
  %v1468 = vrcp.pop %v1398
  %v1469 = vmul.f32 %v1398, %v1468
  %v1470 = vsub.f32 1.0, %v1469
  %v1471 = vmul.f32 %v1468, %v1470
  %v1472 = vadd.f32 %v1468, %v1471
  %vm1473 = vweird.f32 %v1398
  %vm1474 = vweird.f32 %v1468
  %vm1475 = vmor %vm1473, %vm1474
  %v1476 = vsel %vm1475, %v1468, %v1472
  %v1477 = vand.u32 2147483647, %v1398
  %vm1478 = vcmp.eq.f32.partialorder %v1477, 8.507059e+37
  %v1479 = vand.u32 %v1398, 2147483648
  %v1480 = vor.u32 1.1754944e-38, %v1479
  %v1481 = vsel %vm1478, %v1480, %v1476
  %v1482 = vmul.f32 %v1377, %v1481
  %v1483 = vrcp.pop %v1401
  %v1484 = vmul.f32 %v1401, %v1483
  %v1485 = vsub.f32 1.0, %v1484
  %v1486 = vmul.f32 %v1483, %v1485
  %v1487 = vadd.f32 %v1483, %v1486
  %vm1488 = vweird.f32 %v1401
  %vm1489 = vweird.f32 %v1483
  %vm1490 = vmor %vm1488, %vm1489
  %v1491 = vsel %vm1490, %v1483, %v1487
  %v1492 = vand.u32 2147483647, %v1401
  %vm1493 = vcmp.eq.f32.partialorder %v1492, 8.507059e+37
  %v1494 = vand.u32 %v1401, 2147483648
  %v1495 = vor.u32 1.1754944e-38, %v1494
  %v1496 = vsel %vm1493, %v1495, %v1491
  %v1497 = vmul.f32 %v1379, %v1496
  %v1498 = vrcp.pop %v1404
  %v1499 = vmul.f32 %v1404, %v1498
  %v1500 = vsub.f32 1.0, %v1499
  %v1501 = vmul.f32 %v1498, %v1500
  %v1502 = vadd.f32 %v1498, %v1501
  %vm1503 = vweird.f32 %v1404
  %vm1504 = vweird.f32 %v1498
  %vm1505 = vmor %vm1503, %vm1504
  %v1506 = vsel %vm1505, %v1498, %v1502
  %v1507 = vand.u32 2147483647, %v1404
  %vm1508 = vcmp.eq.f32.partialorder %v1507, 8.507059e+37
  %v1509 = vand.u32 %v1404, 2147483648
  %v1510 = vor.u32 1.1754944e-38, %v1509
  %v1511 = vsel %vm1508, %v1510, %v1506
  %v1512 = vmul.f32 %v1381, %v1511
  %v1513 = vrcp.pop %v1407
  %v1514 = vmul.f32 %v1407, %v1513
  %v1515 = vsub.f32 1.0, %v1514
  %v1516 = vmul.f32 %v1513, %v1515
  %v1517 = vadd.f32 %v1513, %v1516
  %vm1518 = vweird.f32 %v1407
  %vm1519 = vweird.f32 %v1513
  %vm1520 = vmor %vm1518, %vm1519
  %v1521 = vsel %vm1520, %v1513, %v1517
  %v1522 = vand.u32 2147483647, %v1407
  %vm1523 = vcmp.eq.f32.partialorder %v1522, 8.507059e+37
  %v1524 = vand.u32 %v1407, 2147483648
  %v1525 = vor.u32 1.1754944e-38, %v1524
  %v1526 = vsel %vm1523, %v1525, %v1521
  %v1527 = vmul.f32 %v1383, %v1526
  %v1528 = vpack.c.bf16 %v1422, %v1422
  %v1529 = vpack.c.bf16 %v1437, %v1437
  %v1530 = vpack.c.bf16 %v1452, %v1452
  %v1531 = vpack.c.bf16 %v1467, %v1467
  %v1532 = vpack.c.bf16 %v1482, %v1482
  %v1533 = vpack.c.bf16 %v1497, %v1497
  %v1534 = vpack.c.bf16 %v1512, %v1512
  %v1535 = vpack.c.bf16 %v1527, %v1527
  %v1538 = vunpack.c.l.b16 %v1528
  %v1539 = vunpack.c.l.b16 %v1529
  %v1540 = vpack.c.b16 %v1539, %v1538
  %1541 = vrot.lane.b32.xlu0 %v414, 48
  %v1542 = vpop.permute.xlu0 %1541
  %v1545 = vsel %vm527, %v1540, 0
  %1547 = vmatpush.bf16.msra.mxu0 0
  %1548 = vmatpush.bf16.msra.mxu0 0
  %1549 = vmatpush.bf16.msra.mxu0 0
  %1550 = vmatpush.bf16.msra.mxu0 0
  %1551 = vmatpush.bf16.msra.mxu0 0
  %1552 = vmatpush.bf16.msra.mxu0 0
  %1553 = vmatpush.bf16.msra.mxu0 0
  %1554 = vmatpush.bf16.msra.mxu0 %v1542
  %1555 = vmatmul.bf16.gmra.mxu0 %v1545
  %v1556 = vpop.f32.mrf.mxu0
  %v1557 = vadd.f32 0.0, %v1556
  %v1558 = vpop.f32.mrf.mxu0
  %v1559 = vadd.f32 0.0, %v1558
  %1560 = vdwg.mxu0
  %v1563 = vunpack.c.l.b16 %v1530
  %v1564 = vunpack.c.l.b16 %v1531
  %v1565 = vpack.c.b16 %v1564, %v1563
  %1566 = vrot.lane.b32.xlu0 %v442, 48
  %v1567 = vpop.permute.xlu0 %1566
  %v1570 = vsel %vm527, %v1565, 0
  %1572 = vmatpush.bf16.msra.mxu0 0
  %1573 = vmatpush.bf16.msra.mxu0 0
  %1574 = vmatpush.bf16.msra.mxu0 0
  %1575 = vmatpush.bf16.msra.mxu0 0
  %1576 = vmatpush.bf16.msra.mxu0 0
  %1577 = vmatpush.bf16.msra.mxu0 0
  %1578 = vmatpush.bf16.msra.mxu0 0
  %1579 = vmatpush.bf16.msra.mxu0 %v1567
  %1580 = vmatmul.bf16.gmra.mxu0 %v1570
  %v1581 = vpop.f32.mrf.mxu0
  %v1582 = vadd.f32 0.0, %v1581
  %v1583 = vpop.f32.mrf.mxu0
  %v1584 = vadd.f32 0.0, %v1583
  %1585 = vdwg.mxu0
  %v1588 = vunpack.c.l.b16 %v1532
  %v1589 = vunpack.c.l.b16 %v1533
  %v1590 = vpack.c.b16 %v1589, %v1588
  %1591 = vrot.lane.b32.xlu0 %v469, 48
  %v1592 = vpop.permute.xlu0 %1591
  %v1595 = vsel %vm527, %v1590, 0
  %1597 = vmatpush.bf16.msra.mxu0 0
  %1598 = vmatpush.bf16.msra.mxu0 0
  %1599 = vmatpush.bf16.msra.mxu0 0
  %1600 = vmatpush.bf16.msra.mxu0 0
  %1601 = vmatpush.bf16.msra.mxu0 0
  %1602 = vmatpush.bf16.msra.mxu0 0
  %1603 = vmatpush.bf16.msra.mxu0 0
  %1604 = vmatpush.bf16.msra.mxu0 %v1592
  %1605 = vmatmul.bf16.gmra.mxu0 %v1595
  %v1606 = vpop.f32.mrf.mxu0
  %v1607 = vadd.f32 0.0, %v1606
  %v1608 = vpop.f32.mrf.mxu0
  %v1609 = vadd.f32 0.0, %v1608
  %1610 = vdwg.mxu0
  %v1613 = vunpack.c.l.b16 %v1534
  %v1614 = vunpack.c.l.b16 %v1535
  %v1615 = vpack.c.b16 %v1614, %v1613
  %1616 = vrot.lane.b32.xlu0 %v496, 48
  %v1617 = vpop.permute.xlu0 %1616
  %v1620 = vsel %vm527, %v1615, 0
  %1622 = vmatpush.bf16.msra.mxu0 0
  %1623 = vmatpush.bf16.msra.mxu0 0
  %1624 = vmatpush.bf16.msra.mxu0 0
  %1625 = vmatpush.bf16.msra.mxu0 0
  %1626 = vmatpush.bf16.msra.mxu0 0
  %1627 = vmatpush.bf16.msra.mxu0 0
  %1628 = vmatpush.bf16.msra.mxu0 0
  %1629 = vmatpush.bf16.msra.mxu0 %v1617
  %1630 = vmatmul.bf16.gmra.mxu0 %v1620
  %v1631 = vpop.f32.mrf.mxu0
  %v1632 = vadd.f32 0.0, %v1631
  %v1633 = vpop.f32.mrf.mxu0
  %v1634 = vadd.f32 0.0, %v1633
  %1635 = vdwg.mxu0
  %1636 = vrot.lane.b32.xlu0 %v414, 104
  %v1637 = vpop.permute.xlu0 %1636
  %1638 = vrot.lane.b32.xlu0 %v414, 72
  %v1639 = vpop.permute.xlu0 %1638
  %v1641 = vsel %vm417, %v1637, 0
  %v1644 = vsel %vm417, %v1639, 0
  %1646 = vmatpush.bf16.xpose.msra.mxu0 0
  %1647 = vmatpush.bf16.xpose.msra.mxu0 0
  %1648 = vmatpush.bf16.xpose.msra.mxu0 0
  %1649 = vmatpush.bf16.xpose.msra.mxu0 0
  %1650 = vmatpush.bf16.xpose.msra.mxu0 0
  %1651 = vmatpush.bf16.xpose.msra.mxu0 0
  %1652 = vmatpush.bf16.xpose.msra.mxu0 0
  %1653 = vmatpush.bf16.xpose.msra.mxu0 %v1644
  %1654 = vmatmul.bf16.gmra.mxu0 %v1641
  %v1655 = vpop.f32.mrf.mxu0
  %v1656 = vadd.f32 0.0, %v1655
  %v1657 = vpop.f32.mrf.mxu0
  %v1658 = vadd.f32 0.0, %v1657
  %1659 = vdwg.mxu0
  %1660 = vrot.lane.b32.xlu0 %v442, 104
  %v1661 = vpop.permute.xlu0 %1660
  %1662 = vrot.lane.b32.xlu0 %v442, 72
  %v1663 = vpop.permute.xlu0 %1662
  %v1665 = vsel %vm417, %v1661, 0
  %v1668 = vsel %vm417, %v1663, 0
  %1670 = vmatpush.bf16.xpose.msra.mxu0 0
  %1671 = vmatpush.bf16.xpose.msra.mxu0 0
  %1672 = vmatpush.bf16.xpose.msra.mxu0 0
  %1673 = vmatpush.bf16.xpose.msra.mxu0 0
  %1674 = vmatpush.bf16.xpose.msra.mxu0 0
  %1675 = vmatpush.bf16.xpose.msra.mxu0 0
  %1676 = vmatpush.bf16.xpose.msra.mxu0 0
  %1677 = vmatpush.bf16.xpose.msra.mxu0 %v1668
  %1678 = vmatmul.bf16.gmra.mxu0 %v1665
  %v1679 = vpop.f32.mrf.mxu0
  %v1680 = vadd.f32 0.0, %v1679
  %v1681 = vpop.f32.mrf.mxu0
  %v1682 = vadd.f32 0.0, %v1681
  %1683 = vdwg.mxu0
  %1684 = vrot.lane.b32.xlu0 %v469, 104
  %v1685 = vpop.permute.xlu0 %1684
  %1686 = vrot.lane.b32.xlu0 %v469, 72
  %v1687 = vpop.permute.xlu0 %1686
  %v1689 = vsel %vm417, %v1685, 0
  %v1692 = vsel %vm417, %v1687, 0
  %1694 = vmatpush.bf16.xpose.msra.mxu0 0
  %1695 = vmatpush.bf16.xpose.msra.mxu0 0
  %1696 = vmatpush.bf16.xpose.msra.mxu0 0
  %1697 = vmatpush.bf16.xpose.msra.mxu0 0
  %1698 = vmatpush.bf16.xpose.msra.mxu0 0
  %1699 = vmatpush.bf16.xpose.msra.mxu0 0
  %1700 = vmatpush.bf16.xpose.msra.mxu0 0
  %1701 = vmatpush.bf16.xpose.msra.mxu0 %v1692
  %1702 = vmatmul.bf16.gmra.mxu0 %v1689
  %v1703 = vpop.f32.mrf.mxu0
  %v1704 = vadd.f32 0.0, %v1703
  %v1705 = vpop.f32.mrf.mxu0
  %v1706 = vadd.f32 0.0, %v1705
  %1707 = vdwg.mxu0
  %1708 = vrot.lane.b32.xlu0 %v496, 104
  %v1709 = vpop.permute.xlu0 %1708
  %1710 = vrot.lane.b32.xlu0 %v496, 72
  %v1711 = vpop.permute.xlu0 %1710
  %v1713 = vsel %vm417, %v1709, 0
  %v1716 = vsel %vm417, %v1711, 0
  %1718 = vmatpush.bf16.xpose.msra.mxu0 0
  %1719 = vmatpush.bf16.xpose.msra.mxu0 0
  %1720 = vmatpush.bf16.xpose.msra.mxu0 0
  %1721 = vmatpush.bf16.xpose.msra.mxu0 0
  %1722 = vmatpush.bf16.xpose.msra.mxu0 0
  %1723 = vmatpush.bf16.xpose.msra.mxu0 0
  %1724 = vmatpush.bf16.xpose.msra.mxu0 0
  %1725 = vmatpush.bf16.xpose.msra.mxu0 %v1716
  %1726 = vmatmul.bf16.gmra.mxu0 %v1713
  %v1727 = vpop.f32.mrf.mxu0
  %v1728 = vadd.f32 0.0, %v1727
  %v1729 = vpop.f32.mrf.mxu0
  %v1730 = vadd.f32 0.0, %v1729
  %1731 = vdwg.mxu0
  %v1732 = vmul.f32 %v1656, 0.35355338
  %v1733 = vmul.f32 %v1658, 0.35355338
  %v1734 = vmul.f32 %v1680, 0.35355338
  %v1735 = vmul.f32 %v1682, 0.35355338
  %v1736 = vmul.f32 %v1704, 0.35355338
  %v1737 = vmul.f32 %v1706, 0.35355338
  %v1738 = vmul.f32 %v1728, 0.35355338
  %v1739 = vmul.f32 %v1730, 0.35355338
  %v1740 = vsel %vm527, %v1732, -inf
  %1741 = vmax.xlane.f32.xlu0 %v1740
  %v1742 = vpop.xlane.xlu0 %1741
  %v1743 = vsel %vm527, %v1733, -inf
  %1744 = vmax.xlane.f32.xlu0 %v1743
  %v1745 = vpop.xlane.xlu0 %1744
  %v1746 = vsel %vm527, %v1734, -inf
  %1747 = vmax.xlane.f32.xlu0 %v1746
  %v1748 = vpop.xlane.xlu0 %1747
  %v1749 = vsel %vm527, %v1735, -inf
  %1750 = vmax.xlane.f32.xlu0 %v1749
  %v1751 = vpop.xlane.xlu0 %1750
  %v1752 = vsel %vm527, %v1736, -inf
  %1753 = vmax.xlane.f32.xlu0 %v1752
  %v1754 = vpop.xlane.xlu0 %1753
  %v1755 = vsel %vm527, %v1737, -inf
  %1756 = vmax.xlane.f32.xlu0 %v1755
  %v1757 = vpop.xlane.xlu0 %1756
  %v1758 = vsel %vm527, %v1738, -inf
  %1759 = vmax.xlane.f32.xlu0 %v1758
  %v1760 = vpop.xlane.xlu0 %1759
  %v1761 = vsel %vm527, %v1739, -inf
  %1762 = vmax.xlane.f32.xlu0 %v1761
  %v1763 = vpop.xlane.xlu0 %1762
  %v1764 = vsub.f32 %v1732, %v1742
  %v1765 = vsub.f32 %v1733, %v1745
  %v1766 = vsub.f32 %v1734, %v1748
  %v1767 = vsub.f32 %v1735, %v1751
  %v1768 = vsub.f32 %v1736, %v1754
  %v1769 = vsub.f32 %v1737, %v1757
  %v1770 = vsub.f32 %v1738, %v1760
  %v1771 = vsub.f32 %v1739, %v1763
  %v1772 = vmul.f32 %v1764, 1.442695
  %v1773 = vpow.pop %v1772
  %v1774 = vmul.f32 %v1765, 1.442695
  %v1775 = vpow.pop %v1774
  %v1776 = vmul.f32 %v1766, 1.442695
  %v1777 = vpow.pop %v1776
  %v1778 = vmul.f32 %v1767, 1.442695
  %v1779 = vpow.pop %v1778
  %v1780 = vmul.f32 %v1768, 1.442695
  %v1781 = vpow.pop %v1780
  %v1782 = vmul.f32 %v1769, 1.442695
  %v1783 = vpow.pop %v1782
  %v1784 = vmul.f32 %v1770, 1.442695
  %v1785 = vpow.pop %v1784
  %v1786 = vmul.f32 %v1771, 1.442695
  %v1787 = vpow.pop %v1786
  %v1788 = vsel %vm527, %v1773, 0.0
  %1789 = vadd.xlane.f32.xlu0 %v1788
  %v1790 = vpop.xlane.xlu0 %1789
  %v1791 = vsel %vm527, %v1775, 0.0
  %1792 = vadd.xlane.f32.xlu0 %v1791
  %v1793 = vpop.xlane.xlu0 %1792
  %v1794 = vsel %vm527, %v1777, 0.0
  %1795 = vadd.xlane.f32.xlu0 %v1794
  %v1796 = vpop.xlane.xlu0 %1795
  %v1797 = vsel %vm527, %v1779, 0.0
  %1798 = vadd.xlane.f32.xlu0 %v1797
  %v1799 = vpop.xlane.xlu0 %1798
  %v1800 = vsel %vm527, %v1781, 0.0
  %1801 = vadd.xlane.f32.xlu0 %v1800
  %v1802 = vpop.xlane.xlu0 %1801
  %v1803 = vsel %vm527, %v1783, 0.0
  %1804 = vadd.xlane.f32.xlu0 %v1803
  %v1805 = vpop.xlane.xlu0 %1804
  %v1806 = vsel %vm527, %v1785, 0.0
  %1807 = vadd.xlane.f32.xlu0 %v1806
  %v1808 = vpop.xlane.xlu0 %1807
  %v1809 = vsel %vm527, %v1787, 0.0
  %1810 = vadd.xlane.f32.xlu0 %v1809
  %v1811 = vpop.xlane.xlu0 %1810
  %v1812 = vrcp.pop %v1790
  %v1813 = vmul.f32 %v1790, %v1812
  %v1814 = vsub.f32 1.0, %v1813
  %v1815 = vmul.f32 %v1812, %v1814
  %v1816 = vadd.f32 %v1812, %v1815
  %vm1817 = vweird.f32 %v1790
  %vm1818 = vweird.f32 %v1812
  %vm1819 = vmor %vm1817, %vm1818
  %v1820 = vsel %vm1819, %v1812, %v1816
  %v1821 = vand.u32 2147483647, %v1790
  %vm1822 = vcmp.eq.f32.partialorder %v1821, 8.507059e+37
  %v1823 = vand.u32 %v1790, 2147483648
  %v1824 = vor.u32 1.1754944e-38, %v1823
  %v1825 = vsel %vm1822, %v1824, %v1820
  %v1826 = vmul.f32 %v1773, %v1825
  %v1827 = vrcp.pop %v1793
  %v1828 = vmul.f32 %v1793, %v1827
  %v1829 = vsub.f32 1.0, %v1828
  %v1830 = vmul.f32 %v1827, %v1829
  %v1831 = vadd.f32 %v1827, %v1830
  %vm1832 = vweird.f32 %v1793
  %vm1833 = vweird.f32 %v1827
  %vm1834 = vmor %vm1832, %vm1833
  %v1835 = vsel %vm1834, %v1827, %v1831
  %v1836 = vand.u32 2147483647, %v1793
  %vm1837 = vcmp.eq.f32.partialorder %v1836, 8.507059e+37
  %v1838 = vand.u32 %v1793, 2147483648
  %v1839 = vor.u32 1.1754944e-38, %v1838
  %v1840 = vsel %vm1837, %v1839, %v1835
  %v1841 = vmul.f32 %v1775, %v1840
  %v1842 = vrcp.pop %v1796
  %v1843 = vmul.f32 %v1796, %v1842
  %v1844 = vsub.f32 1.0, %v1843
  %v1845 = vmul.f32 %v1842, %v1844
  %v1846 = vadd.f32 %v1842, %v1845
  %vm1847 = vweird.f32 %v1796
  %vm1848 = vweird.f32 %v1842
  %vm1849 = vmor %vm1847, %vm1848
  %v1850 = vsel %vm1849, %v1842, %v1846
  %v1851 = vand.u32 2147483647, %v1796
  %vm1852 = vcmp.eq.f32.partialorder %v1851, 8.507059e+37
  %v1853 = vand.u32 %v1796, 2147483648
  %v1854 = vor.u32 1.1754944e-38, %v1853
  %v1855 = vsel %vm1852, %v1854, %v1850
  %v1856 = vmul.f32 %v1777, %v1855
  %v1857 = vrcp.pop %v1799
  %v1858 = vmul.f32 %v1799, %v1857
  %v1859 = vsub.f32 1.0, %v1858
  %v1860 = vmul.f32 %v1857, %v1859
  %v1861 = vadd.f32 %v1857, %v1860
  %vm1862 = vweird.f32 %v1799
  %vm1863 = vweird.f32 %v1857
  %vm1864 = vmor %vm1862, %vm1863
  %v1865 = vsel %vm1864, %v1857, %v1861
  %v1866 = vand.u32 2147483647, %v1799
  %vm1867 = vcmp.eq.f32.partialorder %v1866, 8.507059e+37
  %v1868 = vand.u32 %v1799, 2147483648
  %v1869 = vor.u32 1.1754944e-38, %v1868
  %v1870 = vsel %vm1867, %v1869, %v1865
  %v1871 = vmul.f32 %v1779, %v1870
  %v1872 = vrcp.pop %v1802
  %v1873 = vmul.f32 %v1802, %v1872
  %v1874 = vsub.f32 1.0, %v1873
  %v1875 = vmul.f32 %v1872, %v1874
  %v1876 = vadd.f32 %v1872, %v1875
  %vm1877 = vweird.f32 %v1802
  %vm1878 = vweird.f32 %v1872
  %vm1879 = vmor %vm1877, %vm1878
  %v1880 = vsel %vm1879, %v1872, %v1876
  %v1881 = vand.u32 2147483647, %v1802
  %vm1882 = vcmp.eq.f32.partialorder %v1881, 8.507059e+37
  %v1883 = vand.u32 %v1802, 2147483648
  %v1884 = vor.u32 1.1754944e-38, %v1883
  %v1885 = vsel %vm1882, %v1884, %v1880
  %v1886 = vmul.f32 %v1781, %v1885
  %v1887 = vrcp.pop %v1805
  %v1888 = vmul.f32 %v1805, %v1887
  %v1889 = vsub.f32 1.0, %v1888
  %v1890 = vmul.f32 %v1887, %v1889
  %v1891 = vadd.f32 %v1887, %v1890
  %vm1892 = vweird.f32 %v1805
  %vm1893 = vweird.f32 %v1887
  %vm1894 = vmor %vm1892, %vm1893
  %v1895 = vsel %vm1894, %v1887, %v1891
  %v1896 = vand.u32 2147483647, %v1805
  %vm1897 = vcmp.eq.f32.partialorder %v1896, 8.507059e+37
  %v1898 = vand.u32 %v1805, 2147483648
  %v1899 = vor.u32 1.1754944e-38, %v1898
  %v1900 = vsel %vm1897, %v1899, %v1895
  %v1901 = vmul.f32 %v1783, %v1900
  %v1902 = vrcp.pop %v1808
  %v1903 = vmul.f32 %v1808, %v1902
  %v1904 = vsub.f32 1.0, %v1903
  %v1905 = vmul.f32 %v1902, %v1904
  %v1906 = vadd.f32 %v1902, %v1905
  %vm1907 = vweird.f32 %v1808
  %vm1908 = vweird.f32 %v1902
  %vm1909 = vmor %vm1907, %vm1908
  %v1910 = vsel %vm1909, %v1902, %v1906
  %v1911 = vand.u32 2147483647, %v1808
  %vm1912 = vcmp.eq.f32.partialorder %v1911, 8.507059e+37
  %v1913 = vand.u32 %v1808, 2147483648
  %v1914 = vor.u32 1.1754944e-38, %v1913
  %v1915 = vsel %vm1912, %v1914, %v1910
  %v1916 = vmul.f32 %v1785, %v1915
  %v1917 = vrcp.pop %v1811
  %v1918 = vmul.f32 %v1811, %v1917
  %v1919 = vsub.f32 1.0, %v1918
  %v1920 = vmul.f32 %v1917, %v1919
  %v1921 = vadd.f32 %v1917, %v1920
  %vm1922 = vweird.f32 %v1811
  %vm1923 = vweird.f32 %v1917
  %vm1924 = vmor %vm1922, %vm1923
  %v1925 = vsel %vm1924, %v1917, %v1921
  %v1926 = vand.u32 2147483647, %v1811
  %vm1927 = vcmp.eq.f32.partialorder %v1926, 8.507059e+37
  %v1928 = vand.u32 %v1811, 2147483648
  %v1929 = vor.u32 1.1754944e-38, %v1928
  %v1930 = vsel %vm1927, %v1929, %v1925
  %v1931 = vmul.f32 %v1787, %v1930
  %v1932 = vpack.c.bf16 %v1826, %v1826
  %v1933 = vpack.c.bf16 %v1841, %v1841
  %v1934 = vpack.c.bf16 %v1856, %v1856
  %v1935 = vpack.c.bf16 %v1871, %v1871
  %v1936 = vpack.c.bf16 %v1886, %v1886
  %v1937 = vpack.c.bf16 %v1901, %v1901
  %v1938 = vpack.c.bf16 %v1916, %v1916
  %v1939 = vpack.c.bf16 %v1931, %v1931
  %v1942 = vunpack.c.l.b16 %v1932
  %v1943 = vunpack.c.l.b16 %v1933
  %v1944 = vpack.c.b16 %v1943, %v1942
  %1945 = vrot.lane.b32.xlu0 %v414, 40
  %v1946 = vpop.permute.xlu0 %1945
  %v1949 = vsel %vm527, %v1944, 0
  %1951 = vmatpush.bf16.msra.mxu0 0
  %1952 = vmatpush.bf16.msra.mxu0 0
  %1953 = vmatpush.bf16.msra.mxu0 0
  %1954 = vmatpush.bf16.msra.mxu0 0
  %1955 = vmatpush.bf16.msra.mxu0 0
  %1956 = vmatpush.bf16.msra.mxu0 0
  %1957 = vmatpush.bf16.msra.mxu0 0
  %1958 = vmatpush.bf16.msra.mxu0 %v1946
  %1959 = vmatmul.bf16.gmra.mxu0 %v1949
  %v1960 = vpop.f32.mrf.mxu0
  %v1961 = vadd.f32 0.0, %v1960
  %v1962 = vpop.f32.mrf.mxu0
  %v1963 = vadd.f32 0.0, %v1962
  %1964 = vdwg.mxu0
  %v1967 = vunpack.c.l.b16 %v1934
  %v1968 = vunpack.c.l.b16 %v1935
  %v1969 = vpack.c.b16 %v1968, %v1967
  %1970 = vrot.lane.b32.xlu0 %v442, 40
  %v1971 = vpop.permute.xlu0 %1970
  %v1974 = vsel %vm527, %v1969, 0
  %1976 = vmatpush.bf16.msra.mxu0 0
  %1977 = vmatpush.bf16.msra.mxu0 0
  %1978 = vmatpush.bf16.msra.mxu0 0
  %1979 = vmatpush.bf16.msra.mxu0 0
  %1980 = vmatpush.bf16.msra.mxu0 0
  %1981 = vmatpush.bf16.msra.mxu0 0
  %1982 = vmatpush.bf16.msra.mxu0 0
  %1983 = vmatpush.bf16.msra.mxu0 %v1971
  %1984 = vmatmul.bf16.gmra.mxu0 %v1974
  %v1985 = vpop.f32.mrf.mxu0
  %v1986 = vadd.f32 0.0, %v1985
  %v1987 = vpop.f32.mrf.mxu0
  %v1988 = vadd.f32 0.0, %v1987
  %1989 = vdwg.mxu0
  %v1992 = vunpack.c.l.b16 %v1936
  %v1993 = vunpack.c.l.b16 %v1937
  %v1994 = vpack.c.b16 %v1993, %v1992
  %1995 = vrot.lane.b32.xlu0 %v469, 40
  %v1996 = vpop.permute.xlu0 %1995
  %v1999 = vsel %vm527, %v1994, 0
  %2001 = vmatpush.bf16.msra.mxu0 0
  %2002 = vmatpush.bf16.msra.mxu0 0
  %2003 = vmatpush.bf16.msra.mxu0 0
  %2004 = vmatpush.bf16.msra.mxu0 0
  %2005 = vmatpush.bf16.msra.mxu0 0
  %2006 = vmatpush.bf16.msra.mxu0 0
  %2007 = vmatpush.bf16.msra.mxu0 0
  %2008 = vmatpush.bf16.msra.mxu0 %v1996
  %2009 = vmatmul.bf16.gmra.mxu0 %v1999
  %v2010 = vpop.f32.mrf.mxu0
  %v2011 = vadd.f32 0.0, %v2010
  %v2012 = vpop.f32.mrf.mxu0
  %v2013 = vadd.f32 0.0, %v2012
  %2014 = vdwg.mxu0
  %v2017 = vunpack.c.l.b16 %v1938
  %v2018 = vunpack.c.l.b16 %v1939
  %v2019 = vpack.c.b16 %v2018, %v2017
  %2020 = vrot.lane.b32.xlu0 %v496, 40
  %v2021 = vpop.permute.xlu0 %2020
  %v2024 = vsel %vm527, %v2019, 0
  %2026 = vmatpush.bf16.msra.mxu0 0
  %2027 = vmatpush.bf16.msra.mxu0 0
  %2028 = vmatpush.bf16.msra.mxu0 0
  %2029 = vmatpush.bf16.msra.mxu0 0
  %2030 = vmatpush.bf16.msra.mxu0 0
  %2031 = vmatpush.bf16.msra.mxu0 0
  %2032 = vmatpush.bf16.msra.mxu0 0
  %2033 = vmatpush.bf16.msra.mxu0 %v2021
  %2034 = vmatmul.bf16.gmra.mxu0 %v2024
  %v2035 = vpop.f32.mrf.mxu0
  %v2036 = vadd.f32 0.0, %v2035
  %v2037 = vpop.f32.mrf.mxu0
  %v2038 = vadd.f32 0.0, %v2037
  %2039 = vdwg.mxu0
  %2048 = vrot.lane.b32.xlu0 %v1153, 8
  %v2049 = vpop.permute.xlu0 %2048
  %2050 = vrot.lane.b32.xlu0 %v1155, 8
  %v2051 = vpop.permute.xlu0 %2050
  %2052 = vrot.lane.b32.xlu0 %v1178, 8
  %v2053 = vpop.permute.xlu0 %2052
  %2054 = vrot.lane.b32.xlu0 %v1180, 8
  %v2055 = vpop.permute.xlu0 %2054
  %2056 = vrot.lane.b32.xlu0 %v1203, 8
  %v2057 = vpop.permute.xlu0 %2056
  %2058 = vrot.lane.b32.xlu0 %v1205, 8
  %v2059 = vpop.permute.xlu0 %2058
  %2060 = vrot.lane.b32.xlu0 %v1228, 8
  %v2061 = vpop.permute.xlu0 %2060
  %2062 = vrot.lane.b32.xlu0 %v1230, 8
  %v2063 = vpop.permute.xlu0 %2062
  %2080 = vrot.lane.b32.xlu0 %v1557, 16
  %v2081 = vpop.permute.xlu0 %2080
  %2082 = vrot.lane.b32.xlu0 %v1559, 16
  %v2083 = vpop.permute.xlu0 %2082
  %2084 = vrot.lane.b32.xlu0 %v1582, 16
  %v2085 = vpop.permute.xlu0 %2084
  %2086 = vrot.lane.b32.xlu0 %v1584, 16
  %v2087 = vpop.permute.xlu0 %2086
  %2088 = vrot.lane.b32.xlu0 %v1607, 16
  %v2089 = vpop.permute.xlu0 %2088
  %2090 = vrot.lane.b32.xlu0 %v1609, 16
  %v2091 = vpop.permute.xlu0 %2090
  %2092 = vrot.lane.b32.xlu0 %v1632, 16
  %v2093 = vpop.permute.xlu0 %2092
  %2094 = vrot.lane.b32.xlu0 %v1634, 16
  %v2095 = vpop.permute.xlu0 %2094
  %2112 = vrot.lane.b32.xlu0 %v1961, 24
  %v2113 = vpop.permute.xlu0 %2112
  %2114 = vrot.lane.b32.xlu0 %v1963, 24
  %v2115 = vpop.permute.xlu0 %2114
  %2116 = vrot.lane.b32.xlu0 %v1986, 24
  %v2117 = vpop.permute.xlu0 %2116
  %2118 = vrot.lane.b32.xlu0 %v1988, 24
  %v2119 = vpop.permute.xlu0 %2118
  %2120 = vrot.lane.b32.xlu0 %v2011, 24
  %v2121 = vpop.permute.xlu0 %2120
  %2122 = vrot.lane.b32.xlu0 %v2013, 24
  %v2123 = vpop.permute.xlu0 %2122
  %2124 = vrot.lane.b32.xlu0 %v2036, 24
  %v2125 = vpop.permute.xlu0 %2124
  %2126 = vrot.lane.b32.xlu0 %v2038, 24
  %v2127 = vpop.permute.xlu0 %2126
  %v2136 = vsel %vm417, %v749, %v2049
  %v2137 = vsel %vm417, %v751, %v2051
  %v2138 = vsel %vm417, %v774, %v2053
  %v2139 = vsel %vm417, %v776, %v2055
  %v2140 = vsel %vm417, %v799, %v2057
  %v2141 = vsel %vm417, %v801, %v2059
  %v2142 = vsel %vm417, %v824, %v2061
  %v2143 = vsel %vm417, %v826, %v2063
  %v2144 = vsel %vm527, %v2136, %v2081
  %v2145 = vsel %vm527, %v2137, %v2083
  %v2146 = vsel %vm527, %v2138, %v2085
  %v2147 = vsel %vm527, %v2139, %v2087
  %v2148 = vsel %vm527, %v2140, %v2089
  %v2149 = vsel %vm527, %v2141, %v2091
  %v2150 = vsel %vm527, %v2142, %v2093
  %v2151 = vsel %vm527, %v2143, %v2095
  %vm2152 = vcmask 195584
  %v2153 = vsel %vm2152, %v2144, %v2113
  %v2154 = vsel %vm2152, %v2145, %v2115
  %v2155 = vsel %vm2152, %v2146, %v2117
  %v2156 = vsel %vm2152, %v2147, %v2119
  %v2157 = vsel %vm2152, %v2148, %v2121
  %v2158 = vsel %vm2152, %v2149, %v2123
  %v2159 = vsel %vm2152, %v2150, %v2125
  %v2160 = vsel %vm2152, %v2151, %v2127
  %v2161 = vpack.c.bf16 %v2154, %v2153
  %v2162 = vpack.c.bf16 %v2156, %v2155
  %v2163 = vpack.c.bf16 %v2158, %v2157
  %v2164 = vpack.c.bf16 %v2160, %v2159
  %v2169 = vunpack.c.l.b16 %v54
  %v2170 = vunpack.c.l.b16 %v55
  %v2171 = vunpack.c.l.b16 %v56
  %v2172 = vunpack.c.l.b16 %v57
  %v2173 = vpack.c.b16 %v2170, %v2169
  %v2174 = vpack.c.b16 %v2172, %v2171
  %v2178 = vsel %vm142, %v2161, 0
  %v2181 = vsel %vm142, %v2162, 0
  %v2184 = vsel %vm142, %v2163, 0
  %v2187 = vsel %vm142, %v2164, 0
  %2189 = vmatpush.bf16.msra.mxu0 0
  %2190 = vmatpush.bf16.msra.mxu0 0
  %2191 = vmatpush.bf16.msra.mxu0 0
  %2192 = vmatpush.bf16.msra.mxu0 0
  %2193 = vmatpush.bf16.msra.mxu0 0
  %2194 = vmatpush.bf16.msra.mxu0 0
  %2195 = vmatpush.bf16.msra.mxu0 %v2174
  %2196 = vmatpush.bf16.msra.mxu0 %v2173
  %2197 = vmatmul.bf16.gmra.mxu0 %v2178
  %v2198 = vpop.f32.mrf.mxu0
  %v2199 = vadd.f32 0.0, %v2198
  %v2200 = vpop.f32.mrf.mxu0
  %v2201 = vadd.f32 0.0, %v2200
  %2202 = vmatmul.bf16.gmra.mxu0 %v2181
  %v2203 = vpop.f32.mrf.mxu0
  %v2204 = vadd.f32 0.0, %v2203
  %v2205 = vpop.f32.mrf.mxu0
  %v2206 = vadd.f32 0.0, %v2205
  %2207 = vmatmul.bf16.gmra.mxu0 %v2184
  %v2208 = vpop.f32.mrf.mxu0
  %v2209 = vadd.f32 0.0, %v2208
  %v2210 = vpop.f32.mrf.mxu0
  %v2211 = vadd.f32 0.0, %v2210
  %2212 = vmatmul.bf16.gmra.mxu0 %v2187
  %v2213 = vpop.f32.mrf.mxu0
  %v2214 = vadd.f32 0.0, %v2213
  %v2215 = vpop.f32.mrf.mxu0
  %v2216 = vadd.f32 0.0, %v2215
  %2217 = vdwg.mxu0
  %v2218 = vadd.f32 %v123, %v2199
  %v2219 = vadd.f32 %v125, %v2201
  %v2220 = vadd.f32 %v128, %v2204
  %v2221 = vadd.f32 %v130, %v2206
  %v2222 = vadd.f32 %v133, %v2209
  %v2223 = vadd.f32 %v135, %v2211
  %v2224 = vadd.f32 %v138, %v2214
  %v2225 = vadd.f32 %v140, %v2216
  %v2226 = vperm.slane %v68, 3
  %v2227 = vadd.f32 %v2218, %v2226
  %v2228 = vadd.f32 %v2219, %v2226
  %v2229 = vadd.f32 %v2220, %v2226
  %v2230 = vadd.f32 %v2221, %v2226
  %v2231 = vadd.f32 %v2222, %v2226
  %v2232 = vadd.f32 %v2223, %v2226
  %v2233 = vadd.f32 %v2224, %v2226
  %v2234 = vadd.f32 %v2225, %v2226
  %v2235 = vsel %vm142, %v2227, 0.0
  %2236 = vadd.xlane.f32.xlu0 %v2235
  %v2237 = vpop.xlane.xlu0 %2236
  %v2238 = vsel %vm142, %v2228, 0.0
  %2239 = vadd.xlane.f32.xlu0 %v2238
  %v2240 = vpop.xlane.xlu0 %2239
  %v2241 = vsel %vm142, %v2229, 0.0
  %2242 = vadd.xlane.f32.xlu0 %v2241
  %v2243 = vpop.xlane.xlu0 %2242
  %v2244 = vsel %vm142, %v2230, 0.0
  %2245 = vadd.xlane.f32.xlu0 %v2244
  %v2246 = vpop.xlane.xlu0 %2245
  %v2247 = vsel %vm142, %v2231, 0.0
  %2248 = vadd.xlane.f32.xlu0 %v2247
  %v2249 = vpop.xlane.xlu0 %2248
  %v2250 = vsel %vm142, %v2232, 0.0
  %2251 = vadd.xlane.f32.xlu0 %v2250
  %v2252 = vpop.xlane.xlu0 %2251
  %v2253 = vsel %vm142, %v2233, 0.0
  %2254 = vadd.xlane.f32.xlu0 %v2253
  %v2255 = vpop.xlane.xlu0 %2254
  %v2256 = vsel %vm142, %v2234, 0.0
  %2257 = vadd.xlane.f32.xlu0 %v2256
  %v2258 = vpop.xlane.xlu0 %2257
  %v2259 = vmul.f32 %v2237, %v173
  %v2260 = vmul.f32 %v2240, %v173
  %v2261 = vmul.f32 %v2243, %v173
  %v2262 = vmul.f32 %v2246, %v173
  %v2263 = vmul.f32 %v2249, %v173
  %v2264 = vmul.f32 %v2252, %v173
  %v2265 = vmul.f32 %v2255, %v173
  %v2266 = vmul.f32 %v2258, %v173
  %v2267 = vsub.f32 %v2227, %v2259
  %v2268 = vsub.f32 %v2228, %v2260
  %v2269 = vsub.f32 %v2229, %v2261
  %v2270 = vsub.f32 %v2230, %v2262
  %v2271 = vsub.f32 %v2231, %v2263
  %v2272 = vsub.f32 %v2232, %v2264
  %v2273 = vsub.f32 %v2233, %v2265
  %v2274 = vsub.f32 %v2234, %v2266
  %v2275 = vmul.f32 %v2267, %v2267
  %v2276 = vmul.f32 %v2268, %v2268
  %v2277 = vmul.f32 %v2269, %v2269
  %v2278 = vmul.f32 %v2270, %v2270
  %v2279 = vmul.f32 %v2271, %v2271
  %v2280 = vmul.f32 %v2272, %v2272
  %v2281 = vmul.f32 %v2273, %v2273
  %v2282 = vmul.f32 %v2274, %v2274
  %v2283 = vsel %vm142, %v2275, 0.0
  %2284 = vadd.xlane.f32.xlu0 %v2283
  %v2285 = vpop.xlane.xlu0 %2284
  %v2286 = vsel %vm142, %v2276, 0.0
  %2287 = vadd.xlane.f32.xlu0 %v2286
  %v2288 = vpop.xlane.xlu0 %2287
  %v2289 = vsel %vm142, %v2277, 0.0
  %2290 = vadd.xlane.f32.xlu0 %v2289
  %v2291 = vpop.xlane.xlu0 %2290
  %v2292 = vsel %vm142, %v2278, 0.0
  %2293 = vadd.xlane.f32.xlu0 %v2292
  %v2294 = vpop.xlane.xlu0 %2293
  %v2295 = vsel %vm142, %v2279, 0.0
  %2296 = vadd.xlane.f32.xlu0 %v2295
  %v2297 = vpop.xlane.xlu0 %2296
  %v2298 = vsel %vm142, %v2280, 0.0
  %2299 = vadd.xlane.f32.xlu0 %v2298
  %v2300 = vpop.xlane.xlu0 %2299
  %v2301 = vsel %vm142, %v2281, 0.0
  %2302 = vadd.xlane.f32.xlu0 %v2301
  %v2303 = vpop.xlane.xlu0 %2302
  %v2304 = vsel %vm142, %v2282, 0.0
  %2305 = vadd.xlane.f32.xlu0 %v2304
  %v2306 = vpop.xlane.xlu0 %2305
  %v2307 = vmul.f32 %v2285, %v173
  %v2308 = vmul.f32 %v2288, %v173
  %v2309 = vmul.f32 %v2291, %v173
  %v2310 = vmul.f32 %v2294, %v173
  %v2311 = vmul.f32 %v2297, %v173
  %v2312 = vmul.f32 %v2300, %v173
  %v2313 = vmul.f32 %v2303, %v173
  %v2314 = vmul.f32 %v2306, %v173
  %v2315 = vadd.f32 %v2307, 1e-05
  %v2316 = vadd.f32 %v2308, 1e-05
  %v2317 = vadd.f32 %v2309, 1e-05
  %v2318 = vadd.f32 %v2310, 1e-05
  %v2319 = vadd.f32 %v2311, 1e-05
  %v2320 = vadd.f32 %v2312, 1e-05
  %v2321 = vadd.f32 %v2313, 1e-05
  %v2322 = vadd.f32 %v2314, 1e-05
  %v2323 = vrsqrt.pop %v2315
  %v2324 = vmul.f32 %v2323, %v2315
  %v2325 = vmul.f32 %v2324, %v2323
  %v2326 = vmul.f32 0.5, %v2325
  %v2327 = vsub.f32 1.5, %v2326
  %v2328 = vmul.f32 %v2323, %v2327
  %vm2329 = vweird.f32 %v2315
  %vm2330 = vweird.f32 %v2323
  %vm2331 = vmor %vm2329, %vm2330
  %v2332 = vsel %vm2331, %v2323, %v2328
  %v2333 = vrsqrt.pop %v2316
  %v2334 = vmul.f32 %v2333, %v2316
  %v2335 = vmul.f32 %v2334, %v2333
  %v2336 = vmul.f32 0.5, %v2335
  %v2337 = vsub.f32 1.5, %v2336
  %v2338 = vmul.f32 %v2333, %v2337
  %vm2339 = vweird.f32 %v2316
  %vm2340 = vweird.f32 %v2333
  %vm2341 = vmor %vm2339, %vm2340
  %v2342 = vsel %vm2341, %v2333, %v2338
  %v2343 = vrsqrt.pop %v2317
  %v2344 = vmul.f32 %v2343, %v2317
  %v2345 = vmul.f32 %v2344, %v2343
  %v2346 = vmul.f32 0.5, %v2345
  %v2347 = vsub.f32 1.5, %v2346
  %v2348 = vmul.f32 %v2343, %v2347
  %vm2349 = vweird.f32 %v2317
  %vm2350 = vweird.f32 %v2343
  %vm2351 = vmor %vm2349, %vm2350
  %v2352 = vsel %vm2351, %v2343, %v2348
  %v2353 = vrsqrt.pop %v2318
  %v2354 = vmul.f32 %v2353, %v2318
  %v2355 = vmul.f32 %v2354, %v2353
  %v2356 = vmul.f32 0.5, %v2355
  %v2357 = vsub.f32 1.5, %v2356
  %v2358 = vmul.f32 %v2353, %v2357
  %vm2359 = vweird.f32 %v2318
  %vm2360 = vweird.f32 %v2353
  %vm2361 = vmor %vm2359, %vm2360
  %v2362 = vsel %vm2361, %v2353, %v2358
  %v2363 = vrsqrt.pop %v2319
  %v2364 = vmul.f32 %v2363, %v2319
  %v2365 = vmul.f32 %v2364, %v2363
  %v2366 = vmul.f32 0.5, %v2365
  %v2367 = vsub.f32 1.5, %v2366
  %v2368 = vmul.f32 %v2363, %v2367
  %vm2369 = vweird.f32 %v2319
  %vm2370 = vweird.f32 %v2363
  %vm2371 = vmor %vm2369, %vm2370
  %v2372 = vsel %vm2371, %v2363, %v2368
  %v2373 = vrsqrt.pop %v2320
  %v2374 = vmul.f32 %v2373, %v2320
  %v2375 = vmul.f32 %v2374, %v2373
  %v2376 = vmul.f32 0.5, %v2375
  %v2377 = vsub.f32 1.5, %v2376
  %v2378 = vmul.f32 %v2373, %v2377
  %vm2379 = vweird.f32 %v2320
  %vm2380 = vweird.f32 %v2373
  %vm2381 = vmor %vm2379, %vm2380
  %v2382 = vsel %vm2381, %v2373, %v2378
  %v2383 = vrsqrt.pop %v2321
  %v2384 = vmul.f32 %v2383, %v2321
  %v2385 = vmul.f32 %v2384, %v2383
  %v2386 = vmul.f32 0.5, %v2385
  %v2387 = vsub.f32 1.5, %v2386
  %v2388 = vmul.f32 %v2383, %v2387
  %vm2389 = vweird.f32 %v2321
  %vm2390 = vweird.f32 %v2383
  %vm2391 = vmor %vm2389, %vm2390
  %v2392 = vsel %vm2391, %v2383, %v2388
  %v2393 = vrsqrt.pop %v2322
  %v2394 = vmul.f32 %v2393, %v2322
  %v2395 = vmul.f32 %v2394, %v2393
  %v2396 = vmul.f32 0.5, %v2395
  %v2397 = vsub.f32 1.5, %v2396
  %v2398 = vmul.f32 %v2393, %v2397
  %vm2399 = vweird.f32 %v2322
  %vm2400 = vweird.f32 %v2393
  %vm2401 = vmor %vm2399, %vm2400
  %v2402 = vsel %vm2401, %v2393, %v2398
  %v2403 = vmul.f32 %v2267, %v2332
  %v2404 = vmul.f32 %v2268, %v2342
  %v2405 = vmul.f32 %v2269, %v2352
  %v2406 = vmul.f32 %v2270, %v2362
  %v2407 = vmul.f32 %v2271, %v2372
  %v2408 = vmul.f32 %v2272, %v2382
  %v2409 = vmul.f32 %v2273, %v2392
  %v2410 = vmul.f32 %v2274, %v2402
  %v2411 = vperm.slane %v68, 4
  %v2412 = vmul.f32 %v2403, %v2411
  %v2413 = vmul.f32 %v2404, %v2411
  %v2414 = vmul.f32 %v2405, %v2411
  %v2415 = vmul.f32 %v2406, %v2411
  %v2416 = vmul.f32 %v2407, %v2411
  %v2417 = vmul.f32 %v2408, %v2411
  %v2418 = vmul.f32 %v2409, %v2411
  %v2419 = vmul.f32 %v2410, %v2411
  %v2420 = vperm.slane %v68, 5
  %v2421 = vadd.f32 %v2412, %v2420
  %v2422 = vadd.f32 %v2413, %v2420
  %v2423 = vadd.f32 %v2414, %v2420
  %v2424 = vadd.f32 %v2415, %v2420
  %v2425 = vadd.f32 %v2416, %v2420
  %v2426 = vadd.f32 %v2417, %v2420
  %v2427 = vadd.f32 %v2418, %v2420
  %v2428 = vadd.f32 %v2419, %v2420
  %v2429 = vpack.c.bf16 %v2422, %v2421
  %v2430 = vpack.c.bf16 %v2424, %v2423
  %v2431 = vpack.c.bf16 %v2426, %v2425
  %v2432 = vpack.c.bf16 %v2428, %v2427
  %v2433 = vperm.slane %v68, 6
  %v2434 = vunpack.c.l.b16 %v60
  %v2435 = vunpack.c.l.b16 %v62
  %v2436 = vunpack.c.l.b16 %v64
  %v2437 = vunpack.c.l.b16 %v66
  %v2438 = vpack.c.b16 %v2435, %v2434
  %v2439 = vpack.c.b16 %v2437, %v2436
  %v2443 = vsel %vm142, %v2429, 0
  %v2446 = vsel %vm142, %v2430, 0
  %v2449 = vsel %vm142, %v2431, 0
  %v2452 = vsel %vm142, %v2432, 0
  %2454 = vmatpush.bf16.msra.mxu0 0
  %2455 = vmatpush.bf16.msra.mxu0 0
  %2456 = vmatpush.bf16.msra.mxu0 0
  %2457 = vmatpush.bf16.msra.mxu0 0
  %2458 = vmatpush.bf16.msra.mxu0 0
  %2459 = vmatpush.bf16.msra.mxu0 0
  %2460 = vmatpush.bf16.msra.mxu0 %v2439
  %2461 = vmatpush.bf16.msra.mxu0 %v2438
  %2462 = vmatmul.bf16.gmra.mxu0 %v2443
  %v2463 = vpop.f32.mrf.mxu0
  %v2464 = vadd.f32 %v2433, %v2463
  %v2465 = vpop.f32.mrf.mxu0
  %v2466 = vadd.f32 %v2433, %v2465
  %2467 = vmatmul.bf16.gmra.mxu0 %v2446
  %v2468 = vpop.f32.mrf.mxu0
  %v2469 = vadd.f32 %v2433, %v2468
  %v2470 = vpop.f32.mrf.mxu0
  %v2471 = vadd.f32 %v2433, %v2470
  %2472 = vmatmul.bf16.gmra.mxu0 %v2449
  %v2473 = vpop.f32.mrf.mxu0
  %v2474 = vadd.f32 %v2433, %v2473
  %v2475 = vpop.f32.mrf.mxu0
  %v2476 = vadd.f32 %v2433, %v2475
  %2477 = vmatmul.bf16.gmra.mxu0 %v2452
  %v2478 = vpop.f32.mrf.mxu0
  %v2479 = vadd.f32 %v2433, %v2478
  %v2480 = vpop.f32.mrf.mxu0
  %v2481 = vadd.f32 %v2433, %v2480
  %2482 = vdwg.mxu0
  %v2483 = vmul.f32 %v2464, 1.702
  %v2484 = vmul.f32 %v2466, 1.702
  %v2485 = vmul.f32 %v2469, 1.702
  %v2486 = vmul.f32 %v2471, 1.702
  %v2487 = vmul.f32 %v2474, 1.702
  %v2488 = vmul.f32 %v2476, 1.702
  %v2489 = vmul.f32 %v2479, 1.702
  %v2490 = vmul.f32 %v2481, 1.702
  %v2491 = vxor.u32 %v2483, 2147483648
  %v2492 = vxor.u32 %v2484, 2147483648
  %v2493 = vxor.u32 %v2485, 2147483648
  %v2494 = vxor.u32 %v2486, 2147483648
  %v2495 = vxor.u32 %v2487, 2147483648
  %v2496 = vxor.u32 %v2488, 2147483648
  %v2497 = vxor.u32 %v2489, 2147483648
  %v2498 = vxor.u32 %v2490, 2147483648
  %v2499 = vmul.f32 %v2491, 1.442695
  %v2500 = vpow.pop %v2499
  %v2501 = vmul.f32 %v2492, 1.442695
  %v2502 = vpow.pop %v2501
  %v2503 = vmul.f32 %v2493, 1.442695
  %v2504 = vpow.pop %v2503
  %v2505 = vmul.f32 %v2494, 1.442695
  %v2506 = vpow.pop %v2505
  %v2507 = vmul.f32 %v2495, 1.442695
  %v2508 = vpow.pop %v2507
  %v2509 = vmul.f32 %v2496, 1.442695
  %v2510 = vpow.pop %v2509
  %v2511 = vmul.f32 %v2497, 1.442695
  %v2512 = vpow.pop %v2511
  %v2513 = vmul.f32 %v2498, 1.442695
  %v2514 = vpow.pop %v2513
  %v2515 = vadd.f32 %v2500, 1.0
  %v2516 = vadd.f32 %v2502, 1.0
  %v2517 = vadd.f32 %v2504, 1.0
  %v2518 = vadd.f32 %v2506, 1.0
  %v2519 = vadd.f32 %v2508, 1.0
  %v2520 = vadd.f32 %v2510, 1.0
  %v2521 = vadd.f32 %v2512, 1.0
  %v2522 = vadd.f32 %v2514, 1.0
  %v2523 = vrcp.pop %v2515
  %v2524 = vmul.f32 %v2515, %v2523
  %v2525 = vsub.f32 1.0, %v2524
  %v2526 = vmul.f32 %v2523, %v2525
  %v2527 = vadd.f32 %v2523, %v2526
  %vm2528 = vweird.f32 %v2515
  %vm2529 = vweird.f32 %v2523
  %vm2530 = vmor %vm2528, %vm2529
  %v2531 = vsel %vm2530, %v2523, %v2527
  %v2532 = vand.u32 2147483647, %v2515
  %vm2533 = vcmp.eq.f32.partialorder %v2532, 8.507059e+37
  %v2534 = vand.u32 %v2515, 2147483648
  %v2535 = vor.u32 1.1754944e-38, %v2534
  %v2536 = vsel %vm2533, %v2535, %v2531
  %v2537 = vmul.f32 1.0, %v2536
  %v2538 = vrcp.pop %v2516
  %v2539 = vmul.f32 %v2516, %v2538
  %v2540 = vsub.f32 1.0, %v2539
  %v2541 = vmul.f32 %v2538, %v2540
  %v2542 = vadd.f32 %v2538, %v2541
  %vm2543 = vweird.f32 %v2516
  %vm2544 = vweird.f32 %v2538
  %vm2545 = vmor %vm2543, %vm2544
  %v2546 = vsel %vm2545, %v2538, %v2542
  %v2547 = vand.u32 2147483647, %v2516
  %vm2548 = vcmp.eq.f32.partialorder %v2547, 8.507059e+37
  %v2549 = vand.u32 %v2516, 2147483648
  %v2550 = vor.u32 1.1754944e-38, %v2549
  %v2551 = vsel %vm2548, %v2550, %v2546
  %v2552 = vmul.f32 1.0, %v2551
  %v2553 = vrcp.pop %v2517
  %v2554 = vmul.f32 %v2517, %v2553
  %v2555 = vsub.f32 1.0, %v2554
  %v2556 = vmul.f32 %v2553, %v2555
  %v2557 = vadd.f32 %v2553, %v2556
  %vm2558 = vweird.f32 %v2517
  %vm2559 = vweird.f32 %v2553
  %vm2560 = vmor %vm2558, %vm2559
  %v2561 = vsel %vm2560, %v2553, %v2557
  %v2562 = vand.u32 2147483647, %v2517
  %vm2563 = vcmp.eq.f32.partialorder %v2562, 8.507059e+37
  %v2564 = vand.u32 %v2517, 2147483648
  %v2565 = vor.u32 1.1754944e-38, %v2564
  %v2566 = vsel %vm2563, %v2565, %v2561
  %v2567 = vmul.f32 1.0, %v2566
  %v2568 = vrcp.pop %v2518
  %v2569 = vmul.f32 %v2518, %v2568
  %v2570 = vsub.f32 1.0, %v2569
  %v2571 = vmul.f32 %v2568, %v2570
  %v2572 = vadd.f32 %v2568, %v2571
  %vm2573 = vweird.f32 %v2518
  %vm2574 = vweird.f32 %v2568
  %vm2575 = vmor %vm2573, %vm2574
  %v2576 = vsel %vm2575, %v2568, %v2572
  %v2577 = vand.u32 2147483647, %v2518
  %vm2578 = vcmp.eq.f32.partialorder %v2577, 8.507059e+37
  %v2579 = vand.u32 %v2518, 2147483648
  %v2580 = vor.u32 1.1754944e-38, %v2579
  %v2581 = vsel %vm2578, %v2580, %v2576
  %v2582 = vmul.f32 1.0, %v2581
  %v2583 = vrcp.pop %v2519
  %v2584 = vmul.f32 %v2519, %v2583
  %v2585 = vsub.f32 1.0, %v2584
  %v2586 = vmul.f32 %v2583, %v2585
  %v2587 = vadd.f32 %v2583, %v2586
  %vm2588 = vweird.f32 %v2519
  %vm2589 = vweird.f32 %v2583
  %vm2590 = vmor %vm2588, %vm2589
  %v2591 = vsel %vm2590, %v2583, %v2587
  %v2592 = vand.u32 2147483647, %v2519
  %vm2593 = vcmp.eq.f32.partialorder %v2592, 8.507059e+37
  %v2594 = vand.u32 %v2519, 2147483648
  %v2595 = vor.u32 1.1754944e-38, %v2594
  %v2596 = vsel %vm2593, %v2595, %v2591
  %v2597 = vmul.f32 1.0, %v2596
  %v2598 = vrcp.pop %v2520
  %v2599 = vmul.f32 %v2520, %v2598
  %v2600 = vsub.f32 1.0, %v2599
  %v2601 = vmul.f32 %v2598, %v2600
  %v2602 = vadd.f32 %v2598, %v2601
  %vm2603 = vweird.f32 %v2520
  %vm2604 = vweird.f32 %v2598
  %vm2605 = vmor %vm2603, %vm2604
  %v2606 = vsel %vm2605, %v2598, %v2602
  %v2607 = vand.u32 2147483647, %v2520
  %vm2608 = vcmp.eq.f32.partialorder %v2607, 8.507059e+37
  %v2609 = vand.u32 %v2520, 2147483648
  %v2610 = vor.u32 1.1754944e-38, %v2609
  %v2611 = vsel %vm2608, %v2610, %v2606
  %v2612 = vmul.f32 1.0, %v2611
  %v2613 = vrcp.pop %v2521
  %v2614 = vmul.f32 %v2521, %v2613
  %v2615 = vsub.f32 1.0, %v2614
  %v2616 = vmul.f32 %v2613, %v2615
  %v2617 = vadd.f32 %v2613, %v2616
  %vm2618 = vweird.f32 %v2521
  %vm2619 = vweird.f32 %v2613
  %vm2620 = vmor %vm2618, %vm2619
  %v2621 = vsel %vm2620, %v2613, %v2617
  %v2622 = vand.u32 2147483647, %v2521
  %vm2623 = vcmp.eq.f32.partialorder %v2622, 8.507059e+37
  %v2624 = vand.u32 %v2521, 2147483648
  %v2625 = vor.u32 1.1754944e-38, %v2624
  %v2626 = vsel %vm2623, %v2625, %v2621
  %v2627 = vmul.f32 1.0, %v2626
  %v2628 = vrcp.pop %v2522
  %v2629 = vmul.f32 %v2522, %v2628
  %v2630 = vsub.f32 1.0, %v2629
  %v2631 = vmul.f32 %v2628, %v2630
  %v2632 = vadd.f32 %v2628, %v2631
  %vm2633 = vweird.f32 %v2522
  %vm2634 = vweird.f32 %v2628
  %vm2635 = vmor %vm2633, %vm2634
  %v2636 = vsel %vm2635, %v2628, %v2632
  %v2637 = vand.u32 2147483647, %v2522
  %vm2638 = vcmp.eq.f32.partialorder %v2637, 8.507059e+37
  %v2639 = vand.u32 %v2522, 2147483648
  %v2640 = vor.u32 1.1754944e-38, %v2639
  %v2641 = vsel %vm2638, %v2640, %v2636
  %v2642 = vmul.f32 1.0, %v2641
  %v2643 = vmul.f32 %v2464, %v2537
  %v2644 = vmul.f32 %v2466, %v2552
  %v2645 = vmul.f32 %v2469, %v2567
  %v2646 = vmul.f32 %v2471, %v2582
  %v2647 = vmul.f32 %v2474, %v2597
  %v2648 = vmul.f32 %v2476, %v2612
  %v2649 = vmul.f32 %v2479, %v2627
  %v2650 = vmul.f32 %v2481, %v2642
  %v2651 = vpack.c.bf16 %v2644, %v2643
  %v2652 = vpack.c.bf16 %v2646, %v2645
  %v2653 = vpack.c.bf16 %v2648, %v2647
  %v2654 = vpack.c.bf16 %v2650, %v2649
  %v2671 = vunpack.c.l.b16 %v38
  %v2672 = vunpack.c.l.b16 %v39
  %v2673 = vunpack.c.l.b16 %v40
  %v2674 = vunpack.c.l.b16 %v41
  %v2675 = vunpack.c.l.b16 %v42
  %v2676 = vunpack.c.l.b16 %v43
  %v2677 = vunpack.c.l.b16 %v44
  %v2678 = vunpack.c.l.b16 %v45
  %v2679 = vunpack.c.l.b16 %v46
  %v2680 = vunpack.c.l.b16 %v47
  %v2681 = vunpack.c.l.b16 %v48
  %v2682 = vunpack.c.l.b16 %v49
  %v2683 = vunpack.c.l.b16 %v50
  %v2684 = vunpack.c.l.b16 %v51
  %v2685 = vunpack.c.l.b16 %v52
  %v2686 = vunpack.c.l.b16 %v53
  %v2687 = vpack.c.b16 %v2672, %v2671
  %v2688 = vpack.c.b16 %v2674, %v2673
  %v2689 = vpack.c.b16 %v2676, %v2675
  %v2690 = vpack.c.b16 %v2678, %v2677
  %v2691 = vpack.c.b16 %v2680, %v2679
  %v2692 = vpack.c.b16 %v2682, %v2681
  %v2693 = vpack.c.b16 %v2684, %v2683
  %v2694 = vpack.c.b16 %v2686, %v2685
  %2703 = vmatpush.bf16.msra.mxu0 %v2694
  %2704 = vmatpush.bf16.msra.mxu0 %v2693
  %2705 = vmatpush.bf16.msra.mxu0 %v2692
  %2706 = vmatpush.bf16.msra.mxu0 %v2691
  %2707 = vmatpush.bf16.msra.mxu0 %v2690
  %2708 = vmatpush.bf16.msra.mxu0 %v2689
  %2709 = vmatpush.bf16.msra.mxu0 %v2688
  %2710 = vmatpush.bf16.msra.mxu0 %v2687
  %2711 = vmatmul.bf16.gmra.mxu0 %v2651
  %v2712 = vpop.f32.mrf.mxu0
  %v2713 = vadd.f32 0.0, %v2712
  %v2714 = vpop.f32.mrf.mxu0
  %v2715 = vadd.f32 0.0, %v2714
  %2716 = vmatmul.bf16.gmra.mxu0 %v2652
  %v2717 = vpop.f32.mrf.mxu0
  %v2718 = vadd.f32 0.0, %v2717
  %v2719 = vpop.f32.mrf.mxu0
  %v2720 = vadd.f32 0.0, %v2719
  %2721 = vmatmul.bf16.gmra.mxu0 %v2653
  %v2722 = vpop.f32.mrf.mxu0
  %v2723 = vadd.f32 0.0, %v2722
  %v2724 = vpop.f32.mrf.mxu0
  %v2725 = vadd.f32 0.0, %v2724
  %2726 = vmatmul.bf16.gmra.mxu0 %v2654
  %v2727 = vpop.f32.mrf.mxu0
  %v2728 = vadd.f32 0.0, %v2727
  %v2729 = vpop.f32.mrf.mxu0
  %v2730 = vadd.f32 0.0, %v2729
  %2731 = vdwg.mxu0
  %v2732 = vadd.f32 %v2227, %v2713
  %v2733 = vadd.f32 %v2228, %v2715
  %v2734 = vadd.f32 %v2229, %v2718
  %v2735 = vadd.f32 %v2230, %v2720
  %v2736 = vadd.f32 %v2231, %v2723
  %v2737 = vadd.f32 %v2232, %v2725
  %v2738 = vadd.f32 %v2233, %v2728
  %v2739 = vadd.f32 %v2234, %v2730
  %v2740 = vperm.slane %v68, 7
  %v2741 = vadd.f32 %v2732, %v2740
  %v2742 = vadd.f32 %v2733, %v2740
  %v2743 = vadd.f32 %v2734, %v2740
  %v2744 = vadd.f32 %v2735, %v2740
  %v2745 = vadd.f32 %v2736, %v2740
  %v2746 = vadd.f32 %v2737, %v2740
  %v2747 = vadd.f32 %v2738, %v2740
  %v2748 = vadd.f32 %v2739, %v2740
  %v2749 = vpack.c.bf16 %v70, %v70
  %v2750 = vpack.c.bf16 %v2742, %v2741
  %v2751 = vpack.c.bf16 %v2744, %v2743
  %v2752 = vpack.c.bf16 %v2746, %v2745
  %v2753 = vpack.c.bf16 %v2748, %v2747
  %s2754 = sld [smem:[#allocation2]]
  %v2755 = vstv %s2754
  %v2757 = vsel %vm100, %v2749, 0
  %2759 = vmatpush.bf16.msra.mxu0 0
  %2760 = vmatpush.bf16.msra.mxu0 0
  %2761 = vmatpush.bf16.msra.mxu0 0
  %2762 = vmatpush.bf16.msra.mxu0 0
  %2763 = vmatpush.bf16.msra.mxu0 %v2753
  %2764 = vmatpush.bf16.msra.mxu0 %v2752
  %2765 = vmatpush.bf16.msra.mxu0 %v2751
  %2766 = vmatpush.bf16.msra.mxu0 %v2750
  %2767 = vmatmul.bf16.gmra.mxu0 %v2757
  %v2768 = vpop.f32.mrf.mxu0
  %v2769 = vadd.f32 %v2755, %v2768
  %v2770 = vpop.f32.mrf.mxu0
  %2771 = vdwg.mxu0
  %v2772 = vpack.c.bf16 %v2769, %v2769
  %v2773 = vperm.slane %v69, 0
  %v2778 = vunpack.c.l.b16 %v61
  %v2779 = vunpack.c.l.b16 %v63
  %v2780 = vunpack.c.l.b16 %v65
  %v2781 = vunpack.c.l.b16 %v67
  %v2782 = vpack.c.b16 %v2779, %v2778
  %v2783 = vpack.c.b16 %v2781, %v2780
  %v2787 = vsel %vm142, %v2772, 0
  %2789 = vmatpush.bf16.msra.mxu0 0
  %2790 = vmatpush.bf16.msra.mxu0 0
  %2791 = vmatpush.bf16.msra.mxu0 0
  %2792 = vmatpush.bf16.msra.mxu0 0
  %2793 = vmatpush.bf16.msra.mxu0 0
  %2794 = vmatpush.bf16.msra.mxu0 0
  %2795 = vmatpush.bf16.msra.mxu0 %v2783
  %2796 = vmatpush.bf16.msra.mxu0 %v2782
  %2797 = vmatmul.bf16.gmra.mxu0 %v2787
  %v2798 = vpop.f32.mrf.mxu0
  %v2799 = vadd.f32 %v2773, %v2798
  %v2800 = vpop.f32.mrf.mxu0
  %2801 = vdwg.mxu0
  %v2802 = vmul.f32 %v2799, 1.702
  %v2803 = vxor.u32 %v2802, 2147483648
  %v2804 = vmul.f32 %v2803, 1.442695
  %v2805 = vpow.pop %v2804
  %v2806 = vadd.f32 %v2805, 1.0
  %v2807 = vrcp.pop %v2806
  %v2808 = vmul.f32 %v2806, %v2807
  %v2809 = vsub.f32 1.0, %v2808
  %v2810 = vmul.f32 %v2807, %v2809
  %v2811 = vadd.f32 %v2807, %v2810
  %vm2812 = vweird.f32 %v2806
  %vm2813 = vweird.f32 %v2807
  %vm2814 = vmor %vm2812, %vm2813
  %v2815 = vsel %vm2814, %v2807, %v2811
  %v2816 = vand.u32 2147483647, %v2806
  %vm2817 = vcmp.eq.f32.partialorder %v2816, 8.507059e+37
  %v2818 = vand.u32 %v2806, 2147483648
  %v2819 = vor.u32 1.1754944e-38, %v2818
  %v2820 = vsel %vm2817, %v2819, %v2815
  %v2821 = vmul.f32 1.0, %v2820
  %v2822 = vmul.f32 %v2799, %v2821
  %v2823 = vpack.c.bf16 %v2822, %v2822
  %v2824 = vperm.slane %v69, 1
  %v2827 = vunpack.c.l.b16 %v58
  %v2828 = vunpack.c.l.b16 %v59
  %v2829 = vpack.c.b16 %v2828, %v2827
  %v2832 = vsel %vm527, %v2823, 0
  %2834 = vmatpush.bf16.msra.mxu0 0
  %2835 = vmatpush.bf16.msra.mxu0 0
  %2836 = vmatpush.bf16.msra.mxu0 0
  %2837 = vmatpush.bf16.msra.mxu0 0
  %2838 = vmatpush.bf16.msra.mxu0 0
  %2839 = vmatpush.bf16.msra.mxu0 0
  %2840 = vmatpush.bf16.msra.mxu0 0
  %2841 = vmatpush.bf16.msra.mxu0 %v2829
  %2842 = vmatmul.bf16.gmra.mxu0 %v2832
  %v2843 = vpop.f32.mrf.mxu0
  %v2844 = vadd.f32 %v2824, %v2843
  %v2845 = vpop.f32.mrf.mxu0
  %2846 = vdwg.mxu0
  %v2847 = vadd.f32 %v2844, %v2799
  %vm2848 = vcmask 125952
  %v2849 = vsel %vm2848, %v2847, 0.0
  %2850 = vadd.xlane.f32.xlu0 %v2849
  %v2851 = vpop.xlane.xlu0 %2850
  %v2852 = vrcp.pop 16.0
  %v2853 = vmul.f32 16.0, %v2852
  %v2854 = vsub.f32 1.0, %v2853
  %v2855 = vmul.f32 %v2852, %v2854
  %v2856 = vadd.f32 %v2852, %v2855
  %vm2857 = vweird.f32 %v2852
  %v2858 = vsel %vm2857, %v2852, %v2856
  %v2859 = vmul.f32 %v2851, %v2858
  %v2860 = vsub.f32 %v2847, %v2859
  %v2861 = vmul.f32 %v2860, %v2860
  %v2862 = vsel %vm2848, %v2861, 0.0
  %2863 = vadd.xlane.f32.xlu0 %v2862
  %v2864 = vpop.xlane.xlu0 %2863
  %v2865 = vmul.f32 %v2864, %v2858
  %v2866 = vadd.f32 %v2865, 1e-05
  %v2867 = vrsqrt.pop %v2866
  %v2868 = vmul.f32 %v2867, %v2866
  %v2869 = vmul.f32 %v2868, %v2867
  %v2870 = vmul.f32 0.5, %v2869
  %v2871 = vsub.f32 1.5, %v2870
  %v2872 = vmul.f32 %v2867, %v2871
  %vm2873 = vweird.f32 %v2866
  %vm2874 = vweird.f32 %v2867
  %vm2875 = vmor %vm2873, %vm2874
  %v2876 = vsel %vm2875, %v2867, %v2872
  %v2877 = vmul.f32 %v2860, %v2876
  %v2878 = vperm.slane %v69, 2
  %v2879 = vmul.f32 %v2877, %v2878
  %v2880 = vperm.slane %v69, 3
  %v2881 = vadd.f32 %v2879, %v2880
  %2882 = vst.msk [vmem:[%s5] sm:$0xf] %vm2848, %v2881
  // Predicated region
  $region22: #{clve_model_forward.1} parent=0 // pred_check
    _
  $region23: #{clve_model_forward.1} parent=0 // pred_check_branch
    %2884 = sbr.rel (0) target = $region25
  $region24: #{clve_model_forward.1} parent=0 // pred_region
    _
  $region25: #{clve_model_forward.1} parent=0 // pred_fallthru
    _
  // Predicated region
  $region26: #{clve_model_forward.1} parent=0 // pred_check
    _
  $region27: #{clve_model_forward.1} parent=0 // pred_check_branch
    %2886 = sbr.rel (0) target = $region29
  $region28: #{clve_model_forward.1} parent=0 // pred_region
    _
  $region29: #{clve_model_forward.1} parent=0 // pred_fallthru
    _

</llo_original>
